<compile_context>
chip_gen: v5e
topology: v5e:2x2
jax: 0.10.0
libtpu: 0.0.40
codegen_flags: <defaults>
</compile_context>

<pallas_src>
import jax
import jax.numpy as jnp
from jax.experimental import pallas as pl
from jax.experimental.pallas import tpu as pltpu


def _round_up(x, m):
    return ((x + m - 1) // m) * m


def mlp_kernel(x_ref,
               w1_ref, b1_ref,     # Linear(IN,256) with BN1 folded in
               w2_ref, b2_ref,     # Linear(256,128) with BN2 folded in
               w3_ref, b3_ref,     # Linear(128,64)
               w4_ref, b4_ref,     # Linear(64,C_pad), zero-padded classifier
               o_ref):
    # Layer 1: Linear + folded BatchNorm, then ReLU.  (Dropout = identity, eval)
    h = jnp.dot(x_ref[...], w1_ref[...],
                preferred_element_type=jnp.float32) + b1_ref[...]
    h = jnp.maximum(h, 0.0)

    # Layer 2: Linear + folded BatchNorm, then ReLU.  (Dropout = identity, eval)
    h = jnp.dot(h.astype(jnp.bfloat16), w2_ref[...],
                preferred_element_type=jnp.float32) + b2_ref[...]
    h = jnp.maximum(h, 0.0)

    # Layer 3: Linear, ReLU.
    h = jnp.dot(h.astype(jnp.bfloat16), w3_ref[...],
                preferred_element_type=jnp.float32) + b3_ref[...]
    h = jnp.maximum(h, 0.0)

    # Output layer: lane-dense padded width (extra columns are exact zeros).
    o_ref[...] = jnp.dot(h.astype(jnp.bfloat16), w4_ref[...],
                         preferred_element_type=jnp.float32) + b4_ref[...]


def mlp_forward(x, params, *, batch_tile=512, eps=1e-5):
    B = x.shape[0]
    # nn.Flatten + bf16 cast outside the kernel -> input DMA is 2 B/elem.
    xf = x.reshape(B, -1).astype(jnp.bfloat16)
    IN = xf.shape[1]
    C = params["w4"].shape[0]
    H1, H2, H3 = 256, 128, 64
    C_pad = _round_up(C, 128)                      # lane-dense output width

    # --- fold eval-mode BatchNorm into the preceding Linear (exact) ---
    def fold_bn(w, b, gamma, beta, mean, var):
        scale = gamma / jnp.sqrt(var + eps)                       # (out,)
        w_eff = (w * scale[:, None]).T                            # (in, out)
        b_eff = (b - mean) * scale + beta                         # (out,)
        return w_eff.astype(jnp.bfloat16), b_eff.astype(jnp.float32)[None, :]

    w1, b1 = fold_bn(params["w1"], params["b1"], params["bn1_gamma"],
                     params["bn1_beta"], params["bn1_mean"], params["bn1_var"])
    w2, b2 = fold_bn(params["w2"], params["b2"], params["bn2_gamma"],
                     params["bn2_beta"], params["bn2_mean"], params["bn2_var"])
    w3 = params["w3"].T.astype(jnp.bfloat16)
    b3 = params["b3"].astype(jnp.float32)[None, :]
    # Classifier: transpose + ZERO-pad to lane-dense width (slice back later).
    w4 = jnp.zeros((H3, C_pad), jnp.bfloat16).at[:, :C].set(
        params["w4"].T.astype(jnp.bfloat16))
    b4 = jnp.zeros((1, C_pad), jnp.float32).at[:, :C].set(
        params["b4"].astype(jnp.float32))

    weights = [w1, b1, w2, b2, w3, b3, w4, b4]

    # --- batch tiling: biggest tile that fits, but keep >=4 grid steps for
    #     pipelining / v7x megacore once the batch is large enough. ---
    tb = min(batch_tile, _round_up(B, 8))
    tb = max(8, _round_up(tb, 8))
    while tb >= 512 and pl.cdiv(B, tb) < 4:
        tb //= 2
    grid_m = pl.cdiv(B, tb)
    B_pad = grid_m * tb
    if B_pad != B:
        xf = jnp.pad(xf, ((0, B_pad - B), (0, 0)))   # padded rows sliced off below

    # VMEM budget from the actual working set (input/output double-buffered,
    # weights counted twice for the no-Buffered(1) fallback), capped for v7x.
    weight_bytes = sum(int(a.size) * a.dtype.itemsize for a in weights)
    working_set = 2 * (tb * IN * 2) + 2 * (tb * C_pad * 4) + 2 * weight_bytes
    vmem_limit = int(min(48 * 1024 * 1024,
                         max(16 * 1024 * 1024, 2 * working_set)))

    flops = 2 * B_pad * (IN * H1 + H1 * H2 + H2 * H3 + H3 * C_pad)
    bytes_accessed = 2 * B_pad * IN + 4 * B_pad * C_pad + weight_bytes

    def build(single_buffer_weights):
        def const_spec(a):
            # Grid-invariant blocks: fetched once, never revisited.
            if single_buffer_weights:
                return pl.BlockSpec(a.shape, lambda i: (0, 0),
                                    pipeline_mode=pl.Buffered(1))
            return pl.BlockSpec(a.shape, lambda i: (0, 0))

        return pl.pallas_call(
            mlp_kernel,
            out_shape=jax.ShapeDtypeStruct((B_pad, C_pad), jnp.float32),
            grid_spec=pltpu.PrefetchScalarGridSpec(
                num_scalar_prefetch=0,
                grid=(grid_m,),
                in_specs=[pl.BlockSpec((tb, IN), lambda i: (i, 0))]
                         + [const_spec(a) for a in weights],
                out_specs=pl.BlockSpec((tb, C_pad), lambda i: (i, 0)),
            ),
            compiler_params=pltpu.CompilerParams(
                dimension_semantics=("parallel",),
                vmem_limit_bytes=vmem_limit,
            ),
            cost_estimate=pl.CostEstimate(flops=flops, transcendentals=0,
                                          bytes_accessed=bytes_accessed),
        )

    try:
        out = build(True)(xf, *weights)
    except Exception:
        # Fallback if this JAX build rejects single-buffered (Buffered(1))
        # grid-invariant blocks; only costs ~weight_bytes extra VMEM.
        out = build(False)(xf, *weights)

    return out[:B, :C]


def make_params(key, input_size, n_classes):
    ks = jax.random.split(key, 16)
    f = lambda k, shape, s: (s * jax.random.normal(k, shape)).astype(jnp.float32)
    pos = lambda k, shape: (1.0 + 0.1 * jnp.abs(jax.random.normal(k, shape))).astype(jnp.float32)
    return {
        # PyTorch-layout Linear weights: (out, in)
        "w1": f(ks[0], (256, input_size), 1.0 / (input_size ** 0.5)),
        "b1": f(ks[1], (256,), 0.05),
        "bn1_gamma": (1.0 + f(ks[2], (256,), 0.05)), "bn1_beta": f(ks[3], (256,), 0.05),
        "bn1_mean": f(ks[4], (256,), 0.1), "bn1_var": pos(ks[5], (256,)),
        "w2": f(ks[6], (128, 256), 1.0 / (256 ** 0.5)),
        "b2": f(ks[7], (128,), 0.05),
        "bn2_gamma": (1.0 + f(ks[8], (128,), 0.05)), "bn2_beta": f(ks[9], (128,), 0.05),
        "bn2_mean": f(ks[10], (128,), 0.1), "bn2_var": pos(ks[11], (128,)),
        "w3": f(ks[12], (64, 128), 1.0 / (128 ** 0.5)),
        "b3": f(ks[13], (64,), 0.05),
        "w4": f(ks[14], (n_classes, 64), 1.0 / (64 ** 0.5)),
        "b4": f(ks[15], (n_classes,), 0.05),
    }


def mlp_ref(x, p, eps=1e-5):
    """Pure-JAX f32 reference mirroring the PyTorch eval-mode forward."""
    B = x.shape[0]
    h = x.reshape(B, -1)
    z = h @ p["w1"].T + p["b1"]
    z = (z - p["bn1_mean"]) * jax.lax.rsqrt(p["bn1_var"] + eps) * p["bn1_gamma"] + p["bn1_beta"]
    h = jnp.maximum(z, 0.0)
    z = h @ p["w2"].T + p["b2"]
    z = (z - p["bn2_mean"]) * jax.lax.rsqrt(p["bn2_var"] + eps) * p["bn2_gamma"] + p["bn2_beta"]
    h = jnp.maximum(z, 0.0)
    h = jnp.maximum(h @ p["w3"].T + p["b3"], 0.0)
    return h @ p["w4"].T + p["b4"]


if __name__ == "__main__":
    # Small demo: batch=24, channels=4, 16x16 -> flattened input_size = 1024.
    # batch_tile=16 exercises a 2-step grid plus the ragged-batch padding path.
    B, Cch, Hs, Ws = 24, 4, 16, 16
    n_classes = 10
    input_size = Cch * Hs * Ws

    key = jax.random.PRNGKey(0)
    kx, kp = jax.random.split(key)
    x = jax.random.normal(kx, (B, Cch, Hs, Ws), jnp.float32)
    params = make_params(kp, input_size, n_classes)

    out = jax.block_until_ready(mlp_forward(x, params, batch_tile=16))
    ref = mlp_ref(x, params)

    assert out.shape == (B, n_classes)
    # bf16 matmul inputs / BN-folded bf16 weights with f32 accumulation
    # -> loosened tolerance vs the pure-f32 reference.
    assert jnp.allclose(out, ref, atol=2e-2, rtol=2e-2), "mismatch vs reference"
    print("KERNEL_OK")
</pallas_src>

<mosaic_0001>
module attributes {stable_mosaic.version = 11 : i64} {
  func.func @mlp_kernel(%arg0: i32, %arg1: memref<16x1024xbf16, #tpu.memory_space<vmem>>, %arg2: memref<1024x256xbf16, #tpu.memory_space<vmem>>, %arg3: memref<1x256xf32, #tpu.memory_space<vmem>>, %arg4: memref<256x128xbf16, #tpu.memory_space<vmem>>, %arg5: memref<1x128xf32, #tpu.memory_space<vmem>>, %arg6: memref<128x64xbf16, #tpu.memory_space<vmem>>, %arg7: memref<1x64xf32, #tpu.memory_space<vmem>>, %arg8: memref<64x128xbf16, #tpu.memory_space<vmem>>, %arg9: memref<1x128xf32, #tpu.memory_space<vmem>>, %arg10: memref<16x128xf32, #tpu.memory_space<vmem>>) attributes {dimension_semantics = [#tpu.dimension_semantics<parallel>], iteration_bounds = array<i64: 2>, scalar_prefetch = 0 : i64, scratch_operands = 0 : i64, tpu.core_type = #tpu.core_type<tc>, window_params = [{transform_indices = @transform_0, window_bounds = array<i64: 16, 1024>}, {pipeline_mode = #tpu.pipeline_mode<synchronous>, transform_indices = @transform_1, window_bounds = array<i64: 1024, 256>}, {pipeline_mode = #tpu.pipeline_mode<synchronous>, transform_indices = @transform_2, window_bounds = array<i64: 1, 256>}, {pipeline_mode = #tpu.pipeline_mode<synchronous>, transform_indices = @transform_3, window_bounds = array<i64: 256, 128>}, {pipeline_mode = #tpu.pipeline_mode<synchronous>, transform_indices = @transform_4, window_bounds = array<i64: 1, 128>}, {pipeline_mode = #tpu.pipeline_mode<synchronous>, transform_indices = @transform_5, window_bounds = array<i64: 128, 64>}, {pipeline_mode = #tpu.pipeline_mode<synchronous>, transform_indices = @transform_6, window_bounds = array<i64: 1, 64>}, {pipeline_mode = #tpu.pipeline_mode<synchronous>, transform_indices = @transform_7, window_bounds = array<i64: 64, 128>}, {pipeline_mode = #tpu.pipeline_mode<synchronous>, transform_indices = @transform_8, window_bounds = array<i64: 1, 128>}, {transform_indices = @transform_9, window_bounds = array<i64: 16, 128>}]} {
    %c0 = arith.constant 0 : index
    %c0_0 = arith.constant 0 : index
    %0 = vector.load %arg1[%c0, %c0_0] : memref<16x1024xbf16, #tpu.memory_space<vmem>>, vector<16x1024xbf16>
    %c0_1 = arith.constant 0 : index
    %c0_2 = arith.constant 0 : index
    %1 = vector.load %arg2[%c0_1, %c0_2] : memref<1024x256xbf16, #tpu.memory_space<vmem>>, vector<1024x256xbf16>
    %cst = arith.constant dense<0.000000e+00> : vector<16x256xf32>
    %2 = tpu.matmul %0, %1, %cst {dimension_numbers = #tpu.dot_dimension_numbers<[1], [0], [0], [1], [0, 0, 1, 1], [], []>} : vector<16x1024xbf16>, vector<1024x256xbf16>, vector<16x256xf32> -> vector<16x256xf32>
    %c0_3 = arith.constant 0 : index
    %c0_4 = arith.constant 0 : index
    %3 = vector.load %arg3[%c0_3, %c0_4] : memref<1x256xf32, #tpu.memory_space<vmem>>, vector<1x256xf32>
    %4 = vector.broadcast %3 : vector<1x256xf32> to vector<16x256xf32>
    %5 = arith.addf %2, %4 : vector<16x256xf32>
    %cst_5 = arith.constant 0.000000e+00 : f32
    %6 = vector.broadcast %cst_5 : f32 to vector<16x256xf32>
    %7 = arith.maximumf %5, %6 : vector<16x256xf32>
    %8 = arith.truncf %7 : vector<16x256xf32> to vector<16x256xbf16>
    %c0_6 = arith.constant 0 : index
    %c0_7 = arith.constant 0 : index
    %9 = vector.load %arg4[%c0_6, %c0_7] : memref<256x128xbf16, #tpu.memory_space<vmem>>, vector<256x128xbf16>
    %cst_8 = arith.constant dense<0.000000e+00> : vector<16x128xf32>
    %10 = tpu.matmul %8, %9, %cst_8 {dimension_numbers = #tpu.dot_dimension_numbers<[1], [0], [0], [1], [0, 0, 1, 1], [], []>} : vector<16x256xbf16>, vector<256x128xbf16>, vector<16x128xf32> -> vector<16x128xf32>
    %c0_9 = arith.constant 0 : index
    %c0_10 = arith.constant 0 : index
    %11 = vector.load %arg5[%c0_9, %c0_10] : memref<1x128xf32, #tpu.memory_space<vmem>>, vector<1x128xf32>
    %12 = vector.broadcast %11 : vector<1x128xf32> to vector<16x128xf32>
    %13 = arith.addf %10, %12 : vector<16x128xf32>
    %cst_11 = arith.constant 0.000000e+00 : f32
    %14 = vector.broadcast %cst_11 : f32 to vector<16x128xf32>
    %15 = arith.maximumf %13, %14 : vector<16x128xf32>
    %16 = arith.truncf %15 : vector<16x128xf32> to vector<16x128xbf16>
    %c0_12 = arith.constant 0 : index
    %c0_13 = arith.constant 0 : index
    %17 = vector.load %arg6[%c0_12, %c0_13] : memref<128x64xbf16, #tpu.memory_space<vmem>>, vector<128x64xbf16>
    %cst_14 = arith.constant dense<0.000000e+00> : vector<16x64xf32>
    %18 = tpu.matmul %16, %17, %cst_14 {dimension_numbers = #tpu.dot_dimension_numbers<[1], [0], [0], [1], [0, 0, 1, 1], [], []>} : vector<16x128xbf16>, vector<128x64xbf16>, vector<16x64xf32> -> vector<16x64xf32>
    %c0_15 = arith.constant 0 : index
    %c0_16 = arith.constant 0 : index
    %19 = vector.load %arg7[%c0_15, %c0_16] : memref<1x64xf32, #tpu.memory_space<vmem>>, vector<1x64xf32>
    %20 = vector.broadcast %19 : vector<1x64xf32> to vector<16x64xf32>
    %21 = arith.addf %18, %20 : vector<16x64xf32>
    %cst_17 = arith.constant 0.000000e+00 : f32
    %22 = vector.broadcast %cst_17 : f32 to vector<16x64xf32>
    %23 = arith.maximumf %21, %22 : vector<16x64xf32>
    %24 = arith.truncf %23 : vector<16x64xf32> to vector<16x64xbf16>
    %c0_18 = arith.constant 0 : index
    %c0_19 = arith.constant 0 : index
    %25 = vector.load %arg8[%c0_18, %c0_19] : memref<64x128xbf16, #tpu.memory_space<vmem>>, vector<64x128xbf16>
    %cst_20 = arith.constant dense<0.000000e+00> : vector<16x128xf32>
    %26 = tpu.matmul %24, %25, %cst_20 {dimension_numbers = #tpu.dot_dimension_numbers<[1], [0], [0], [1], [0, 0, 1, 1], [], []>} : vector<16x64xbf16>, vector<64x128xbf16>, vector<16x128xf32> -> vector<16x128xf32>
    %c0_21 = arith.constant 0 : index
    %c0_22 = arith.constant 0 : index
    %27 = vector.load %arg9[%c0_21, %c0_22] : memref<1x128xf32, #tpu.memory_space<vmem>>, vector<1x128xf32>
    %28 = vector.broadcast %27 : vector<1x128xf32> to vector<16x128xf32>
    %29 = arith.addf %26, %28 : vector<16x128xf32>
    %c0_23 = arith.constant 0 : index
    %c0_24 = arith.constant 0 : index
    %30 = vector.load %arg10[%c0_23, %c0_24] : memref<16x128xf32, #tpu.memory_space<vmem>>, vector<16x128xf32>
    tpu.vector_store %arg10[%c0_23, %c0_24], %29 {strides = array<i32>} : memref<16x128xf32, #tpu.memory_space<vmem>>, vector<16x128xf32>,
    return
  }
  func.func @transform_0(%arg0: i32) -> (i32, i32) {
    %c0_i32 = arith.constant 0 : i32
    %c0_i32_0 = arith.constant 0 : i32
    return %arg0, %c0_i32 : i32, i32
  }
  func.func @transform_1(%arg0: i32) -> (i32, i32) {
    %c0_i32 = arith.constant 0 : i32
    %c0_i32_0 = arith.constant 0 : i32
    %c0_i32_1 = arith.constant 0 : i32
    return %c0_i32, %c0_i32_0 : i32, i32
  }
  func.func @transform_2(%arg0: i32) -> (i32, i32) {
    %c0_i32 = arith.constant 0 : i32
    %c0_i32_0 = arith.constant 0 : i32
    %c0_i32_1 = arith.constant 0 : i32
    return %c0_i32, %c0_i32_0 : i32, i32
  }
  func.func @transform_3(%arg0: i32) -> (i32, i32) {
    %c0_i32 = arith.constant 0 : i32
    %c0_i32_0 = arith.constant 0 : i32
    %c0_i32_1 = arith.constant 0 : i32
    return %c0_i32, %c0_i32_0 : i32, i32
  }
  func.func @transform_4(%arg0: i32) -> (i32, i32) {
    %c0_i32 = arith.constant 0 : i32
    %c0_i32_0 = arith.constant 0 : i32
    %c0_i32_1 = arith.constant 0 : i32
    return %c0_i32, %c0_i32_0 : i32, i32
  }
  func.func @transform_5(%arg0: i32) -> (i32, i32) {
    %c0_i32 = arith.constant 0 : i32
    %c0_i32_0 = arith.constant 0 : i32
    %c0_i32_1 = arith.constant 0 : i32
    return %c0_i32, %c0_i32_0 : i32, i32
  }
  func.func @transform_6(%arg0: i32) -> (i32, i32) {
    %c0_i32 = arith.constant 0 : i32
    %c0_i32_0 = arith.constant 0 : i32
    %c0_i32_1 = arith.constant 0 : i32
    return %c0_i32, %c0_i32_0 : i32, i32
  }
  func.func @transform_7(%arg0: i32) -> (i32, i32) {
    %c0_i32 = arith.constant 0 : i32
    %c0_i32_0 = arith.constant 0 : i32
    %c0_i32_1 = arith.constant 0 : i32
    return %c0_i32, %c0_i32_0 : i32, i32
  }
  func.func @transform_8(%arg0: i32) -> (i32, i32) {
    %c0_i32 = arith.constant 0 : i32
    %c0_i32_0 = arith.constant 0 : i32
    %c0_i32_1 = arith.constant 0 : i32
    return %c0_i32, %c0_i32_0 : i32, i32
  }
  func.func @transform_9(%arg0: i32) -> (i32, i32) {
    %c0_i32 = arith.constant 0 : i32
    %c0_i32_0 = arith.constant 0 : i32
    return %arg0, %c0_i32 : i32, i32
  }
}

module attributes {stable_mosaic.version = 11 : i64} {
  func.func @mlp_kernel(%arg0: i32, %arg1: memref<16x1024xbf16, #tpu.memory_space<vmem>>, %arg2: memref<1024x256xbf16, #tpu.memory_space<vmem>>, %arg3: memref<1x256xf32, #tpu.memory_space<vmem>>, %arg4: memref<256x128xbf16, #tpu.memory_space<vmem>>, %arg5: memref<1x128xf32, #tpu.memory_space<vmem>>, %arg6: memref<128x64xbf16, #tpu.memory_space<vmem>>, %arg7: memref<1x64xf32, #tpu.memory_space<vmem>>, %arg8: memref<64x128xbf16, #tpu.memory_space<vmem>>, %arg9: memref<1x128xf32, #tpu.memory_space<vmem>>, %arg10: memref<16x128xf32, #tpu.memory_space<vmem>>) attributes {dimension_semantics = [#tpu.dimension_semantics<parallel>], iteration_bounds = array<i64: 2>, scalar_prefetch = 0 : i64, scratch_operands = 0 : i64, tpu.core_type = #tpu.core_type<tc>, window_params = [{transform_indices = @transform_0, window_bounds = array<i64: 16, 1024>}, {pipeline_mode = #tpu.pipeline_mode<synchronous>, transform_indices = @transform_1, window_bounds = array<i64: 1024, 256>}, {pipeline_mode = #tpu.pipeline_mode<synchronous>, transform_indices = @transform_2, window_bounds = array<i64: 1, 256>}, {pipeline_mode = #tpu.pipeline_mode<synchronous>, transform_indices = @transform_3, window_bounds = array<i64: 256, 128>}, {pipeline_mode = #tpu.pipeline_mode<synchronous>, transform_indices = @transform_4, window_bounds = array<i64: 1, 128>}, {pipeline_mode = #tpu.pipeline_mode<synchronous>, transform_indices = @transform_5, window_bounds = array<i64: 128, 64>}, {pipeline_mode = #tpu.pipeline_mode<synchronous>, transform_indices = @transform_6, window_bounds = array<i64: 1, 64>}, {pipeline_mode = #tpu.pipeline_mode<synchronous>, transform_indices = @transform_7, window_bounds = array<i64: 64, 128>}, {pipeline_mode = #tpu.pipeline_mode<synchronous>, transform_indices = @transform_8, window_bounds = array<i64: 1, 128>}, {transform_indices = @transform_9, window_bounds = array<i64: 16, 128>}]} {
    %c0 = arith.constant 0 : index
    %c0_0 = arith.constant 0 : index
    %0 = vector.load %arg1[%c0, %c0_0] : memref<16x1024xbf16, #tpu.memory_space<vmem>>, vector<16x1024xbf16>
    %c0_1 = arith.constant 0 : index
    %c0_2 = arith.constant 0 : index
    %1 = vector.load %arg2[%c0_1, %c0_2] : memref<1024x256xbf16, #tpu.memory_space<vmem>>, vector<1024x256xbf16>
    %cst = arith.constant dense<0.000000e+00> : vector<16x256xf32>
    %2 = tpu.matmul %0, %1, %cst {dimension_numbers = #tpu.dot_dimension_numbers<[1], [0], [0], [1], [0, 0, 1, 1], [], []>} : vector<16x1024xbf16>, vector<1024x256xbf16>, vector<16x256xf32> -> vector<16x256xf32>
    %c0_3 = arith.constant 0 : index
    %c0_4 = arith.constant 0 : index
    %3 = vector.load %arg3[%c0_3, %c0_4] : memref<1x256xf32, #tpu.memory_space<vmem>>, vector<1x256xf32>
    %4 = vector.broadcast %3 : vector<1x256xf32> to vector<16x256xf32>
    %5 = arith.addf %2, %4 : vector<16x256xf32>
    %cst_5 = arith.constant 0.000000e+00 : f32
    %6 = vector.broadcast %cst_5 : f32 to vector<16x256xf32>
    %7 = arith.maximumf %5, %6 : vector<16x256xf32>
    %8 = arith.truncf %7 : vector<16x256xf32> to vector<16x256xbf16>
    %c0_6 = arith.constant 0 : index
    %c0_7 = arith.constant 0 : index
    %9 = vector.load %arg4[%c0_6, %c0_7] : memref<256x128xbf16, #tpu.memory_space<vmem>>, vector<256x128xbf16>
    %cst_8 = arith.constant dense<0.000000e+00> : vector<16x128xf32>
    %10 = tpu.matmul %8, %9, %cst_8 {dimension_numbers = #tpu.dot_dimension_numbers<[1], [0], [0], [1], [0, 0, 1, 1], [], []>} : vector<16x256xbf16>, vector<256x128xbf16>, vector<16x128xf32> -> vector<16x128xf32>
    %c0_9 = arith.constant 0 : index
    %c0_10 = arith.constant 0 : index
    %11 = vector.load %arg5[%c0_9, %c0_10] : memref<1x128xf32, #tpu.memory_space<vmem>>, vector<1x128xf32>
    %12 = vector.broadcast %11 : vector<1x128xf32> to vector<16x128xf32>
    %13 = arith.addf %10, %12 : vector<16x128xf32>
    %cst_11 = arith.constant 0.000000e+00 : f32
    %14 = vector.broadcast %cst_11 : f32 to vector<16x128xf32>
    %15 = arith.maximumf %13, %14 : vector<16x128xf32>
    %16 = arith.truncf %15 : vector<16x128xf32> to vector<16x128xbf16>
    %c0_12 = arith.constant 0 : index
    %c0_13 = arith.constant 0 : index
    %17 = vector.load %arg6[%c0_12, %c0_13] : memref<128x64xbf16, #tpu.memory_space<vmem>>, vector<128x64xbf16>
    %cst_14 = arith.constant dense<0.000000e+00> : vector<16x64xf32>
    %18 = tpu.matmul %16, %17, %cst_14 {dimension_numbers = #tpu.dot_dimension_numbers<[1], [0], [0], [1], [0, 0, 1, 1], [], []>} : vector<16x128xbf16>, vector<128x64xbf16>, vector<16x64xf32> -> vector<16x64xf32>
    %c0_15 = arith.constant 0 : index
    %c0_16 = arith.constant 0 : index
    %19 = vector.load %arg7[%c0_15, %c0_16] : memref<1x64xf32, #tpu.memory_space<vmem>>, vector<1x64xf32>
    %20 = vector.broadcast %19 : vector<1x64xf32> to vector<16x64xf32>
    %21 = arith.addf %18, %20 : vector<16x64xf32>
    %cst_17 = arith.constant 0.000000e+00 : f32
    %22 = vector.broadcast %cst_17 : f32 to vector<16x64xf32>
    %23 = arith.maximumf %21, %22 : vector<16x64xf32>
    %24 = arith.truncf %23 : vector<16x64xf32> to vector<16x64xbf16>
    %c0_18 = arith.constant 0 : index
    %c0_19 = arith.constant 0 : index
    %25 = vector.load %arg8[%c0_18, %c0_19] : memref<64x128xbf16, #tpu.memory_space<vmem>>, vector<64x128xbf16>
    %cst_20 = arith.constant dense<0.000000e+00> : vector<16x128xf32>
    %26 = tpu.matmul %24, %25, %cst_20 {dimension_numbers = #tpu.dot_dimension_numbers<[1], [0], [0], [1], [0, 0, 1, 1], [], []>} : vector<16x64xbf16>, vector<64x128xbf16>, vector<16x128xf32> -> vector<16x128xf32>
    %c0_21 = arith.constant 0 : index
    %c0_22 = arith.constant 0 : index
    %27 = vector.load %arg9[%c0_21, %c0_22] : memref<1x128xf32, #tpu.memory_space<vmem>>, vector<1x128xf32>
    %28 = vector.broadcast %27 : vector<1x128xf32> to vector<16x128xf32>
    %29 = arith.addf %26, %28 : vector<16x128xf32>
    %c0_23 = arith.constant 0 : index
    %c0_24 = arith.constant 0 : index
    %30 = vector.load %arg10[%c0_23, %c0_24] : memref<16x128xf32, #tpu.memory_space<vmem>>, vector<16x128xf32>
    tpu.vector_store %arg10[%c0_23, %c0_24], %29 {strides = array<i32>} : memref<16x128xf32, #tpu.memory_space<vmem>>, vector<16x128xf32>,
    return
  }
  func.func @transform_0(%arg0: i32) -> (i32, i32) {
    %c0_i32 = arith.constant 0 : i32
    %c0_i32_0 = arith.constant 0 : i32
    return %arg0, %c0_i32 : i32, i32
  }
  func.func @transform_1(%arg0: i32) -> (i32, i32) {
    %c0_i32 = arith.constant 0 : i32
    %c0_i32_0 = arith.constant 0 : i32
    %c0_i32_1 = arith.constant 0 : i32
    return %c0_i32, %c0_i32_0 : i32, i32
  }
  func.func @transform_2(%arg0: i32) -> (i32, i32) {
    %c0_i32 = arith.constant 0 : i32
    %c0_i32_0 = arith.constant 0 : i32
    %c0_i32_1 = arith.constant 0 : i32
    return %c0_i32, %c0_i32_0 : i32, i32
  }
  func.func @transform_3(%arg0: i32) -> (i32, i32) {
    %c0_i32 = arith.constant 0 : i32
    %c0_i32_0 = arith.constant 0 : i32
    %c0_i32_1 = arith.constant 0 : i32
    return %c0_i32, %c0_i32_0 : i32, i32
  }
  func.func @transform_4(%arg0: i32) -> (i32, i32) {
    %c0_i32 = arith.constant 0 : i32
    %c0_i32_0 = arith.constant 0 : i32
    %c0_i32_1 = arith.constant 0 : i32
    return %c0_i32, %c0_i32_0 : i32, i32
  }
  func.func @transform_5(%arg0: i32) -> (i32, i32) {
    %c0_i32 = arith.constant 0 : i32
    %c0_i32_0 = arith.constant 0 : i32
    %c0_i32_1 = arith.constant 0 : i32
    return %c0_i32, %c0_i32_0 : i32, i32
  }
  func.func @transform_6(%arg0: i32) -> (i32, i32) {
    %c0_i32 = arith.constant 0 : i32
    %c0_i32_0 = arith.constant 0 : i32
    %c0_i32_1 = arith.constant 0 : i32
    return %c0_i32, %c0_i32_0 : i32, i32
  }
  func.func @transform_7(%arg0: i32) -> (i32, i32) {
    %c0_i32 = arith.constant 0 : i32
    %c0_i32_0 = arith.constant 0 : i32
    %c0_i32_1 = arith.constant 0 : i32
    return %c0_i32, %c0_i32_0 : i32, i32
  }
  func.func @transform_8(%arg0: i32) -> (i32, i32) {
    %c0_i32 = arith.constant 0 : i32
    %c0_i32_0 = arith.constant 0 : i32
    %c0_i32_1 = arith.constant 0 : i32
    return %c0_i32, %c0_i32_0 : i32, i32
  }
  func.func @transform_9(%arg0: i32) -> (i32, i32) {
    %c0_i32 = arith.constant 0 : i32
    %c0_i32_0 = arith.constant 0 : i32
    return %arg0, %c0_i32 : i32, i32
  }
}

</mosaic_0001>

<llo_original>
// kernel: tpu_custom_call.1
$region0: #{tpu_custom_call.1}
  #allocation0 [shape = 'u32[]', space=smem, size = 0x4, offset = 0x4, fixed_abs, tag = 'smem constant byte address 0x4 - core index']
  #allocation1 [shape = 'u32[72,128]{1,0:T(1,128)}', space=vmem, size = 0x9000, scoped, tag = 'internal scratch']
  %s0 = inlined_call_operand.hbm [shape: bf16[32,1024], index: 0, kind: input, shape index: {}]
  %s1 = inlined_call_operand.hbm [shape: bf16[1024,256], index: 1, kind: input, shape index: {}]
  %s2 = inlined_call_operand.vmem [shape: f32[1,256], index: 2, kind: input, shape index: {}]
  %s3 = inlined_call_operand.hbm [shape: bf16[256,128], index: 3, kind: input, shape index: {}]
  %s4 = inlined_call_operand.vmem [shape: f32[1,128], index: 4, kind: input, shape index: {}]
  %s5 = inlined_call_operand.vmem [shape: bf16[128,64], index: 5, kind: input, shape index: {}]
  %s6 = inlined_call_operand.vmem [shape: f32[1,64], index: 6, kind: input, shape index: {}]
  %s7 = inlined_call_operand.vmem [shape: bf16[64,128], index: 7, kind: input, shape index: {}]
  %s8 = inlined_call_operand.vmem [shape: f32[1,128], index: 8, kind: input, shape index: {}]
  %s9 = inlined_call_operand.hbm [shape: f32[32,128], index: 9, kind: output, shape index: {}]
  %s10 = sld [smem:[#allocation0]]
  $region81: #{tpu_custom_call.1} parent=0
    _
  %s12 = ssub.s32 1, %s10
  %s13 = scalar_select 0, %s12, %s10
  $region1: #{tpu_custom_call.1} parent=0
    #allocation2 [shape = 'u8[65536]{0}', space=vmem, size = 0x10000, scoped, tag = 'input window, operand 0']
    #allocation3 [shape = 's32[2]{0}', space=sflag, size = 0x8, scoped, tag = 'scoped memory for tpu_custom_call.1']
    #allocation4 [shape = 's32[2]{0}', space=sflag, size = 0x8, scoped, tag = 'scoped memory for tpu_custom_call.1']
    #allocation5 [shape = 'u8[524288]{0}', space=vmem, size = 0x80000, scoped, tag = 'input window, operand 1, single buffered']
    #allocation6 [shape = 's32[1]{0}', space=sflag, size = 0x4, scoped, tag = 'scoped memory for tpu_custom_call.1']
    #allocation7 [shape = 'u8[65536]{0}', space=vmem, size = 0x10000, scoped, tag = 'input window, operand 3, single buffered']
    #allocation8 [shape = 'u8[16384]{0}', space=vmem, size = 0x4000, scoped, tag = 'output window, operand 0']
    %14 = vsyncpa [#allocation3], 0
    %s15 = scalar_lea.sflag [#allocation3], 1
    %16 = vsyncpa %s15, 0
    %17 = vsyncpa [#allocation6], 0
    %18 = vsyncpa [#allocation4], 0
    %s19 = scalar_lea.sflag [#allocation4], 1
    %20 = vsyncpa %s19, 0
    loop: start=0, step=1, limit=4
    $region2: #{tpu_custom_call.1} parent=1 // loop_pre_header
      _
    $region3: #{tpu_custom_call.1} parent=1 // loop_header
      %s22 = sphi 0, %s26
      %p23 = scmp.ge.s32.totalorder %s22, 4
      %s32 = sphi 0, %s34
      %s35 = sphi 0, %s32
      %s36 = sphi 0, %s35
      %s52 = sphi 0, %s36
      %s56 = sphi 0, %s56
      %s58 = sphi 0, %s56
      %s59 = sphi 0, %s58
      %s73 = sphi 0, %s59
      %s77 = sphi 0, %s77
      %s79 = sphi 0, %s77
      %s80 = sphi 0, %s79
      %s94 = sphi 0, %s80
      %s98 = sphi 0, %s98
      %s100 = sphi 0, %s98
      %s101 = sphi 0, %s100
      %s115 = sphi 0, %s101
      %s119 = sphi 0, %s119
      %s121 = sphi 0, %s119
      %s122 = sphi 0, %s121
      %s136 = sphi 0, %s122
      %s140 = sphi 0, %s140
      %s142 = sphi 0, %s140
      %s143 = sphi 0, %s142
      %s157 = sphi 0, %s143
      %s161 = sphi 0, %s161
      %s163 = sphi 0, %s161
      %s164 = sphi 0, %s163
      %s178 = sphi 0, %s164
      %s182 = sphi 0, %s182
      %s184 = sphi 0, %s182
      %s185 = sphi 0, %s184
      %s199 = sphi 0, %s185
      %s203 = sphi 0, %s203
      %s205 = sphi 0, %s203
      %s206 = sphi 0, %s205
      %s220 = sphi 0, %s206
      %s226 = sphi 0, %s228
      %s229 = sphi 0, %s226
      %s230 = sphi 0, %s229
      %s246 = sphi 0, %s230
    $region4: #{tpu_custom_call.1} parent=1 // loop_header_branch
      %25 = sbr.rel (%p23) target = $region8
    $region5: #{tpu_custom_call.1} parent=1 // loop_body
      %s27 = ssub.s32 %s22, 1
      %s28 = ssub.s32 %s22, 2
      %s29 = sadd.s32 %s22, 1
      %s30 = ssub.s32 %s22, %s29
      %p31 = scmp.eq.s32.totalorder %s30, 0
      %s33 = sadd.s32 %s32, 1
      %s34 = scalar_select %p31, %s32, %s33
      %p37 = pneg %p31
      %p38 = scmp.eq.s32.totalorder %s22, 1
      %p39 = por %p37, %p38
      %p40 = scmp.ne.s32.totalorder %s32, %s35
      %p41 = scmp.eq.s32.totalorder %s22, 0
      %p42 = por %p40, %p41
      %p43 = scmp.ne.s32.totalorder %s32, %s35
      %p44 = scmp.eq.s32.totalorder %s27, 1
      %p45 = por %p43, %p44
      %p46 = scmp.ne.s32.totalorder %s35, %s36
      %p47 = scmp.eq.s32.totalorder %s27, 0
      %p48 = por %p46, %p47
      %p49 = scmp.ne.s32.totalorder %s35, %s36
      %p50 = scmp.eq.s32.totalorder %s28, 1
      %p51 = por %p49, %p50
      %p53 = scmp.ne.s32.totalorder %s36, %s52
      %p54 = scmp.eq.s32.totalorder %s28, 0
      %p55 = por %p53, %p54
      %s57 = sadd.s32 %s56, 1
      %p60 = scmp.eq.s32.totalorder %s22, 1
      %p61 = scmp.ne.s32.totalorder %s56, %s58
      %p62 = scmp.eq.s32.totalorder %s22, 0
      %p63 = por %p61, %p62
      %p64 = scmp.ne.s32.totalorder %s56, %s58
      %p65 = scmp.eq.s32.totalorder %s27, 1
      %p66 = por %p64, %p65
      %p67 = scmp.ne.s32.totalorder %s58, %s59
      %p68 = scmp.eq.s32.totalorder %s27, 0
      %p69 = por %p67, %p68
      %p70 = scmp.ne.s32.totalorder %s58, %s59
      %p71 = scmp.eq.s32.totalorder %s28, 1
      %p72 = por %p70, %p71
      %p74 = scmp.ne.s32.totalorder %s59, %s73
      %p75 = scmp.eq.s32.totalorder %s28, 0
      %p76 = por %p74, %p75
      %s78 = sadd.s32 %s77, 1
      %p81 = scmp.eq.s32.totalorder %s22, 1
      %p82 = scmp.ne.s32.totalorder %s77, %s79
      %p83 = scmp.eq.s32.totalorder %s22, 0
      %p84 = por %p82, %p83
      %p85 = scmp.ne.s32.totalorder %s77, %s79
      %p86 = scmp.eq.s32.totalorder %s27, 1
      %p87 = por %p85, %p86
      %p88 = scmp.ne.s32.totalorder %s79, %s80
      %p89 = scmp.eq.s32.totalorder %s27, 0
      %p90 = por %p88, %p89
      %p91 = scmp.ne.s32.totalorder %s79, %s80
      %p92 = scmp.eq.s32.totalorder %s28, 1
      %p93 = por %p91, %p92
      %p95 = scmp.ne.s32.totalorder %s80, %s94
      %p96 = scmp.eq.s32.totalorder %s28, 0
      %p97 = por %p95, %p96
      %s99 = sadd.s32 %s98, 1
      %p102 = scmp.eq.s32.totalorder %s22, 1
      %p103 = scmp.ne.s32.totalorder %s98, %s100
      %p104 = scmp.eq.s32.totalorder %s22, 0
      %p105 = por %p103, %p104
      %p106 = scmp.ne.s32.totalorder %s98, %s100
      %p107 = scmp.eq.s32.totalorder %s27, 1
      %p108 = por %p106, %p107
      %p109 = scmp.ne.s32.totalorder %s100, %s101
      %p110 = scmp.eq.s32.totalorder %s27, 0
      %p111 = por %p109, %p110
      %p112 = scmp.ne.s32.totalorder %s100, %s101
      %p113 = scmp.eq.s32.totalorder %s28, 1
      %p114 = por %p112, %p113
      %p116 = scmp.ne.s32.totalorder %s101, %s115
      %p117 = scmp.eq.s32.totalorder %s28, 0
      %p118 = por %p116, %p117
      %s120 = sadd.s32 %s119, 1
      %p123 = scmp.eq.s32.totalorder %s22, 1
      %p124 = scmp.ne.s32.totalorder %s119, %s121
      %p125 = scmp.eq.s32.totalorder %s22, 0
      %p126 = por %p124, %p125
      %p127 = scmp.ne.s32.totalorder %s119, %s121
      %p128 = scmp.eq.s32.totalorder %s27, 1
      %p129 = por %p127, %p128
      %p130 = scmp.ne.s32.totalorder %s121, %s122
      %p131 = scmp.eq.s32.totalorder %s27, 0
      %p132 = por %p130, %p131
      %p133 = scmp.ne.s32.totalorder %s121, %s122
      %p134 = scmp.eq.s32.totalorder %s28, 1
      %p135 = por %p133, %p134
      %p137 = scmp.ne.s32.totalorder %s122, %s136
      %p138 = scmp.eq.s32.totalorder %s28, 0
      %p139 = por %p137, %p138
      %s141 = sadd.s32 %s140, 1
      %p144 = scmp.eq.s32.totalorder %s22, 1
      %p145 = scmp.ne.s32.totalorder %s140, %s142
      %p146 = scmp.eq.s32.totalorder %s22, 0
      %p147 = por %p145, %p146
      %p148 = scmp.ne.s32.totalorder %s140, %s142
      %p149 = scmp.eq.s32.totalorder %s27, 1
      %p150 = por %p148, %p149
      %p151 = scmp.ne.s32.totalorder %s142, %s143
      %p152 = scmp.eq.s32.totalorder %s27, 0
      %p153 = por %p151, %p152
      %p154 = scmp.ne.s32.totalorder %s142, %s143
      %p155 = scmp.eq.s32.totalorder %s28, 1
      %p156 = por %p154, %p155
      %p158 = scmp.ne.s32.totalorder %s143, %s157
      %p159 = scmp.eq.s32.totalorder %s28, 0
      %p160 = por %p158, %p159
      %s162 = sadd.s32 %s161, 1
      %p165 = scmp.eq.s32.totalorder %s22, 1
      %p166 = scmp.ne.s32.totalorder %s161, %s163
      %p167 = scmp.eq.s32.totalorder %s22, 0
      %p168 = por %p166, %p167
      %p169 = scmp.ne.s32.totalorder %s161, %s163
      %p170 = scmp.eq.s32.totalorder %s27, 1
      %p171 = por %p169, %p170
      %p172 = scmp.ne.s32.totalorder %s163, %s164
      %p173 = scmp.eq.s32.totalorder %s27, 0
      %p174 = por %p172, %p173
      %p175 = scmp.ne.s32.totalorder %s163, %s164
      %p176 = scmp.eq.s32.totalorder %s28, 1
      %p177 = por %p175, %p176
      %p179 = scmp.ne.s32.totalorder %s164, %s178
      %p180 = scmp.eq.s32.totalorder %s28, 0
      %p181 = por %p179, %p180
      %s183 = sadd.s32 %s182, 1
      %p186 = scmp.eq.s32.totalorder %s22, 1
      %p187 = scmp.ne.s32.totalorder %s182, %s184
      %p188 = scmp.eq.s32.totalorder %s22, 0
      %p189 = por %p187, %p188
      %p190 = scmp.ne.s32.totalorder %s182, %s184
      %p191 = scmp.eq.s32.totalorder %s27, 1
      %p192 = por %p190, %p191
      %p193 = scmp.ne.s32.totalorder %s184, %s185
      %p194 = scmp.eq.s32.totalorder %s27, 0
      %p195 = por %p193, %p194
      %p196 = scmp.ne.s32.totalorder %s184, %s185
      %p197 = scmp.eq.s32.totalorder %s28, 1
      %p198 = por %p196, %p197
      %p200 = scmp.ne.s32.totalorder %s185, %s199
      %p201 = scmp.eq.s32.totalorder %s28, 0
      %p202 = por %p200, %p201
      %s204 = sadd.s32 %s203, 1
      %p207 = scmp.eq.s32.totalorder %s22, 1
      %p208 = scmp.ne.s32.totalorder %s203, %s205
      %p209 = scmp.eq.s32.totalorder %s22, 0
      %p210 = por %p208, %p209
      %p211 = scmp.ne.s32.totalorder %s203, %s205
      %p212 = scmp.eq.s32.totalorder %s27, 1
      %p213 = por %p211, %p212
      %p214 = scmp.ne.s32.totalorder %s205, %s206
      %p215 = scmp.eq.s32.totalorder %s27, 0
      %p216 = por %p214, %p215
      %p217 = scmp.ne.s32.totalorder %s205, %s206
      %p218 = scmp.eq.s32.totalorder %s28, 1
      %p219 = por %p217, %p218
      %p221 = scmp.ne.s32.totalorder %s206, %s220
      %p222 = scmp.eq.s32.totalorder %s28, 0
      %p223 = por %p221, %p222
      %s224 = ssub.s32 %s22, %s29
      %p225 = scmp.eq.s32.totalorder %s224, 0
      %s227 = sadd.s32 %s226, 1
      %s228 = scalar_select %p225, %s226, %s227
      %p231 = pneg %p225
      %p232 = scmp.eq.s32.totalorder %s22, 1
      %p233 = por %p231, %p232
      %p234 = scmp.ne.s32.totalorder %s226, %s229
      %p235 = scmp.eq.s32.totalorder %s22, 0
      %p236 = por %p234, %p235
      %p237 = scmp.ne.s32.totalorder %s226, %s229
      %p238 = scmp.eq.s32.totalorder %s27, 1
      %p239 = por %p237, %p238
      %p240 = scmp.ne.s32.totalorder %s229, %s230
      %p241 = scmp.eq.s32.totalorder %s27, 0
      %p242 = por %p240, %p241
      %p243 = scmp.ne.s32.totalorder %s229, %s230
      %p244 = scmp.eq.s32.totalorder %s28, 1
      %p245 = por %p243, %p244
      %p247 = scmp.ne.s32.totalorder %s230, %s246
      %p248 = scmp.eq.s32.totalorder %s28, 0
      %p249 = por %p247, %p248
      %p250 = scmp.le.s32.totalorder 1, %s22
      %p251 = scmp.lt.s32.totalorder %s22, 3
      %p252 = pnand %p250, %p251
      %p253 = pneg %p252
      // Predicated region
      $region9: #{tpu_custom_call.1} parent=5 // pred_check
        _
      $region10: #{tpu_custom_call.1} parent=5 // pred_check_branch
        %255 = sbr.rel (%p252) target = $region12
      $region11: #{tpu_custom_call.1} parent=5 // pred_region
        %s256 = ssub.s32 %s22, 1
        // Predicated region
        $region13: #{tpu_custom_call.1} parent=11 // pred_check
          %p257 = pneg %p69
        $region14: #{tpu_custom_call.1} parent=11 // pred_check_branch
          %259 = sbr.rel (%p257) target = $region16
        $region15: #{tpu_custom_call.1} parent=11 // pred_region
          %261 = vsyncadd [#allocation6], 0
          %s262 = sshll.u32 %s1, 4
          %s263 = int_to_ptr.hbm [resolvable:$true] %s262
          %s264 = sshll.u32 [#allocation5], 4
          %s265 = int_to_ptr.vmem [resolvable:$true] %s264
          %270 = dma.hbm_to_vmem [thread:$0]  %s263, 16384, %s265, [#allocation6], 128, 128, 8
        $region16: #{tpu_custom_call.1} parent=11 // pred_fallthru
          _
        // Predicated region
        $region17: #{tpu_custom_call.1} parent=11 // pred_check
          %p271 = pneg %p90
        $region18: #{tpu_custom_call.1} parent=11 // pred_check_branch
          %273 = sbr.rel (%p271) target = $region20
        $region19: #{tpu_custom_call.1} parent=11 // pred_region
          _
        $region20: #{tpu_custom_call.1} parent=11 // pred_fallthru
          _
        // Predicated region
        $region21: #{tpu_custom_call.1} parent=11 // pred_check
          %p274 = pneg %p111
        $region22: #{tpu_custom_call.1} parent=11 // pred_check_branch
          %276 = sbr.rel (%p274) target = $region24
        $region23: #{tpu_custom_call.1} parent=11 // pred_region
          %278 = vsyncadd [#allocation6], 0
          %s279 = sshll.u32 %s3, 4
          %s280 = int_to_ptr.hbm [resolvable:$true] %s279
          %s281 = sshll.u32 [#allocation7], 4
          %s282 = int_to_ptr.vmem [resolvable:$true] %s281
          %287 = dma.hbm_to_vmem [thread:$0]  %s280, 2048, %s282, [#allocation6], 64, 64, 4
        $region24: #{tpu_custom_call.1} parent=11 // pred_fallthru
          _
        // Predicated region
        $region25: #{tpu_custom_call.1} parent=11 // pred_check
          %p288 = pneg %p132
        $region26: #{tpu_custom_call.1} parent=11 // pred_check_branch
          %290 = sbr.rel (%p288) target = $region28
        $region27: #{tpu_custom_call.1} parent=11 // pred_region
          _
        $region28: #{tpu_custom_call.1} parent=11 // pred_fallthru
          _
        // Predicated region
        $region29: #{tpu_custom_call.1} parent=11 // pred_check
          %p291 = pneg %p153
        $region30: #{tpu_custom_call.1} parent=11 // pred_check_branch
          %293 = sbr.rel (%p291) target = $region32
        $region31: #{tpu_custom_call.1} parent=11 // pred_region
          _
        $region32: #{tpu_custom_call.1} parent=11 // pred_fallthru
          _
        // Predicated region
        $region33: #{tpu_custom_call.1} parent=11 // pred_check
          %p294 = pneg %p174
        $region34: #{tpu_custom_call.1} parent=11 // pred_check_branch
          %296 = sbr.rel (%p294) target = $region36
        $region35: #{tpu_custom_call.1} parent=11 // pred_region
          _
        $region36: #{tpu_custom_call.1} parent=11 // pred_fallthru
          _
        // Predicated region
        $region37: #{tpu_custom_call.1} parent=11 // pred_check
          %p297 = pneg %p195
        $region38: #{tpu_custom_call.1} parent=11 // pred_check_branch
          %299 = sbr.rel (%p297) target = $region40
        $region39: #{tpu_custom_call.1} parent=11 // pred_region
          _
        $region40: #{tpu_custom_call.1} parent=11 // pred_fallthru
          _
        // Predicated region
        $region41: #{tpu_custom_call.1} parent=11 // pred_check
          %p300 = pneg %p216
        $region42: #{tpu_custom_call.1} parent=11 // pred_check_branch
          %302 = sbr.rel (%p300) target = $region44
        $region43: #{tpu_custom_call.1} parent=11 // pred_region
          _
        $region44: #{tpu_custom_call.1} parent=11 // pred_fallthru
          _
      $region12: #{tpu_custom_call.1} parent=5 // pred_fallthru
        _
      %p303 = scmp.lt.s32.totalorder %s22, 2
      // Predicated region
      $region45: #{tpu_custom_call.1} parent=5 // pred_check
        %p304 = pneg %p303
      $region46: #{tpu_custom_call.1} parent=5 // pred_check_branch
        %306 = sbr.rel (%p304) target = $region48
      $region47: #{tpu_custom_call.1} parent=5 // pred_region
        // Predicated region
        $region49: #{tpu_custom_call.1} parent=47 // pred_check
          %p307 = pneg %p42
        $region50: #{tpu_custom_call.1} parent=47 // pred_check_branch
          %309 = sbr.rel (%p307) target = $region52
        $region51: #{tpu_custom_call.1} parent=47 // pred_region
          %s310 = sand.u32 %s32, 1
          %s311 = scalar_lea.sflag [#allocation3], %s310
          %s312 = sand.u32 %s32, 1
          %s313 = smul.addr %s312, 64
          %s314 = scalar_lea.vmem [#allocation2], %s313
          %s315 = smul.u32 2, %s22
          %317 = vsyncadd %s311, 0
          %s318 = smul.addr %s315, 8
          %s319 = smul.addr %s318, 4
          %s320 = scalar_lea.hbm %s0, %s319
          %s321 = sshll.u32 %s320, 4
          %s322 = int_to_ptr.hbm [resolvable:$true] %s321
          %s323 = sshll.u32 %s314, 4
          %s324 = int_to_ptr.vmem [resolvable:$true] %s323
          %329 = dma.hbm_to_vmem [thread:$0]  %s322, 1024, %s324, %s311, 512, 512, 32
        $region52: #{tpu_custom_call.1} parent=47 // pred_fallthru
          _
      $region48: #{tpu_custom_call.1} parent=5 // pred_fallthru
        _
      %p330 = scmp.le.s32.totalorder 1, %s22
      %p331 = scmp.lt.s32.totalorder %s22, 3
      %p332 = pnand %p330, %p331
      %p333 = pneg %p332
      // Predicated region
      $region53: #{tpu_custom_call.1} parent=5 // pred_check
        _
      $region54: #{tpu_custom_call.1} parent=5 // pred_check_branch
        %335 = sbr.rel (%p332) target = $region56
      $region55: #{tpu_custom_call.1} parent=5 // pred_region
        %s336 = ssub.s32 %s22, 1
        %s337 = sand.u32 %s35, 1
        %s338 = scalar_lea.sflag [#allocation3], %s337
        %s339 = sand.u32 %s35, 1
        %s340 = smul.addr %s339, 64
        %s341 = scalar_lea.vmem [#allocation2], %s340
        // Predicated region
        $region57: #{tpu_custom_call.1} parent=55 // pred_check
          %p342 = pneg %p48
        $region58: #{tpu_custom_call.1} parent=55 // pred_check_branch
          %344 = sbr.rel (%p342) target = $region60
        $region59: #{tpu_custom_call.1} parent=55 // pred_region
          %346 = dma.done %s338, 1024
        $region60: #{tpu_custom_call.1} parent=55 // pred_fallthru
          _
        // Predicated region
        $region61: #{tpu_custom_call.1} parent=55 // pred_check
          %p347 = pneg %p69
        $region62: #{tpu_custom_call.1} parent=55 // pred_check_branch
          %349 = sbr.rel (%p347) target = $region64
        $region63: #{tpu_custom_call.1} parent=55 // pred_region
          %351 = dma.done [#allocation6], 16384
        $region64: #{tpu_custom_call.1} parent=55 // pred_fallthru
          _
        // Predicated region
        $region65: #{tpu_custom_call.1} parent=55 // pred_check
          %p352 = pneg %p111
        $region66: #{tpu_custom_call.1} parent=55 // pred_check_branch
          %354 = sbr.rel (%p352) target = $region68
        $region67: #{tpu_custom_call.1} parent=55 // pred_region
          %356 = dma.done [#allocation6], 2048
        $region68: #{tpu_custom_call.1} parent=55 // pred_fallthru
          _
        %s357 = sand.u32 %s35, 1
        %s358 = scalar_lea.sflag [#allocation3], %s357
        %s359 = sand.u32 %s35, 1
        %s360 = smul.addr %s359, 64
        %s361 = scalar_lea.vmem [#allocation2], %s360
        %p362 = pneg %p48
        %p363 = pneg %p45
        %p364 = pneg %p69
        %p365 = pneg %p66
        %p366 = pneg %p90
        %p367 = pneg %p87
        %p368 = pneg %p111
        %p369 = pneg %p108
        %p370 = pneg %p132
        %p371 = pneg %p129
        %p372 = pneg %p153
        %p373 = pneg %p150
        %p374 = pneg %p174
        %p375 = pneg %p171
        %p376 = pneg %p195
        %p377 = pneg %p192
        %p378 = pneg %p216
        %p379 = pneg %p213
        %p380 = pneg %p242
        %p381 = pneg %p239
        %s382 = sand.u32 %s229, 1
        %s383 = scalar_lea.sflag [#allocation4], %s382
        %s384 = sand.u32 %s229, 1
        %s385 = smul.addr %s384, 16
        %s386 = scalar_lea.vmem [#allocation8], %s385
        %s387 = smul.u32 2, %s27
        %s388 = smul.u32 2, %s27
        %v390 = vld [vmem:[%s341] sm:$0xff]
        %v391 = vld [vmem:[%s341 + $0x8] sm:$0xff]
        %v392 = vld [vmem:[%s341 + $0x10] sm:$0xff]
        %v393 = vld [vmem:[%s341 + $0x18] sm:$0xff]
        %v394 = vld [vmem:[%s341 + $0x20] sm:$0xff]
        %v395 = vld [vmem:[%s341 + $0x28] sm:$0xff]
        %v396 = vld [vmem:[%s341 + $0x30] sm:$0xff]
        %v397 = vld [vmem:[%s341 + $0x38] sm:$0xff]
        %v398 = vld [vmem:[#allocation5] sm:$0xff]
        %v399 = vld [vmem:[#allocation5 + $0x8] sm:$0xff]
        %v400 = vld [vmem:[#allocation5 + $0x10] sm:$0xff]
        %v401 = vld [vmem:[#allocation5 + $0x18] sm:$0xff]
        %v402 = vld [vmem:[#allocation5 + $0x20] sm:$0xff]
        %v403 = vld [vmem:[#allocation5 + $0x28] sm:$0xff]
        %v404 = vld [vmem:[#allocation5 + $0x30] sm:$0xff]
        %v405 = vld [vmem:[#allocation5 + $0x38] sm:$0xff]
        %v406 = vld [vmem:[#allocation5 + $0x40] sm:$0xff]
        %v407 = vld [vmem:[#allocation5 + $0x48] sm:$0xff]
        %v408 = vld [vmem:[#allocation5 + $0x50] sm:$0xff]
        %v409 = vld [vmem:[#allocation5 + $0x58] sm:$0xff]
        %v410 = vld [vmem:[#allocation5 + $0x60] sm:$0xff]
        %v411 = vld [vmem:[#allocation5 + $0x68] sm:$0xff]
        %v412 = vld [vmem:[#allocation5 + $0x70] sm:$0xff]
        %v413 = vld [vmem:[#allocation5 + $0x78] sm:$0xff]
        %v414 = vld [vmem:[#allocation5 + $0x80] sm:$0xff]
        %v415 = vld [vmem:[#allocation5 + $0x88] sm:$0xff]
        %v416 = vld [vmem:[#allocation5 + $0x90] sm:$0xff]
        %v417 = vld [vmem:[#allocation5 + $0x98] sm:$0xff]
        %v418 = vld [vmem:[#allocation5 + $0xa0] sm:$0xff]
        %v419 = vld [vmem:[#allocation5 + $0xa8] sm:$0xff]
        %v420 = vld [vmem:[#allocation5 + $0xb0] sm:$0xff]
        %v421 = vld [vmem:[#allocation5 + $0xb8] sm:$0xff]
        %v422 = vld [vmem:[#allocation5 + $0xc0] sm:$0xff]
        %v423 = vld [vmem:[#allocation5 + $0xc8] sm:$0xff]
        %v424 = vld [vmem:[#allocation5 + $0xd0] sm:$0xff]
        %v425 = vld [vmem:[#allocation5 + $0xd8] sm:$0xff]
        %v426 = vld [vmem:[#allocation5 + $0xe0] sm:$0xff]
        %v427 = vld [vmem:[#allocation5 + $0xe8] sm:$0xff]
        %v428 = vld [vmem:[#allocation5 + $0xf0] sm:$0xff]
        %v429 = vld [vmem:[#allocation5 + $0xf8] sm:$0xff]
        %v430 = vld [vmem:[#allocation5 + $0x100] sm:$0xff]
        %v431 = vld [vmem:[#allocation5 + $0x108] sm:$0xff]
        %v432 = vld [vmem:[#allocation5 + $0x110] sm:$0xff]
        %v433 = vld [vmem:[#allocation5 + $0x118] sm:$0xff]
        %v434 = vld [vmem:[#allocation5 + $0x120] sm:$0xff]
        %v435 = vld [vmem:[#allocation5 + $0x128] sm:$0xff]
        %v436 = vld [vmem:[#allocation5 + $0x130] sm:$0xff]
        %v437 = vld [vmem:[#allocation5 + $0x138] sm:$0xff]
        %v438 = vld [vmem:[#allocation5 + $0x140] sm:$0xff]
        %v439 = vld [vmem:[#allocation5 + $0x148] sm:$0xff]
        %v440 = vld [vmem:[#allocation5 + $0x150] sm:$0xff]
        %v441 = vld [vmem:[#allocation5 + $0x158] sm:$0xff]
        %v442 = vld [vmem:[#allocation5 + $0x160] sm:$0xff]
        %v443 = vld [vmem:[#allocation5 + $0x168] sm:$0xff]
        %v444 = vld [vmem:[#allocation5 + $0x170] sm:$0xff]
        %v445 = vld [vmem:[#allocation5 + $0x178] sm:$0xff]
        %v446 = vld [vmem:[#allocation5 + $0x180] sm:$0xff]
        %v447 = vld [vmem:[#allocation5 + $0x188] sm:$0xff]
        %v448 = vld [vmem:[#allocation5 + $0x190] sm:$0xff]
        %v449 = vld [vmem:[#allocation5 + $0x198] sm:$0xff]
        %v450 = vld [vmem:[#allocation5 + $0x1a0] sm:$0xff]
        %v451 = vld [vmem:[#allocation5 + $0x1a8] sm:$0xff]
        %v452 = vld [vmem:[#allocation5 + $0x1b0] sm:$0xff]
        %v453 = vld [vmem:[#allocation5 + $0x1b8] sm:$0xff]
        %v454 = vld [vmem:[#allocation5 + $0x1c0] sm:$0xff]
        %v455 = vld [vmem:[#allocation5 + $0x1c8] sm:$0xff]
        %v456 = vld [vmem:[#allocation5 + $0x1d0] sm:$0xff]
        %v457 = vld [vmem:[#allocation5 + $0x1d8] sm:$0xff]
        %v458 = vld [vmem:[#allocation5 + $0x1e0] sm:$0xff]
        %v459 = vld [vmem:[#allocation5 + $0x1e8] sm:$0xff]
        %v460 = vld [vmem:[#allocation5 + $0x1f0] sm:$0xff]
        %v461 = vld [vmem:[#allocation5 + $0x1f8] sm:$0xff]
        %v462 = vld [vmem:[#allocation5 + $0x200] sm:$0xff]
        %v463 = vld [vmem:[#allocation5 + $0x208] sm:$0xff]
        %v464 = vld [vmem:[#allocation5 + $0x210] sm:$0xff]
        %v465 = vld [vmem:[#allocation5 + $0x218] sm:$0xff]
        %v466 = vld [vmem:[#allocation5 + $0x220] sm:$0xff]
        %v467 = vld [vmem:[#allocation5 + $0x228] sm:$0xff]
        %v468 = vld [vmem:[#allocation5 + $0x230] sm:$0xff]
        %v469 = vld [vmem:[#allocation5 + $0x238] sm:$0xff]
        %v470 = vld [vmem:[#allocation5 + $0x240] sm:$0xff]
        %v471 = vld [vmem:[#allocation5 + $0x248] sm:$0xff]
        %v472 = vld [vmem:[#allocation5 + $0x250] sm:$0xff]
        %v473 = vld [vmem:[#allocation5 + $0x258] sm:$0xff]
        %v474 = vld [vmem:[#allocation5 + $0x260] sm:$0xff]
        %v475 = vld [vmem:[#allocation5 + $0x268] sm:$0xff]
        %v476 = vld [vmem:[#allocation5 + $0x270] sm:$0xff]
        %v477 = vld [vmem:[#allocation5 + $0x278] sm:$0xff]
        %v478 = vld [vmem:[#allocation5 + $0x280] sm:$0xff]
        %v479 = vld [vmem:[#allocation5 + $0x288] sm:$0xff]
        %v480 = vld [vmem:[#allocation5 + $0x290] sm:$0xff]
        %v481 = vld [vmem:[#allocation5 + $0x298] sm:$0xff]
        %v482 = vld [vmem:[#allocation5 + $0x2a0] sm:$0xff]
        %v483 = vld [vmem:[#allocation5 + $0x2a8] sm:$0xff]
        %v484 = vld [vmem:[#allocation5 + $0x2b0] sm:$0xff]
        %v485 = vld [vmem:[#allocation5 + $0x2b8] sm:$0xff]
        %v486 = vld [vmem:[#allocation5 + $0x2c0] sm:$0xff]
        %v487 = vld [vmem:[#allocation5 + $0x2c8] sm:$0xff]
        %v488 = vld [vmem:[#allocation5 + $0x2d0] sm:$0xff]
        %v489 = vld [vmem:[#allocation5 + $0x2d8] sm:$0xff]
        %v490 = vld [vmem:[#allocation5 + $0x2e0] sm:$0xff]
        %v491 = vld [vmem:[#allocation5 + $0x2e8] sm:$0xff]
        %v492 = vld [vmem:[#allocation5 + $0x2f0] sm:$0xff]
        %v493 = vld [vmem:[#allocation5 + $0x2f8] sm:$0xff]
        %v494 = vld [vmem:[#allocation5 + $0x300] sm:$0xff]
        %v495 = vld [vmem:[#allocation5 + $0x308] sm:$0xff]
        %v496 = vld [vmem:[#allocation5 + $0x310] sm:$0xff]
        %v497 = vld [vmem:[#allocation5 + $0x318] sm:$0xff]
        %v498 = vld [vmem:[#allocation5 + $0x320] sm:$0xff]
        %v499 = vld [vmem:[#allocation5 + $0x328] sm:$0xff]
        %v500 = vld [vmem:[#allocation5 + $0x330] sm:$0xff]
        %v501 = vld [vmem:[#allocation5 + $0x338] sm:$0xff]
        %v502 = vld [vmem:[#allocation5 + $0x340] sm:$0xff]
        %v503 = vld [vmem:[#allocation5 + $0x348] sm:$0xff]
        %v504 = vld [vmem:[#allocation5 + $0x350] sm:$0xff]
        %v505 = vld [vmem:[#allocation5 + $0x358] sm:$0xff]
        %v506 = vld [vmem:[#allocation5 + $0x360] sm:$0xff]
        %v507 = vld [vmem:[#allocation5 + $0x368] sm:$0xff]
        %v508 = vld [vmem:[#allocation5 + $0x370] sm:$0xff]
        %v509 = vld [vmem:[#allocation5 + $0x378] sm:$0xff]
        %v510 = vld [vmem:[#allocation5 + $0x380] sm:$0xff]
        %v511 = vld [vmem:[#allocation5 + $0x388] sm:$0xff]
        %v512 = vld [vmem:[#allocation5 + $0x390] sm:$0xff]
        %v513 = vld [vmem:[#allocation5 + $0x398] sm:$0xff]
        %v514 = vld [vmem:[#allocation5 + $0x3a0] sm:$0xff]
        %v515 = vld [vmem:[#allocation5 + $0x3a8] sm:$0xff]
        %v516 = vld [vmem:[#allocation5 + $0x3b0] sm:$0xff]
        %v517 = vld [vmem:[#allocation5 + $0x3b8] sm:$0xff]
        %v518 = vld [vmem:[#allocation5 + $0x3c0] sm:$0xff]
        %v519 = vld [vmem:[#allocation5 + $0x3c8] sm:$0xff]
        %v520 = vld [vmem:[#allocation5 + $0x3d0] sm:$0xff]
        %v521 = vld [vmem:[#allocation5 + $0x3d8] sm:$0xff]
        %v522 = vld [vmem:[#allocation5 + $0x3e0] sm:$0xff]
        %v523 = vld [vmem:[#allocation5 + $0x3e8] sm:$0xff]
        %v524 = vld [vmem:[#allocation5 + $0x3f0] sm:$0xff]
        %v525 = vld [vmem:[#allocation5 + $0x3f8] sm:$0xff]
        %v526 = vld [vmem:[%s2] sm:$0x3]
        %v528 = vperm.slane %v526, 0
        %v529 = vperm.slane %v526, 1
        %v540 = vunpack.c.l.b16 %v390
        %v541 = vunpack.c.h.b16 %v390
        %v542 = vunpack.c.l.b16 %v391
        %v543 = vunpack.c.h.b16 %v391
        %v544 = vunpack.c.l.b16 %v392
        %v545 = vunpack.c.h.b16 %v392
        %v546 = vunpack.c.l.b16 %v393
        %v547 = vunpack.c.h.b16 %v393
        %v548 = vunpack.c.l.b16 %v394
        %v549 = vunpack.c.h.b16 %v394
        %v550 = vunpack.c.l.b16 %v395
        %v551 = vunpack.c.h.b16 %v395
        %v552 = vunpack.c.l.b16 %v396
        %v553 = vunpack.c.h.b16 %v396
        %v554 = vunpack.c.l.b16 %v397
        %v555 = vunpack.c.h.b16 %v397
        %v556 = vpack.c.b16 %v548, %v540
        %v557 = vpack.c.b16 %v549, %v541
        %v558 = vpack.c.b16 %v550, %v542
        %v559 = vpack.c.b16 %v551, %v543
        %v560 = vpack.c.b16 %v552, %v544
        %v561 = vpack.c.b16 %v553, %v545
        %v562 = vpack.c.b16 %v554, %v546
        %v563 = vpack.c.b16 %v555, %v547
        %v700 = vunpack.c.l.b16 %v398
        %v701 = vunpack.c.h.b16 %v398
        %v702 = vunpack.c.l.b16 %v399
        %v703 = vunpack.c.h.b16 %v399
        %v704 = vunpack.c.l.b16 %v400
        %v705 = vunpack.c.h.b16 %v400
        %v706 = vunpack.c.l.b16 %v401
        %v707 = vunpack.c.h.b16 %v401
        %v708 = vunpack.c.l.b16 %v402
        %v709 = vunpack.c.h.b16 %v402
        %v710 = vunpack.c.l.b16 %v403
        %v711 = vunpack.c.h.b16 %v403
        %v712 = vunpack.c.l.b16 %v404
        %v713 = vunpack.c.h.b16 %v404
        %v714 = vunpack.c.l.b16 %v405
        %v715 = vunpack.c.h.b16 %v405
        %v716 = vunpack.c.l.b16 %v406
        %v717 = vunpack.c.h.b16 %v406
        %v718 = vunpack.c.l.b16 %v407
        %v719 = vunpack.c.h.b16 %v407
        %v720 = vunpack.c.l.b16 %v408
        %v721 = vunpack.c.h.b16 %v408
        %v722 = vunpack.c.l.b16 %v409
        %v723 = vunpack.c.h.b16 %v409
        %v724 = vunpack.c.l.b16 %v410
        %v725 = vunpack.c.h.b16 %v410
        %v726 = vunpack.c.l.b16 %v411
        %v727 = vunpack.c.h.b16 %v411
        %v728 = vunpack.c.l.b16 %v412
        %v729 = vunpack.c.h.b16 %v412
        %v730 = vunpack.c.l.b16 %v413
        %v731 = vunpack.c.h.b16 %v413
        %v732 = vunpack.c.l.b16 %v414
        %v733 = vunpack.c.h.b16 %v414
        %v734 = vunpack.c.l.b16 %v415
        %v735 = vunpack.c.h.b16 %v415
        %v736 = vunpack.c.l.b16 %v416
        %v737 = vunpack.c.h.b16 %v416
        %v738 = vunpack.c.l.b16 %v417
        %v739 = vunpack.c.h.b16 %v417
        %v740 = vunpack.c.l.b16 %v418
        %v741 = vunpack.c.h.b16 %v418
        %v742 = vunpack.c.l.b16 %v419
        %v743 = vunpack.c.h.b16 %v419
        %v744 = vunpack.c.l.b16 %v420
        %v745 = vunpack.c.h.b16 %v420
        %v746 = vunpack.c.l.b16 %v421
        %v747 = vunpack.c.h.b16 %v421
        %v748 = vunpack.c.l.b16 %v422
        %v749 = vunpack.c.h.b16 %v422
        %v750 = vunpack.c.l.b16 %v423
        %v751 = vunpack.c.h.b16 %v423
        %v752 = vunpack.c.l.b16 %v424
        %v753 = vunpack.c.h.b16 %v424
        %v754 = vunpack.c.l.b16 %v425
        %v755 = vunpack.c.h.b16 %v425
        %v756 = vunpack.c.l.b16 %v426
        %v757 = vunpack.c.h.b16 %v426
        %v758 = vunpack.c.l.b16 %v427
        %v759 = vunpack.c.h.b16 %v427
        %v760 = vunpack.c.l.b16 %v428
        %v761 = vunpack.c.h.b16 %v428
        %v762 = vunpack.c.l.b16 %v429
        %v763 = vunpack.c.h.b16 %v429
        %v764 = vunpack.c.l.b16 %v430
        %v765 = vunpack.c.h.b16 %v430
        %v766 = vunpack.c.l.b16 %v431
        %v767 = vunpack.c.h.b16 %v431
        %v768 = vunpack.c.l.b16 %v432
        %v769 = vunpack.c.h.b16 %v432
        %v770 = vunpack.c.l.b16 %v433
        %v771 = vunpack.c.h.b16 %v433
        %v772 = vunpack.c.l.b16 %v434
        %v773 = vunpack.c.h.b16 %v434
        %v774 = vunpack.c.l.b16 %v435
        %v775 = vunpack.c.h.b16 %v435
        %v776 = vunpack.c.l.b16 %v436
        %v777 = vunpack.c.h.b16 %v436
        %v778 = vunpack.c.l.b16 %v437
        %v779 = vunpack.c.h.b16 %v437
        %v780 = vunpack.c.l.b16 %v438
        %v781 = vunpack.c.h.b16 %v438
        %v782 = vunpack.c.l.b16 %v439
        %v783 = vunpack.c.h.b16 %v439
        %v784 = vunpack.c.l.b16 %v440
        %v785 = vunpack.c.h.b16 %v440
        %v786 = vunpack.c.l.b16 %v441
        %v787 = vunpack.c.h.b16 %v441
        %v788 = vunpack.c.l.b16 %v442
        %v789 = vunpack.c.h.b16 %v442
        %v790 = vunpack.c.l.b16 %v443
        %v791 = vunpack.c.h.b16 %v443
        %v792 = vunpack.c.l.b16 %v444
        %v793 = vunpack.c.h.b16 %v444
        %v794 = vunpack.c.l.b16 %v445
        %v795 = vunpack.c.h.b16 %v445
        %v796 = vunpack.c.l.b16 %v446
        %v797 = vunpack.c.h.b16 %v446
        %v798 = vunpack.c.l.b16 %v447
        %v799 = vunpack.c.h.b16 %v447
        %v800 = vunpack.c.l.b16 %v448
        %v801 = vunpack.c.h.b16 %v448
        %v802 = vunpack.c.l.b16 %v449
        %v803 = vunpack.c.h.b16 %v449
        %v804 = vunpack.c.l.b16 %v450
        %v805 = vunpack.c.h.b16 %v450
        %v806 = vunpack.c.l.b16 %v451
        %v807 = vunpack.c.h.b16 %v451
        %v808 = vunpack.c.l.b16 %v452
        %v809 = vunpack.c.h.b16 %v452
        %v810 = vunpack.c.l.b16 %v453
        %v811 = vunpack.c.h.b16 %v453
        %v812 = vunpack.c.l.b16 %v454
        %v813 = vunpack.c.h.b16 %v454
        %v814 = vunpack.c.l.b16 %v455
        %v815 = vunpack.c.h.b16 %v455
        %v816 = vunpack.c.l.b16 %v456
        %v817 = vunpack.c.h.b16 %v456
        %v818 = vunpack.c.l.b16 %v457
        %v819 = vunpack.c.h.b16 %v457
        %v820 = vunpack.c.l.b16 %v458
        %v821 = vunpack.c.h.b16 %v458
        %v822 = vunpack.c.l.b16 %v459
        %v823 = vunpack.c.h.b16 %v459
        %v824 = vunpack.c.l.b16 %v460
        %v825 = vunpack.c.h.b16 %v460
        %v826 = vunpack.c.l.b16 %v461
        %v827 = vunpack.c.h.b16 %v461
        %v828 = vunpack.c.l.b16 %v462
        %v829 = vunpack.c.h.b16 %v462
        %v830 = vunpack.c.l.b16 %v463
        %v831 = vunpack.c.h.b16 %v463
        %v832 = vunpack.c.l.b16 %v464
        %v833 = vunpack.c.h.b16 %v464
        %v834 = vunpack.c.l.b16 %v465
        %v835 = vunpack.c.h.b16 %v465
        %v836 = vunpack.c.l.b16 %v466
        %v837 = vunpack.c.h.b16 %v466
        %v838 = vunpack.c.l.b16 %v467
        %v839 = vunpack.c.h.b16 %v467
        %v840 = vunpack.c.l.b16 %v468
        %v841 = vunpack.c.h.b16 %v468
        %v842 = vunpack.c.l.b16 %v469
        %v843 = vunpack.c.h.b16 %v469
        %v844 = vunpack.c.l.b16 %v470
        %v845 = vunpack.c.h.b16 %v470
        %v846 = vunpack.c.l.b16 %v471
        %v847 = vunpack.c.h.b16 %v471
        %v848 = vunpack.c.l.b16 %v472
        %v849 = vunpack.c.h.b16 %v472
        %v850 = vunpack.c.l.b16 %v473
        %v851 = vunpack.c.h.b16 %v473
        %v852 = vunpack.c.l.b16 %v474
        %v853 = vunpack.c.h.b16 %v474
        %v854 = vunpack.c.l.b16 %v475
        %v855 = vunpack.c.h.b16 %v475
        %v856 = vunpack.c.l.b16 %v476
        %v857 = vunpack.c.h.b16 %v476
        %v858 = vunpack.c.l.b16 %v477
        %v859 = vunpack.c.h.b16 %v477
        %v860 = vunpack.c.l.b16 %v478
        %v861 = vunpack.c.h.b16 %v478
        %v862 = vunpack.c.l.b16 %v479
        %v863 = vunpack.c.h.b16 %v479
        %v864 = vunpack.c.l.b16 %v480
        %v865 = vunpack.c.h.b16 %v480
        %v866 = vunpack.c.l.b16 %v481
        %v867 = vunpack.c.h.b16 %v481
        %v868 = vunpack.c.l.b16 %v482
        %v869 = vunpack.c.h.b16 %v482
        %v870 = vunpack.c.l.b16 %v483
        %v871 = vunpack.c.h.b16 %v483
        %v872 = vunpack.c.l.b16 %v484
        %v873 = vunpack.c.h.b16 %v484
        %v874 = vunpack.c.l.b16 %v485
        %v875 = vunpack.c.h.b16 %v485
        %v876 = vunpack.c.l.b16 %v486
        %v877 = vunpack.c.h.b16 %v486
        %v878 = vunpack.c.l.b16 %v487
        %v879 = vunpack.c.h.b16 %v487
        %v880 = vunpack.c.l.b16 %v488
        %v881 = vunpack.c.h.b16 %v488
        %v882 = vunpack.c.l.b16 %v489
        %v883 = vunpack.c.h.b16 %v489
        %v884 = vunpack.c.l.b16 %v490
        %v885 = vunpack.c.h.b16 %v490
        %v886 = vunpack.c.l.b16 %v491
        %v887 = vunpack.c.h.b16 %v491
        %v888 = vunpack.c.l.b16 %v492
        %v889 = vunpack.c.h.b16 %v492
        %v890 = vunpack.c.l.b16 %v493
        %v891 = vunpack.c.h.b16 %v493
        %v892 = vunpack.c.l.b16 %v494
        %v893 = vunpack.c.h.b16 %v494
        %v894 = vunpack.c.l.b16 %v495
        %v895 = vunpack.c.h.b16 %v495
        %v896 = vunpack.c.l.b16 %v496
        %v897 = vunpack.c.h.b16 %v496
        %v898 = vunpack.c.l.b16 %v497
        %v899 = vunpack.c.h.b16 %v497
        %v900 = vunpack.c.l.b16 %v498
        %v901 = vunpack.c.h.b16 %v498
        %v902 = vunpack.c.l.b16 %v499
        %v903 = vunpack.c.h.b16 %v499
        %v904 = vunpack.c.l.b16 %v500
        %v905 = vunpack.c.h.b16 %v500
        %v906 = vunpack.c.l.b16 %v501
        %v907 = vunpack.c.h.b16 %v501
        %v908 = vunpack.c.l.b16 %v502
        %v909 = vunpack.c.h.b16 %v502
        %v910 = vunpack.c.l.b16 %v503
        %v911 = vunpack.c.h.b16 %v503
        %v912 = vunpack.c.l.b16 %v504
        %v913 = vunpack.c.h.b16 %v504
        %v914 = vunpack.c.l.b16 %v505
        %v915 = vunpack.c.h.b16 %v505
        %v916 = vunpack.c.l.b16 %v506
        %v917 = vunpack.c.h.b16 %v506
        %v918 = vunpack.c.l.b16 %v507
        %v919 = vunpack.c.h.b16 %v507
        %v920 = vunpack.c.l.b16 %v508
        %v921 = vunpack.c.h.b16 %v508
        %v922 = vunpack.c.l.b16 %v509
        %v923 = vunpack.c.h.b16 %v509
        %v924 = vunpack.c.l.b16 %v510
        %v925 = vunpack.c.h.b16 %v510
        %v926 = vunpack.c.l.b16 %v511
        %v927 = vunpack.c.h.b16 %v511
        %v928 = vunpack.c.l.b16 %v512
        %v929 = vunpack.c.h.b16 %v512
        %v930 = vunpack.c.l.b16 %v513
        %v931 = vunpack.c.h.b16 %v513
        %v932 = vunpack.c.l.b16 %v514
        %v933 = vunpack.c.h.b16 %v514
        %v934 = vunpack.c.l.b16 %v515
        %v935 = vunpack.c.h.b16 %v515
        %v936 = vunpack.c.l.b16 %v516
        %v937 = vunpack.c.h.b16 %v516
        %v938 = vunpack.c.l.b16 %v517
        %v939 = vunpack.c.h.b16 %v517
        %v940 = vunpack.c.l.b16 %v518
        %v941 = vunpack.c.h.b16 %v518
        %v942 = vunpack.c.l.b16 %v519
        %v943 = vunpack.c.h.b16 %v519
        %v944 = vunpack.c.l.b16 %v520
        %v945 = vunpack.c.h.b16 %v520
        %v946 = vunpack.c.l.b16 %v521
        %v947 = vunpack.c.h.b16 %v521
        %v948 = vunpack.c.l.b16 %v522
        %v949 = vunpack.c.h.b16 %v522
        %v950 = vunpack.c.l.b16 %v523
        %v951 = vunpack.c.h.b16 %v523
        %v952 = vunpack.c.l.b16 %v524
        %v953 = vunpack.c.h.b16 %v524
        %v954 = vunpack.c.l.b16 %v525
        %v955 = vunpack.c.h.b16 %v525
        %v956 = vpack.c.b16 %v702, %v700
        %v957 = vpack.c.b16 %v703, %v701
        %v958 = vpack.c.b16 %v706, %v704
        %v959 = vpack.c.b16 %v707, %v705
        %v960 = vpack.c.b16 %v710, %v708
        %v961 = vpack.c.b16 %v711, %v709
        %v962 = vpack.c.b16 %v714, %v712
        %v963 = vpack.c.b16 %v715, %v713
        %v964 = vpack.c.b16 %v718, %v716
        %v965 = vpack.c.b16 %v719, %v717
        %v966 = vpack.c.b16 %v722, %v720
        %v967 = vpack.c.b16 %v723, %v721
        %v968 = vpack.c.b16 %v726, %v724
        %v969 = vpack.c.b16 %v727, %v725
        %v970 = vpack.c.b16 %v730, %v728
        %v971 = vpack.c.b16 %v731, %v729
        %v972 = vpack.c.b16 %v734, %v732
        %v973 = vpack.c.b16 %v735, %v733
        %v974 = vpack.c.b16 %v738, %v736
        %v975 = vpack.c.b16 %v739, %v737
        %v976 = vpack.c.b16 %v742, %v740
        %v977 = vpack.c.b16 %v743, %v741
        %v978 = vpack.c.b16 %v746, %v744
        %v979 = vpack.c.b16 %v747, %v745
        %v980 = vpack.c.b16 %v750, %v748
        %v981 = vpack.c.b16 %v751, %v749
        %v982 = vpack.c.b16 %v754, %v752
        %v983 = vpack.c.b16 %v755, %v753
        %v984 = vpack.c.b16 %v758, %v756
        %v985 = vpack.c.b16 %v759, %v757
        %v986 = vpack.c.b16 %v762, %v760
        %v987 = vpack.c.b16 %v763, %v761
        %v988 = vpack.c.b16 %v766, %v764
        %v989 = vpack.c.b16 %v767, %v765
        %v990 = vpack.c.b16 %v770, %v768
        %v991 = vpack.c.b16 %v771, %v769
        %v992 = vpack.c.b16 %v774, %v772
        %v993 = vpack.c.b16 %v775, %v773
        %v994 = vpack.c.b16 %v778, %v776
        %v995 = vpack.c.b16 %v779, %v777
        %v996 = vpack.c.b16 %v782, %v780
        %v997 = vpack.c.b16 %v783, %v781
        %v998 = vpack.c.b16 %v786, %v784
        %v999 = vpack.c.b16 %v787, %v785
        %v1000 = vpack.c.b16 %v790, %v788
        %v1001 = vpack.c.b16 %v791, %v789
        %v1002 = vpack.c.b16 %v794, %v792
        %v1003 = vpack.c.b16 %v795, %v793
        %v1004 = vpack.c.b16 %v798, %v796
        %v1005 = vpack.c.b16 %v799, %v797
        %v1006 = vpack.c.b16 %v802, %v800
        %v1007 = vpack.c.b16 %v803, %v801
        %v1008 = vpack.c.b16 %v806, %v804
        %v1009 = vpack.c.b16 %v807, %v805
        %v1010 = vpack.c.b16 %v810, %v808
        %v1011 = vpack.c.b16 %v811, %v809
        %v1012 = vpack.c.b16 %v814, %v812
        %v1013 = vpack.c.b16 %v815, %v813
        %v1014 = vpack.c.b16 %v818, %v816
        %v1015 = vpack.c.b16 %v819, %v817
        %v1016 = vpack.c.b16 %v822, %v820
        %v1017 = vpack.c.b16 %v823, %v821
        %v1018 = vpack.c.b16 %v826, %v824
        %v1019 = vpack.c.b16 %v827, %v825
        %v1020 = vpack.c.b16 %v830, %v828
        %v1021 = vpack.c.b16 %v831, %v829
        %v1022 = vpack.c.b16 %v834, %v832
        %v1023 = vpack.c.b16 %v835, %v833
        %v1024 = vpack.c.b16 %v838, %v836
        %v1025 = vpack.c.b16 %v839, %v837
        %v1026 = vpack.c.b16 %v842, %v840
        %v1027 = vpack.c.b16 %v843, %v841
        %v1028 = vpack.c.b16 %v846, %v844
        %v1029 = vpack.c.b16 %v847, %v845
        %v1030 = vpack.c.b16 %v850, %v848
        %v1031 = vpack.c.b16 %v851, %v849
        %v1032 = vpack.c.b16 %v854, %v852
        %v1033 = vpack.c.b16 %v855, %v853
        %v1034 = vpack.c.b16 %v858, %v856
        %v1035 = vpack.c.b16 %v859, %v857
        %v1036 = vpack.c.b16 %v862, %v860
        %v1037 = vpack.c.b16 %v863, %v861
        %v1038 = vpack.c.b16 %v866, %v864
        %v1039 = vpack.c.b16 %v867, %v865
        %v1040 = vpack.c.b16 %v870, %v868
        %v1041 = vpack.c.b16 %v871, %v869
        %v1042 = vpack.c.b16 %v874, %v872
        %v1043 = vpack.c.b16 %v875, %v873
        %v1044 = vpack.c.b16 %v878, %v876
        %v1045 = vpack.c.b16 %v879, %v877
        %v1046 = vpack.c.b16 %v882, %v880
        %v1047 = vpack.c.b16 %v883, %v881
        %v1048 = vpack.c.b16 %v886, %v884
        %v1049 = vpack.c.b16 %v887, %v885
        %v1050 = vpack.c.b16 %v890, %v888
        %v1051 = vpack.c.b16 %v891, %v889
        %v1052 = vpack.c.b16 %v894, %v892
        %v1053 = vpack.c.b16 %v895, %v893
        %v1054 = vpack.c.b16 %v898, %v896
        %v1055 = vpack.c.b16 %v899, %v897
        %v1056 = vpack.c.b16 %v902, %v900
        %v1057 = vpack.c.b16 %v903, %v901
        %v1058 = vpack.c.b16 %v906, %v904
        %v1059 = vpack.c.b16 %v907, %v905
        %v1060 = vpack.c.b16 %v910, %v908
        %v1061 = vpack.c.b16 %v911, %v909
        %v1062 = vpack.c.b16 %v914, %v912
        %v1063 = vpack.c.b16 %v915, %v913
        %v1064 = vpack.c.b16 %v918, %v916
        %v1065 = vpack.c.b16 %v919, %v917
        %v1066 = vpack.c.b16 %v922, %v920
        %v1067 = vpack.c.b16 %v923, %v921
        %v1068 = vpack.c.b16 %v926, %v924
        %v1069 = vpack.c.b16 %v927, %v925
        %v1070 = vpack.c.b16 %v930, %v928
        %v1071 = vpack.c.b16 %v931, %v929
        %v1072 = vpack.c.b16 %v934, %v932
        %v1073 = vpack.c.b16 %v935, %v933
        %v1074 = vpack.c.b16 %v938, %v936
        %v1075 = vpack.c.b16 %v939, %v937
        %v1076 = vpack.c.b16 %v942, %v940
        %v1077 = vpack.c.b16 %v943, %v941
        %v1078 = vpack.c.b16 %v946, %v944
        %v1079 = vpack.c.b16 %v947, %v945
        %v1080 = vpack.c.b16 %v950, %v948
        %v1081 = vpack.c.b16 %v951, %v949
        %v1082 = vpack.c.b16 %v954, %v952
        %v1083 = vpack.c.b16 %v955, %v953
        %1212 = vmatpush.bf16.msra.mxu0 %v970
        %1213 = vmatpush.bf16.msra.mxu0 %v968
        %1214 = vmatpush.bf16.msra.mxu0 %v966
        %1215 = vmatpush.bf16.msra.mxu0 %v964
        %1216 = vmatpush.bf16.msra.mxu0 %v962
        %1217 = vmatpush.bf16.msra.mxu0 %v960
        %1218 = vmatpush.bf16.msra.mxu0 %v958
        %1219 = vmatpush.bf16.msra.mxu0 %v956
        %1220 = vmatmul.bf16.gmra.mxu0 %v556
        %v1221 = vpop.f32.mrf.mxu0
        %v1222 = vadd.f32 %v528, %v1221
        %v1223 = vpop.f32.mrf.mxu0
        %v1224 = vadd.f32 %v528, %v1223
        %1225 = vdwg.mxu0
        %1226 = vmatpush.bf16.msra.mxu0 %v986
        %1227 = vmatpush.bf16.msra.mxu0 %v984
        %1228 = vmatpush.bf16.msra.mxu0 %v982
        %1229 = vmatpush.bf16.msra.mxu0 %v980
        %1230 = vmatpush.bf16.msra.mxu0 %v978
        %1231 = vmatpush.bf16.msra.mxu0 %v976
        %1232 = vmatpush.bf16.msra.mxu0 %v974
        %1233 = vmatpush.bf16.msra.mxu0 %v972
        %1234 = vmatmul.bf16.gmra.mxu0 %v557
        %v1235 = vpop.f32.mrf.mxu0
        %v1236 = vadd.f32 %v1222, %v1235
        %v1237 = vpop.f32.mrf.mxu0
        %v1238 = vadd.f32 %v1224, %v1237
        %1239 = vdwg.mxu0
        %1240 = vmatpush.bf16.msra.mxu0 %v1002
        %1241 = vmatpush.bf16.msra.mxu0 %v1000
        %1242 = vmatpush.bf16.msra.mxu0 %v998
        %1243 = vmatpush.bf16.msra.mxu0 %v996
        %1244 = vmatpush.bf16.msra.mxu0 %v994
        %1245 = vmatpush.bf16.msra.mxu0 %v992
        %1246 = vmatpush.bf16.msra.mxu0 %v990
        %1247 = vmatpush.bf16.msra.mxu0 %v988
        %1248 = vmatmul.bf16.gmra.mxu0 %v558
        %v1249 = vpop.f32.mrf.mxu0
        %v1250 = vadd.f32 %v1236, %v1249
        %v1251 = vpop.f32.mrf.mxu0
        %v1252 = vadd.f32 %v1238, %v1251
        %1253 = vdwg.mxu0
        %1254 = vmatpush.bf16.msra.mxu0 %v1018
        %1255 = vmatpush.bf16.msra.mxu0 %v1016
        %1256 = vmatpush.bf16.msra.mxu0 %v1014
        %1257 = vmatpush.bf16.msra.mxu0 %v1012
        %1258 = vmatpush.bf16.msra.mxu0 %v1010
        %1259 = vmatpush.bf16.msra.mxu0 %v1008
        %1260 = vmatpush.bf16.msra.mxu0 %v1006
        %1261 = vmatpush.bf16.msra.mxu0 %v1004
        %1262 = vmatmul.bf16.gmra.mxu0 %v559
        %v1263 = vpop.f32.mrf.mxu0
        %v1264 = vadd.f32 %v1250, %v1263
        %v1265 = vpop.f32.mrf.mxu0
        %v1266 = vadd.f32 %v1252, %v1265
        %1267 = vdwg.mxu0
        %1268 = vmatpush.bf16.msra.mxu0 %v1034
        %1269 = vmatpush.bf16.msra.mxu0 %v1032
        %1270 = vmatpush.bf16.msra.mxu0 %v1030
        %1271 = vmatpush.bf16.msra.mxu0 %v1028
        %1272 = vmatpush.bf16.msra.mxu0 %v1026
        %1273 = vmatpush.bf16.msra.mxu0 %v1024
        %1274 = vmatpush.bf16.msra.mxu0 %v1022
        %1275 = vmatpush.bf16.msra.mxu0 %v1020
        %1276 = vmatmul.bf16.gmra.mxu0 %v560
        %v1277 = vpop.f32.mrf.mxu0
        %v1278 = vadd.f32 %v1264, %v1277
        %v1279 = vpop.f32.mrf.mxu0
        %v1280 = vadd.f32 %v1266, %v1279
        %1281 = vdwg.mxu0
        %1282 = vmatpush.bf16.msra.mxu0 %v1050
        %1283 = vmatpush.bf16.msra.mxu0 %v1048
        %1284 = vmatpush.bf16.msra.mxu0 %v1046
        %1285 = vmatpush.bf16.msra.mxu0 %v1044
        %1286 = vmatpush.bf16.msra.mxu0 %v1042
        %1287 = vmatpush.bf16.msra.mxu0 %v1040
        %1288 = vmatpush.bf16.msra.mxu0 %v1038
        %1289 = vmatpush.bf16.msra.mxu0 %v1036
        %1290 = vmatmul.bf16.gmra.mxu0 %v561
        %v1291 = vpop.f32.mrf.mxu0
        %v1292 = vadd.f32 %v1278, %v1291
        %v1293 = vpop.f32.mrf.mxu0
        %v1294 = vadd.f32 %v1280, %v1293
        %1295 = vdwg.mxu0
        %1296 = vmatpush.bf16.msra.mxu0 %v1066
        %1297 = vmatpush.bf16.msra.mxu0 %v1064
        %1298 = vmatpush.bf16.msra.mxu0 %v1062
        %1299 = vmatpush.bf16.msra.mxu0 %v1060
        %1300 = vmatpush.bf16.msra.mxu0 %v1058
        %1301 = vmatpush.bf16.msra.mxu0 %v1056
        %1302 = vmatpush.bf16.msra.mxu0 %v1054
        %1303 = vmatpush.bf16.msra.mxu0 %v1052
        %1304 = vmatmul.bf16.gmra.mxu0 %v562
        %v1305 = vpop.f32.mrf.mxu0
        %v1306 = vadd.f32 %v1292, %v1305
        %v1307 = vpop.f32.mrf.mxu0
        %v1308 = vadd.f32 %v1294, %v1307
        %1309 = vdwg.mxu0
        %1310 = vmatpush.bf16.msra.mxu0 %v1082
        %1311 = vmatpush.bf16.msra.mxu0 %v1080
        %1312 = vmatpush.bf16.msra.mxu0 %v1078
        %1313 = vmatpush.bf16.msra.mxu0 %v1076
        %1314 = vmatpush.bf16.msra.mxu0 %v1074
        %1315 = vmatpush.bf16.msra.mxu0 %v1072
        %1316 = vmatpush.bf16.msra.mxu0 %v1070
        %1317 = vmatpush.bf16.msra.mxu0 %v1068
        %1318 = vmatmul.bf16.gmra.mxu0 %v563
        %v1319 = vpop.f32.mrf.mxu0
        %v1320 = vadd.f32 %v1306, %v1319
        %v1321 = vpop.f32.mrf.mxu0
        %v1322 = vadd.f32 %v1308, %v1321
        %1323 = vdwg.mxu0
        %1324 = vmatpush.bf16.msra.mxu0 %v971
        %1325 = vmatpush.bf16.msra.mxu0 %v969
        %1326 = vmatpush.bf16.msra.mxu0 %v967
        %1327 = vmatpush.bf16.msra.mxu0 %v965
        %1328 = vmatpush.bf16.msra.mxu0 %v963
        %1329 = vmatpush.bf16.msra.mxu0 %v961
        %1330 = vmatpush.bf16.msra.mxu0 %v959
        %1331 = vmatpush.bf16.msra.mxu0 %v957
        %1332 = vmatmul.bf16.gmra.mxu0 %v556
        %v1333 = vpop.f32.mrf.mxu0
        %v1334 = vadd.f32 %v529, %v1333
        %v1335 = vpop.f32.mrf.mxu0
        %v1336 = vadd.f32 %v529, %v1335
        %1337 = vdwg.mxu0
        %1338 = vmatpush.bf16.msra.mxu0 %v987
        %1339 = vmatpush.bf16.msra.mxu0 %v985
        %1340 = vmatpush.bf16.msra.mxu0 %v983
        %1341 = vmatpush.bf16.msra.mxu0 %v981
        %1342 = vmatpush.bf16.msra.mxu0 %v979
        %1343 = vmatpush.bf16.msra.mxu0 %v977
        %1344 = vmatpush.bf16.msra.mxu0 %v975
        %1345 = vmatpush.bf16.msra.mxu0 %v973
        %1346 = vmatmul.bf16.gmra.mxu0 %v557
        %v1347 = vpop.f32.mrf.mxu0
        %v1348 = vadd.f32 %v1334, %v1347
        %v1349 = vpop.f32.mrf.mxu0
        %v1350 = vadd.f32 %v1336, %v1349
        %1351 = vdwg.mxu0
        %1352 = vmatpush.bf16.msra.mxu0 %v1003
        %1353 = vmatpush.bf16.msra.mxu0 %v1001
        %1354 = vmatpush.bf16.msra.mxu0 %v999
        %1355 = vmatpush.bf16.msra.mxu0 %v997
        %1356 = vmatpush.bf16.msra.mxu0 %v995
        %1357 = vmatpush.bf16.msra.mxu0 %v993
        %1358 = vmatpush.bf16.msra.mxu0 %v991
        %1359 = vmatpush.bf16.msra.mxu0 %v989
        %1360 = vmatmul.bf16.gmra.mxu0 %v558
        %v1361 = vpop.f32.mrf.mxu0
        %v1362 = vadd.f32 %v1348, %v1361
        %v1363 = vpop.f32.mrf.mxu0
        %v1364 = vadd.f32 %v1350, %v1363
        %1365 = vdwg.mxu0
        %1366 = vmatpush.bf16.msra.mxu0 %v1019
        %1367 = vmatpush.bf16.msra.mxu0 %v1017
        %1368 = vmatpush.bf16.msra.mxu0 %v1015
        %1369 = vmatpush.bf16.msra.mxu0 %v1013
        %1370 = vmatpush.bf16.msra.mxu0 %v1011
        %1371 = vmatpush.bf16.msra.mxu0 %v1009
        %1372 = vmatpush.bf16.msra.mxu0 %v1007
        %1373 = vmatpush.bf16.msra.mxu0 %v1005
        %1374 = vmatmul.bf16.gmra.mxu0 %v559
        %v1375 = vpop.f32.mrf.mxu0
        %v1376 = vadd.f32 %v1362, %v1375
        %v1377 = vpop.f32.mrf.mxu0
        %v1378 = vadd.f32 %v1364, %v1377
        %1379 = vdwg.mxu0
        %1380 = vmatpush.bf16.msra.mxu0 %v1035
        %1381 = vmatpush.bf16.msra.mxu0 %v1033
        %1382 = vmatpush.bf16.msra.mxu0 %v1031
        %1383 = vmatpush.bf16.msra.mxu0 %v1029
        %1384 = vmatpush.bf16.msra.mxu0 %v1027
        %1385 = vmatpush.bf16.msra.mxu0 %v1025
        %1386 = vmatpush.bf16.msra.mxu0 %v1023
        %1387 = vmatpush.bf16.msra.mxu0 %v1021
        %1388 = vmatmul.bf16.gmra.mxu0 %v560
        %v1389 = vpop.f32.mrf.mxu0
        %v1390 = vadd.f32 %v1376, %v1389
        %v1391 = vpop.f32.mrf.mxu0
        %v1392 = vadd.f32 %v1378, %v1391
        %1393 = vdwg.mxu0
        %1394 = vmatpush.bf16.msra.mxu0 %v1051
        %1395 = vmatpush.bf16.msra.mxu0 %v1049
        %1396 = vmatpush.bf16.msra.mxu0 %v1047
        %1397 = vmatpush.bf16.msra.mxu0 %v1045
        %1398 = vmatpush.bf16.msra.mxu0 %v1043
        %1399 = vmatpush.bf16.msra.mxu0 %v1041
        %1400 = vmatpush.bf16.msra.mxu0 %v1039
        %1401 = vmatpush.bf16.msra.mxu0 %v1037
        %1402 = vmatmul.bf16.gmra.mxu0 %v561
        %v1403 = vpop.f32.mrf.mxu0
        %v1404 = vadd.f32 %v1390, %v1403
        %v1405 = vpop.f32.mrf.mxu0
        %v1406 = vadd.f32 %v1392, %v1405
        %1407 = vdwg.mxu0
        %1408 = vmatpush.bf16.msra.mxu0 %v1067
        %1409 = vmatpush.bf16.msra.mxu0 %v1065
        %1410 = vmatpush.bf16.msra.mxu0 %v1063
        %1411 = vmatpush.bf16.msra.mxu0 %v1061
        %1412 = vmatpush.bf16.msra.mxu0 %v1059
        %1413 = vmatpush.bf16.msra.mxu0 %v1057
        %1414 = vmatpush.bf16.msra.mxu0 %v1055
        %1415 = vmatpush.bf16.msra.mxu0 %v1053
        %1416 = vmatmul.bf16.gmra.mxu0 %v562
        %v1417 = vpop.f32.mrf.mxu0
        %v1418 = vadd.f32 %v1404, %v1417
        %v1419 = vpop.f32.mrf.mxu0
        %v1420 = vadd.f32 %v1406, %v1419
        %1421 = vdwg.mxu0
        %1422 = vmatpush.bf16.msra.mxu0 %v1083
        %1423 = vmatpush.bf16.msra.mxu0 %v1081
        %1424 = vmatpush.bf16.msra.mxu0 %v1079
        %1425 = vmatpush.bf16.msra.mxu0 %v1077
        %1426 = vmatpush.bf16.msra.mxu0 %v1075
        %1427 = vmatpush.bf16.msra.mxu0 %v1073
        %1428 = vmatpush.bf16.msra.mxu0 %v1071
        %1429 = vmatpush.bf16.msra.mxu0 %v1069
        %1430 = vmatmul.bf16.gmra.mxu0 %v563
        %v1431 = vpop.f32.mrf.mxu0
        %v1432 = vadd.f32 %v1418, %v1431
        %v1433 = vpop.f32.mrf.mxu0
        %v1434 = vadd.f32 %v1420, %v1433
        %1435 = vdwg.mxu0
        %v1436 = vmax.f32 %v1320, 0.0
        %v1437 = vmax.f32 %v1432, 0.0
        %v1438 = vmax.f32 %v1322, 0.0
        %v1439 = vmax.f32 %v1434, 0.0
        %v1440 = vpack.c.bf16 %v1438, %v1436
        %v1441 = vpack.c.bf16 %v1439, %v1437
        %v1442 = vld [vmem:[#allocation7] sm:$0xf]
        %v1443 = vld [vmem:[#allocation7 + $0x4] sm:$0xf]
        %v1444 = vld [vmem:[#allocation7 + $0x8] sm:$0xf]
        %v1445 = vld [vmem:[#allocation7 + $0xc] sm:$0xf]
        %v1446 = vld [vmem:[#allocation7 + $0x10] sm:$0xf]
        %v1447 = vld [vmem:[#allocation7 + $0x14] sm:$0xf]
        %v1448 = vld [vmem:[#allocation7 + $0x18] sm:$0xf]
        %v1449 = vld [vmem:[#allocation7 + $0x1c] sm:$0xf]
        %v1450 = vld [vmem:[#allocation7 + $0x20] sm:$0xf]
        %v1451 = vld [vmem:[#allocation7 + $0x24] sm:$0xf]
        %v1452 = vld [vmem:[#allocation7 + $0x28] sm:$0xf]
        %v1453 = vld [vmem:[#allocation7 + $0x2c] sm:$0xf]
        %v1454 = vld [vmem:[#allocation7 + $0x30] sm:$0xf]
        %v1455 = vld [vmem:[#allocation7 + $0x34] sm:$0xf]
        %v1456 = vld [vmem:[#allocation7 + $0x38] sm:$0xf]
        %v1457 = vld [vmem:[#allocation7 + $0x3c] sm:$0xf]
        %v1458 = vld [vmem:[#allocation7 + $0x40] sm:$0xf]
        %v1459 = vld [vmem:[#allocation7 + $0x44] sm:$0xf]
        %v1460 = vld [vmem:[#allocation7 + $0x48] sm:$0xf]
        %v1461 = vld [vmem:[#allocation7 + $0x4c] sm:$0xf]
        %v1462 = vld [vmem:[#allocation7 + $0x50] sm:$0xf]
        %v1463 = vld [vmem:[#allocation7 + $0x54] sm:$0xf]
        %v1464 = vld [vmem:[#allocation7 + $0x58] sm:$0xf]
        %v1465 = vld [vmem:[#allocation7 + $0x5c] sm:$0xf]
        %v1466 = vld [vmem:[#allocation7 + $0x60] sm:$0xf]
        %v1467 = vld [vmem:[#allocation7 + $0x64] sm:$0xf]
        %v1468 = vld [vmem:[#allocation7 + $0x68] sm:$0xf]
        %v1469 = vld [vmem:[#allocation7 + $0x6c] sm:$0xf]
        %v1470 = vld [vmem:[#allocation7 + $0x70] sm:$0xf]
        %v1471 = vld [vmem:[#allocation7 + $0x74] sm:$0xf]
        %v1472 = vld [vmem:[#allocation7 + $0x78] sm:$0xf]
        %v1473 = vld [vmem:[#allocation7 + $0x7c] sm:$0xf]
        %v1474 = vld [vmem:[%s4] sm:$0x1]
        %v1476 = vperm.slane %v1474, 0
        %v1510 = vunpack.c.l.b16 %v1442
        %v1511 = vunpack.c.l.b16 %v1443
        %v1512 = vunpack.c.l.b16 %v1444
        %v1513 = vunpack.c.l.b16 %v1445
        %v1514 = vunpack.c.l.b16 %v1446
        %v1515 = vunpack.c.l.b16 %v1447
        %v1516 = vunpack.c.l.b16 %v1448
        %v1517 = vunpack.c.l.b16 %v1449
        %v1518 = vunpack.c.l.b16 %v1450
        %v1519 = vunpack.c.l.b16 %v1451
        %v1520 = vunpack.c.l.b16 %v1452
        %v1521 = vunpack.c.l.b16 %v1453
        %v1522 = vunpack.c.l.b16 %v1454
        %v1523 = vunpack.c.l.b16 %v1455
        %v1524 = vunpack.c.l.b16 %v1456
        %v1525 = vunpack.c.l.b16 %v1457
        %v1526 = vunpack.c.l.b16 %v1458
        %v1527 = vunpack.c.l.b16 %v1459
        %v1528 = vunpack.c.l.b16 %v1460
        %v1529 = vunpack.c.l.b16 %v1461
        %v1530 = vunpack.c.l.b16 %v1462
        %v1531 = vunpack.c.l.b16 %v1463
        %v1532 = vunpack.c.l.b16 %v1464
        %v1533 = vunpack.c.l.b16 %v1465
        %v1534 = vunpack.c.l.b16 %v1466
        %v1535 = vunpack.c.l.b16 %v1467
        %v1536 = vunpack.c.l.b16 %v1468
        %v1537 = vunpack.c.l.b16 %v1469
        %v1538 = vunpack.c.l.b16 %v1470
        %v1539 = vunpack.c.l.b16 %v1471
        %v1540 = vunpack.c.l.b16 %v1472
        %v1541 = vunpack.c.l.b16 %v1473
        %v1542 = vpack.c.b16 %v1511, %v1510
        %v1543 = vpack.c.b16 %v1513, %v1512
        %v1544 = vpack.c.b16 %v1515, %v1514
        %v1545 = vpack.c.b16 %v1517, %v1516
        %v1546 = vpack.c.b16 %v1519, %v1518
        %v1547 = vpack.c.b16 %v1521, %v1520
        %v1548 = vpack.c.b16 %v1523, %v1522
        %v1549 = vpack.c.b16 %v1525, %v1524
        %v1550 = vpack.c.b16 %v1527, %v1526
        %v1551 = vpack.c.b16 %v1529, %v1528
        %v1552 = vpack.c.b16 %v1531, %v1530
        %v1553 = vpack.c.b16 %v1533, %v1532
        %v1554 = vpack.c.b16 %v1535, %v1534
        %v1555 = vpack.c.b16 %v1537, %v1536
        %v1556 = vpack.c.b16 %v1539, %v1538
        %v1557 = vpack.c.b16 %v1541, %v1540
        %1574 = vmatpush.bf16.msra.mxu0 %v1549
        %1575 = vmatpush.bf16.msra.mxu0 %v1548
        %1576 = vmatpush.bf16.msra.mxu0 %v1547
        %1577 = vmatpush.bf16.msra.mxu0 %v1546
        %1578 = vmatpush.bf16.msra.mxu0 %v1545
        %1579 = vmatpush.bf16.msra.mxu0 %v1544
        %1580 = vmatpush.bf16.msra.mxu0 %v1543
        %1581 = vmatpush.bf16.msra.mxu0 %v1542
        %1582 = vmatmul.bf16.gmra.mxu0 %v1440
        %v1583 = vpop.f32.mrf.mxu0
        %v1584 = vadd.f32 %v1476, %v1583
        %v1585 = vpop.f32.mrf.mxu0
        %v1586 = vadd.f32 %v1476, %v1585
        %1587 = vdwg.mxu0
        %1588 = vmatpush.bf16.msra.mxu0 %v1557
        %1589 = vmatpush.bf16.msra.mxu0 %v1556
        %1590 = vmatpush.bf16.msra.mxu0 %v1555
        %1591 = vmatpush.bf16.msra.mxu0 %v1554
        %1592 = vmatpush.bf16.msra.mxu0 %v1553
        %1593 = vmatpush.bf16.msra.mxu0 %v1552
        %1594 = vmatpush.bf16.msra.mxu0 %v1551
        %1595 = vmatpush.bf16.msra.mxu0 %v1550
        %1596 = vmatmul.bf16.gmra.mxu0 %v1441
        %v1597 = vpop.f32.mrf.mxu0
        %v1598 = vadd.f32 %v1584, %v1597
        %v1599 = vpop.f32.mrf.mxu0
        %v1600 = vadd.f32 %v1586, %v1599
        %1601 = vdwg.mxu0
        %v1602 = vmax.f32 %v1598, 0.0
        %v1603 = vmax.f32 %v1600, 0.0
        %v1604 = vpack.c.bf16 %v1603, %v1602
        %v1605 = vld [vmem:[%s5] sm:$0xf]
        %v1606 = vld [vmem:[%s5 + $0x4] sm:$0xf]
        %v1607 = vld [vmem:[%s5 + $0x8] sm:$0xf]
        %v1608 = vld [vmem:[%s5 + $0xc] sm:$0xf]
        %v1609 = vld [vmem:[%s5 + $0x10] sm:$0xf]
        %v1610 = vld [vmem:[%s5 + $0x14] sm:$0xf]
        %v1611 = vld [vmem:[%s5 + $0x18] sm:$0xf]
        %v1612 = vld [vmem:[%s5 + $0x1c] sm:$0xf]
        %v1613 = vld [vmem:[%s5 + $0x20] sm:$0xf]
        %v1614 = vld [vmem:[%s5 + $0x24] sm:$0xf]
        %v1615 = vld [vmem:[%s5 + $0x28] sm:$0xf]
        %v1616 = vld [vmem:[%s5 + $0x2c] sm:$0xf]
        %v1617 = vld [vmem:[%s5 + $0x30] sm:$0xf]
        %v1618 = vld [vmem:[%s5 + $0x34] sm:$0xf]
        %v1619 = vld [vmem:[%s5 + $0x38] sm:$0xf]
        %v1620 = vld [vmem:[%s5 + $0x3c] sm:$0xf]
        %v1621 = vld [vmem:[%s6] sm:$0x1]
        %v1623 = vperm.slane %v1621, 0
        %v1641 = vunpack.c.l.b16 %v1605
        %v1642 = vunpack.c.l.b16 %v1606
        %v1643 = vunpack.c.l.b16 %v1607
        %v1644 = vunpack.c.l.b16 %v1608
        %v1645 = vunpack.c.l.b16 %v1609
        %v1646 = vunpack.c.l.b16 %v1610
        %v1647 = vunpack.c.l.b16 %v1611
        %v1648 = vunpack.c.l.b16 %v1612
        %v1649 = vunpack.c.l.b16 %v1613
        %v1650 = vunpack.c.l.b16 %v1614
        %v1651 = vunpack.c.l.b16 %v1615
        %v1652 = vunpack.c.l.b16 %v1616
        %v1653 = vunpack.c.l.b16 %v1617
        %v1654 = vunpack.c.l.b16 %v1618
        %v1655 = vunpack.c.l.b16 %v1619
        %v1656 = vunpack.c.l.b16 %v1620
        %v1657 = vpack.c.b16 %v1642, %v1641
        %v1658 = vpack.c.b16 %v1644, %v1643
        %v1659 = vpack.c.b16 %v1646, %v1645
        %v1660 = vpack.c.b16 %v1648, %v1647
        %v1661 = vpack.c.b16 %v1650, %v1649
        %v1662 = vpack.c.b16 %v1652, %v1651
        %v1663 = vpack.c.b16 %v1654, %v1653
        %v1664 = vpack.c.b16 %v1656, %v1655
        %1673 = vmatpush.bf16.msra.mxu0 %v1664
        %1674 = vmatpush.bf16.msra.mxu0 %v1663
        %1675 = vmatpush.bf16.msra.mxu0 %v1662
        %1676 = vmatpush.bf16.msra.mxu0 %v1661
        %1677 = vmatpush.bf16.msra.mxu0 %v1660
        %1678 = vmatpush.bf16.msra.mxu0 %v1659
        %1679 = vmatpush.bf16.msra.mxu0 %v1658
        %1680 = vmatpush.bf16.msra.mxu0 %v1657
        %1681 = vmatmul.bf16.gmra.mxu0 %v1604
        %v1682 = vpop.f32.mrf.mxu0
        %v1683 = vadd.f32 %v1623, %v1682
        %v1684 = vpop.f32.mrf.mxu0
        %v1685 = vadd.f32 %v1623, %v1684
        %1686 = vdwg.mxu0
        %v1687 = vmax.f32 %v1683, 0.0
        %v1688 = vmax.f32 %v1685, 0.0
        %v1689 = vpack.c.bf16 %v1688, %v1687
        %v1690 = vld [vmem:[%s7] sm:$0xf]
        %v1691 = vld [vmem:[%s7 + $0x4] sm:$0xf]
        %v1692 = vld [vmem:[%s7 + $0x8] sm:$0xf]
        %v1693 = vld [vmem:[%s7 + $0xc] sm:$0xf]
        %v1694 = vld [vmem:[%s7 + $0x10] sm:$0xf]
        %v1695 = vld [vmem:[%s7 + $0x14] sm:$0xf]
        %v1696 = vld [vmem:[%s7 + $0x18] sm:$0xf]
        %v1697 = vld [vmem:[%s7 + $0x1c] sm:$0xf]
        %v1698 = vld [vmem:[%s8] sm:$0x1]
        %v1700 = vperm.slane %v1698, 0
        %v1710 = vunpack.c.l.b16 %v1690
        %v1711 = vunpack.c.l.b16 %v1691
        %v1712 = vunpack.c.l.b16 %v1692
        %v1713 = vunpack.c.l.b16 %v1693
        %v1714 = vunpack.c.l.b16 %v1694
        %v1715 = vunpack.c.l.b16 %v1695
        %v1716 = vunpack.c.l.b16 %v1696
        %v1717 = vunpack.c.l.b16 %v1697
        %v1718 = vpack.c.b16 %v1711, %v1710
        %v1719 = vpack.c.b16 %v1713, %v1712
        %v1720 = vpack.c.b16 %v1715, %v1714
        %v1721 = vpack.c.b16 %v1717, %v1716
        %vm1726 = vcmask 523264
        %v1728 = vsel %vm1726, %v1689, 0
        %1730 = vmatpush.bf16.msra.mxu0 0
        %1731 = vmatpush.bf16.msra.mxu0 0
        %1732 = vmatpush.bf16.msra.mxu0 0
        %1733 = vmatpush.bf16.msra.mxu0 0
        %1734 = vmatpush.bf16.msra.mxu0 %v1721
        %1735 = vmatpush.bf16.msra.mxu0 %v1720
        %1736 = vmatpush.bf16.msra.mxu0 %v1719
        %1737 = vmatpush.bf16.msra.mxu0 %v1718
        %1738 = vmatmul.bf16.gmra.mxu0 %v1728
        %v1739 = vpop.f32.mrf.mxu0
        %v1740 = vadd.f32 %v1700, %v1739
        %v1741 = vpop.f32.mrf.mxu0
        %v1742 = vadd.f32 %v1700, %v1741
        %1743 = vdwg.mxu0
        %1744 = vst [vmem:[%s386] sm:$0xff] %v1740
        %1745 = vst [vmem:[%s386 + $0x8] sm:$0xff] %v1742
        %s1746 = sand.u32 %s229, 1
        %s1747 = scalar_lea.sflag [#allocation4], %s1746
        %s1748 = sand.u32 %s229, 1
        %s1749 = smul.addr %s1748, 16
        %s1750 = scalar_lea.vmem [#allocation8], %s1749
        // Predicated region
        $region69: #{tpu_custom_call.1} parent=55 // pred_check
          %p1751 = pneg %p239
        $region70: #{tpu_custom_call.1} parent=55 // pred_check_branch
          %1753 = sbr.rel (%p1751) target = $region72
        $region71: #{tpu_custom_call.1} parent=55 // pred_region
          %s1754 = smul.u32 2, %s27
          %1756 = vsyncadd %s1747, 0
          %s1757 = smul.addr %s1754, 8
          %s1758 = scalar_lea.hbm %s9, %s1757
          %s1759 = sshll.u32 %s1750, 4
          %s1760 = int_to_ptr.vmem [resolvable:$true] %s1759
          %s1761 = sshll.u32 %s1758, 4
          %s1762 = int_to_ptr.hbm [resolvable:$true] %s1761
          %1767 = dma.vmem_to_hbm [thread:$0]  %s1760, 256, %s1762, %s1747, 128, 128, 8
        $region72: #{tpu_custom_call.1} parent=55 // pred_fallthru
          _
      $region56: #{tpu_custom_call.1} parent=5 // pred_fallthru
        _
      %p1768 = scmp.le.s32.totalorder 2, %s22
      // Predicated region
      $region73: #{tpu_custom_call.1} parent=5 // pred_check
        %p1769 = pneg %p1768
      $region74: #{tpu_custom_call.1} parent=5 // pred_check_branch
        %1771 = sbr.rel (%p1769) target = $region76
      $region75: #{tpu_custom_call.1} parent=5 // pred_region
        %s1772 = ssub.s32 %s22, 2
        // Predicated region
        $region77: #{tpu_custom_call.1} parent=75 // pred_check
          %p1773 = pneg %p245
        $region78: #{tpu_custom_call.1} parent=75 // pred_check_branch
          %1775 = sbr.rel (%p1773) target = $region80
        $region79: #{tpu_custom_call.1} parent=75 // pred_region
          %s1776 = sand.u32 %s230, 1
          %s1777 = scalar_lea.sflag [#allocation4], %s1776
          %s1778 = sand.u32 %s230, 1
          %s1779 = smul.addr %s1778, 16
          %s1780 = scalar_lea.vmem [#allocation8], %s1779
          %1782 = dma.done %s1777, 256
        $region80: #{tpu_custom_call.1} parent=75 // pred_fallthru
          _
      $region76: #{tpu_custom_call.1} parent=5 // pred_fallthru
        _
    $region6: #{tpu_custom_call.1} parent=1 // loop_footer
      %s26 = sadd.s32 1, %s22
    $region7: #{tpu_custom_call.1} parent=1 // loop_footer_branch
      %21 = sbr.rel target = $region3
    $region8: #{tpu_custom_call.1} parent=1 // loop_exit
      _
    %1783 = vsyncpa [#allocation3], 1
    %s1784 = scalar_lea.sflag [#allocation3], 1
    %1785 = vsyncpa %s1784, 1
    %1786 = vsyncpa [#allocation6], 1
    %1787 = vsyncpa [#allocation4], 1
    %s1788 = scalar_lea.sflag [#allocation4], 1
    %1789 = vsyncpa %s1788, 1

// kernel: tpu_custom_call.1
$region0: #{tpu_custom_call.1}
  #allocation0 [shape = 'u32[]', space=smem, size = 0x4, offset = 0x4, fixed_abs, tag = 'smem constant byte address 0x4 - core index']
  #allocation1 [shape = 'u32[72,128]{1,0:T(1,128)}', space=vmem, size = 0x9000, scoped, tag = 'internal scratch']
  %s0 = inlined_call_operand.hbm [shape: bf16[32,1024], index: 0, kind: input, shape index: {}]
  %s1 = inlined_call_operand.hbm [shape: bf16[1024,256], index: 1, kind: input, shape index: {}]
  %s2 = inlined_call_operand.vmem [shape: f32[1,256], index: 2, kind: input, shape index: {}]
  %s3 = inlined_call_operand.hbm [shape: bf16[256,128], index: 3, kind: input, shape index: {}]
  %s4 = inlined_call_operand.vmem [shape: f32[1,128], index: 4, kind: input, shape index: {}]
  %s5 = inlined_call_operand.vmem [shape: bf16[128,64], index: 5, kind: input, shape index: {}]
  %s6 = inlined_call_operand.vmem [shape: f32[1,64], index: 6, kind: input, shape index: {}]
  %s7 = inlined_call_operand.vmem [shape: bf16[64,128], index: 7, kind: input, shape index: {}]
  %s8 = inlined_call_operand.vmem [shape: f32[1,128], index: 8, kind: input, shape index: {}]
  %s9 = inlined_call_operand.hbm [shape: f32[32,128], index: 9, kind: output, shape index: {}]
  %s10 = sld [smem:[#allocation0]]
  $region81: #{tpu_custom_call.1} parent=0
    _
  %s12 = ssub.s32 1, %s10
  %s13 = scalar_select 0, %s12, %s10
  $region1: #{tpu_custom_call.1} parent=0
    #allocation2 [shape = 'u8[65536]{0}', space=vmem, size = 0x10000, scoped, tag = 'input window, operand 0']
    #allocation3 [shape = 's32[2]{0}', space=sflag, size = 0x8, scoped, tag = 'scoped memory for tpu_custom_call.1']
    #allocation4 [shape = 's32[2]{0}', space=sflag, size = 0x8, scoped, tag = 'scoped memory for tpu_custom_call.1']
    #allocation5 [shape = 'u8[524288]{0}', space=vmem, size = 0x80000, scoped, tag = 'input window, operand 1, single buffered']
    #allocation6 [shape = 's32[1]{0}', space=sflag, size = 0x4, scoped, tag = 'scoped memory for tpu_custom_call.1']
    #allocation7 [shape = 'u8[65536]{0}', space=vmem, size = 0x10000, scoped, tag = 'input window, operand 3, single buffered']
    #allocation8 [shape = 'u8[16384]{0}', space=vmem, size = 0x4000, scoped, tag = 'output window, operand 0']
    %14 = vsyncpa [#allocation3], 0
    %s15 = scalar_lea.sflag [#allocation3], 1
    %16 = vsyncpa %s15, 0
    %17 = vsyncpa [#allocation6], 0
    %18 = vsyncpa [#allocation4], 0
    %s19 = scalar_lea.sflag [#allocation4], 1
    %20 = vsyncpa %s19, 0
    loop: start=0, step=1, limit=4
    $region2: #{tpu_custom_call.1} parent=1 // loop_pre_header
      _
    $region3: #{tpu_custom_call.1} parent=1 // loop_header
      %s22 = sphi 0, %s26
      %p23 = scmp.ge.s32.totalorder %s22, 4
      %s32 = sphi 0, %s34
      %s35 = sphi 0, %s32
      %s36 = sphi 0, %s35
      %s52 = sphi 0, %s36
      %s56 = sphi 0, %s56
      %s58 = sphi 0, %s56
      %s59 = sphi 0, %s58
      %s73 = sphi 0, %s59
      %s77 = sphi 0, %s77
      %s79 = sphi 0, %s77
      %s80 = sphi 0, %s79
      %s94 = sphi 0, %s80
      %s98 = sphi 0, %s98
      %s100 = sphi 0, %s98
      %s101 = sphi 0, %s100
      %s115 = sphi 0, %s101
      %s119 = sphi 0, %s119
      %s121 = sphi 0, %s119
      %s122 = sphi 0, %s121
      %s136 = sphi 0, %s122
      %s140 = sphi 0, %s140
      %s142 = sphi 0, %s140
      %s143 = sphi 0, %s142
      %s157 = sphi 0, %s143
      %s161 = sphi 0, %s161
      %s163 = sphi 0, %s161
      %s164 = sphi 0, %s163
      %s178 = sphi 0, %s164
      %s182 = sphi 0, %s182
      %s184 = sphi 0, %s182
      %s185 = sphi 0, %s184
      %s199 = sphi 0, %s185
      %s203 = sphi 0, %s203
      %s205 = sphi 0, %s203
      %s206 = sphi 0, %s205
      %s220 = sphi 0, %s206
      %s226 = sphi 0, %s228
      %s229 = sphi 0, %s226
      %s230 = sphi 0, %s229
      %s246 = sphi 0, %s230
    $region4: #{tpu_custom_call.1} parent=1 // loop_header_branch
      %25 = sbr.rel (%p23) target = $region8
    $region5: #{tpu_custom_call.1} parent=1 // loop_body
      %s27 = ssub.s32 %s22, 1
      %s28 = ssub.s32 %s22, 2
      %s29 = sadd.s32 %s22, 1
      %s30 = ssub.s32 %s22, %s29
      %p31 = scmp.eq.s32.totalorder %s30, 0
      %s33 = sadd.s32 %s32, 1
      %s34 = scalar_select %p31, %s32, %s33
      %p37 = pneg %p31
      %p38 = scmp.eq.s32.totalorder %s22, 1
      %p39 = por %p37, %p38
      %p40 = scmp.ne.s32.totalorder %s32, %s35
      %p41 = scmp.eq.s32.totalorder %s22, 0
      %p42 = por %p40, %p41
      %p43 = scmp.ne.s32.totalorder %s32, %s35
      %p44 = scmp.eq.s32.totalorder %s27, 1
      %p45 = por %p43, %p44
      %p46 = scmp.ne.s32.totalorder %s35, %s36
      %p47 = scmp.eq.s32.totalorder %s27, 0
      %p48 = por %p46, %p47
      %p49 = scmp.ne.s32.totalorder %s35, %s36
      %p50 = scmp.eq.s32.totalorder %s28, 1
      %p51 = por %p49, %p50
      %p53 = scmp.ne.s32.totalorder %s36, %s52
      %p54 = scmp.eq.s32.totalorder %s28, 0
      %p55 = por %p53, %p54
      %s57 = sadd.s32 %s56, 1
      %p60 = scmp.eq.s32.totalorder %s22, 1
      %p61 = scmp.ne.s32.totalorder %s56, %s58
      %p62 = scmp.eq.s32.totalorder %s22, 0
      %p63 = por %p61, %p62
      %p64 = scmp.ne.s32.totalorder %s56, %s58
      %p65 = scmp.eq.s32.totalorder %s27, 1
      %p66 = por %p64, %p65
      %p67 = scmp.ne.s32.totalorder %s58, %s59
      %p68 = scmp.eq.s32.totalorder %s27, 0
      %p69 = por %p67, %p68
      %p70 = scmp.ne.s32.totalorder %s58, %s59
      %p71 = scmp.eq.s32.totalorder %s28, 1
      %p72 = por %p70, %p71
      %p74 = scmp.ne.s32.totalorder %s59, %s73
      %p75 = scmp.eq.s32.totalorder %s28, 0
      %p76 = por %p74, %p75
      %s78 = sadd.s32 %s77, 1
      %p81 = scmp.eq.s32.totalorder %s22, 1
      %p82 = scmp.ne.s32.totalorder %s77, %s79
      %p83 = scmp.eq.s32.totalorder %s22, 0
      %p84 = por %p82, %p83
      %p85 = scmp.ne.s32.totalorder %s77, %s79
      %p86 = scmp.eq.s32.totalorder %s27, 1
      %p87 = por %p85, %p86
      %p88 = scmp.ne.s32.totalorder %s79, %s80
      %p89 = scmp.eq.s32.totalorder %s27, 0
      %p90 = por %p88, %p89
      %p91 = scmp.ne.s32.totalorder %s79, %s80
      %p92 = scmp.eq.s32.totalorder %s28, 1
      %p93 = por %p91, %p92
      %p95 = scmp.ne.s32.totalorder %s80, %s94
      %p96 = scmp.eq.s32.totalorder %s28, 0
      %p97 = por %p95, %p96
      %s99 = sadd.s32 %s98, 1
      %p102 = scmp.eq.s32.totalorder %s22, 1
      %p103 = scmp.ne.s32.totalorder %s98, %s100
      %p104 = scmp.eq.s32.totalorder %s22, 0
      %p105 = por %p103, %p104
      %p106 = scmp.ne.s32.totalorder %s98, %s100
      %p107 = scmp.eq.s32.totalorder %s27, 1
      %p108 = por %p106, %p107
      %p109 = scmp.ne.s32.totalorder %s100, %s101
      %p110 = scmp.eq.s32.totalorder %s27, 0
      %p111 = por %p109, %p110
      %p112 = scmp.ne.s32.totalorder %s100, %s101
      %p113 = scmp.eq.s32.totalorder %s28, 1
      %p114 = por %p112, %p113
      %p116 = scmp.ne.s32.totalorder %s101, %s115
      %p117 = scmp.eq.s32.totalorder %s28, 0
      %p118 = por %p116, %p117
      %s120 = sadd.s32 %s119, 1
      %p123 = scmp.eq.s32.totalorder %s22, 1
      %p124 = scmp.ne.s32.totalorder %s119, %s121
      %p125 = scmp.eq.s32.totalorder %s22, 0
      %p126 = por %p124, %p125
      %p127 = scmp.ne.s32.totalorder %s119, %s121
      %p128 = scmp.eq.s32.totalorder %s27, 1
      %p129 = por %p127, %p128
      %p130 = scmp.ne.s32.totalorder %s121, %s122
      %p131 = scmp.eq.s32.totalorder %s27, 0
      %p132 = por %p130, %p131
      %p133 = scmp.ne.s32.totalorder %s121, %s122
      %p134 = scmp.eq.s32.totalorder %s28, 1
      %p135 = por %p133, %p134
      %p137 = scmp.ne.s32.totalorder %s122, %s136
      %p138 = scmp.eq.s32.totalorder %s28, 0
      %p139 = por %p137, %p138
      %s141 = sadd.s32 %s140, 1
      %p144 = scmp.eq.s32.totalorder %s22, 1
      %p145 = scmp.ne.s32.totalorder %s140, %s142
      %p146 = scmp.eq.s32.totalorder %s22, 0
      %p147 = por %p145, %p146
      %p148 = scmp.ne.s32.totalorder %s140, %s142
      %p149 = scmp.eq.s32.totalorder %s27, 1
      %p150 = por %p148, %p149
      %p151 = scmp.ne.s32.totalorder %s142, %s143
      %p152 = scmp.eq.s32.totalorder %s27, 0
      %p153 = por %p151, %p152
      %p154 = scmp.ne.s32.totalorder %s142, %s143
      %p155 = scmp.eq.s32.totalorder %s28, 1
      %p156 = por %p154, %p155
      %p158 = scmp.ne.s32.totalorder %s143, %s157
      %p159 = scmp.eq.s32.totalorder %s28, 0
      %p160 = por %p158, %p159
      %s162 = sadd.s32 %s161, 1
      %p165 = scmp.eq.s32.totalorder %s22, 1
      %p166 = scmp.ne.s32.totalorder %s161, %s163
      %p167 = scmp.eq.s32.totalorder %s22, 0
      %p168 = por %p166, %p167
      %p169 = scmp.ne.s32.totalorder %s161, %s163
      %p170 = scmp.eq.s32.totalorder %s27, 1
      %p171 = por %p169, %p170
      %p172 = scmp.ne.s32.totalorder %s163, %s164
      %p173 = scmp.eq.s32.totalorder %s27, 0
      %p174 = por %p172, %p173
      %p175 = scmp.ne.s32.totalorder %s163, %s164
      %p176 = scmp.eq.s32.totalorder %s28, 1
      %p177 = por %p175, %p176
      %p179 = scmp.ne.s32.totalorder %s164, %s178
      %p180 = scmp.eq.s32.totalorder %s28, 0
      %p181 = por %p179, %p180
      %s183 = sadd.s32 %s182, 1
      %p186 = scmp.eq.s32.totalorder %s22, 1
      %p187 = scmp.ne.s32.totalorder %s182, %s184
      %p188 = scmp.eq.s32.totalorder %s22, 0
      %p189 = por %p187, %p188
      %p190 = scmp.ne.s32.totalorder %s182, %s184
      %p191 = scmp.eq.s32.totalorder %s27, 1
      %p192 = por %p190, %p191
      %p193 = scmp.ne.s32.totalorder %s184, %s185
      %p194 = scmp.eq.s32.totalorder %s27, 0
      %p195 = por %p193, %p194
      %p196 = scmp.ne.s32.totalorder %s184, %s185
      %p197 = scmp.eq.s32.totalorder %s28, 1
      %p198 = por %p196, %p197
      %p200 = scmp.ne.s32.totalorder %s185, %s199
      %p201 = scmp.eq.s32.totalorder %s28, 0
      %p202 = por %p200, %p201
      %s204 = sadd.s32 %s203, 1
      %p207 = scmp.eq.s32.totalorder %s22, 1
      %p208 = scmp.ne.s32.totalorder %s203, %s205
      %p209 = scmp.eq.s32.totalorder %s22, 0
      %p210 = por %p208, %p209
      %p211 = scmp.ne.s32.totalorder %s203, %s205
      %p212 = scmp.eq.s32.totalorder %s27, 1
      %p213 = por %p211, %p212
      %p214 = scmp.ne.s32.totalorder %s205, %s206
      %p215 = scmp.eq.s32.totalorder %s27, 0
      %p216 = por %p214, %p215
      %p217 = scmp.ne.s32.totalorder %s205, %s206
      %p218 = scmp.eq.s32.totalorder %s28, 1
      %p219 = por %p217, %p218
      %p221 = scmp.ne.s32.totalorder %s206, %s220
      %p222 = scmp.eq.s32.totalorder %s28, 0
      %p223 = por %p221, %p222
      %s224 = ssub.s32 %s22, %s29
      %p225 = scmp.eq.s32.totalorder %s224, 0
      %s227 = sadd.s32 %s226, 1
      %s228 = scalar_select %p225, %s226, %s227
      %p231 = pneg %p225
      %p232 = scmp.eq.s32.totalorder %s22, 1
      %p233 = por %p231, %p232
      %p234 = scmp.ne.s32.totalorder %s226, %s229
      %p235 = scmp.eq.s32.totalorder %s22, 0
      %p236 = por %p234, %p235
      %p237 = scmp.ne.s32.totalorder %s226, %s229
      %p238 = scmp.eq.s32.totalorder %s27, 1
      %p239 = por %p237, %p238
      %p240 = scmp.ne.s32.totalorder %s229, %s230
      %p241 = scmp.eq.s32.totalorder %s27, 0
      %p242 = por %p240, %p241
      %p243 = scmp.ne.s32.totalorder %s229, %s230
      %p244 = scmp.eq.s32.totalorder %s28, 1
      %p245 = por %p243, %p244
      %p247 = scmp.ne.s32.totalorder %s230, %s246
      %p248 = scmp.eq.s32.totalorder %s28, 0
      %p249 = por %p247, %p248
      %p250 = scmp.le.s32.totalorder 1, %s22
      %p251 = scmp.lt.s32.totalorder %s22, 3
      %p252 = pnand %p250, %p251
      %p253 = pneg %p252
      // Predicated region
      $region9: #{tpu_custom_call.1} parent=5 // pred_check
        _
      $region10: #{tpu_custom_call.1} parent=5 // pred_check_branch
        %255 = sbr.rel (%p252) target = $region12
      $region11: #{tpu_custom_call.1} parent=5 // pred_region
        %s256 = ssub.s32 %s22, 1
        // Predicated region
        $region13: #{tpu_custom_call.1} parent=11 // pred_check
          %p257 = pneg %p69
        $region14: #{tpu_custom_call.1} parent=11 // pred_check_branch
          %259 = sbr.rel (%p257) target = $region16
        $region15: #{tpu_custom_call.1} parent=11 // pred_region
          %261 = vsyncadd [#allocation6], 0
          %s262 = sshll.u32 %s1, 4
          %s263 = int_to_ptr.hbm [resolvable:$true] %s262
          %s264 = sshll.u32 [#allocation5], 4
          %s265 = int_to_ptr.vmem [resolvable:$true] %s264
          %270 = dma.hbm_to_vmem [thread:$0]  %s263, 16384, %s265, [#allocation6], 128, 128, 8
        $region16: #{tpu_custom_call.1} parent=11 // pred_fallthru
          _
        // Predicated region
        $region17: #{tpu_custom_call.1} parent=11 // pred_check
          %p271 = pneg %p90
        $region18: #{tpu_custom_call.1} parent=11 // pred_check_branch
          %273 = sbr.rel (%p271) target = $region20
        $region19: #{tpu_custom_call.1} parent=11 // pred_region
          _
        $region20: #{tpu_custom_call.1} parent=11 // pred_fallthru
          _
        // Predicated region
        $region21: #{tpu_custom_call.1} parent=11 // pred_check
          %p274 = pneg %p111
        $region22: #{tpu_custom_call.1} parent=11 // pred_check_branch
          %276 = sbr.rel (%p274) target = $region24
        $region23: #{tpu_custom_call.1} parent=11 // pred_region
          %278 = vsyncadd [#allocation6], 0
          %s279 = sshll.u32 %s3, 4
          %s280 = int_to_ptr.hbm [resolvable:$true] %s279
          %s281 = sshll.u32 [#allocation7], 4
          %s282 = int_to_ptr.vmem [resolvable:$true] %s281
          %287 = dma.hbm_to_vmem [thread:$0]  %s280, 2048, %s282, [#allocation6], 64, 64, 4
        $region24: #{tpu_custom_call.1} parent=11 // pred_fallthru
          _
        // Predicated region
        $region25: #{tpu_custom_call.1} parent=11 // pred_check
          %p288 = pneg %p132
        $region26: #{tpu_custom_call.1} parent=11 // pred_check_branch
          %290 = sbr.rel (%p288) target = $region28
        $region27: #{tpu_custom_call.1} parent=11 // pred_region
          _
        $region28: #{tpu_custom_call.1} parent=11 // pred_fallthru
          _
        // Predicated region
        $region29: #{tpu_custom_call.1} parent=11 // pred_check
          %p291 = pneg %p153
        $region30: #{tpu_custom_call.1} parent=11 // pred_check_branch
          %293 = sbr.rel (%p291) target = $region32
        $region31: #{tpu_custom_call.1} parent=11 // pred_region
          _
        $region32: #{tpu_custom_call.1} parent=11 // pred_fallthru
          _
        // Predicated region
        $region33: #{tpu_custom_call.1} parent=11 // pred_check
          %p294 = pneg %p174
        $region34: #{tpu_custom_call.1} parent=11 // pred_check_branch
          %296 = sbr.rel (%p294) target = $region36
        $region35: #{tpu_custom_call.1} parent=11 // pred_region
          _
        $region36: #{tpu_custom_call.1} parent=11 // pred_fallthru
          _
        // Predicated region
        $region37: #{tpu_custom_call.1} parent=11 // pred_check
          %p297 = pneg %p195
        $region38: #{tpu_custom_call.1} parent=11 // pred_check_branch
          %299 = sbr.rel (%p297) target = $region40
        $region39: #{tpu_custom_call.1} parent=11 // pred_region
          _
        $region40: #{tpu_custom_call.1} parent=11 // pred_fallthru
          _
        // Predicated region
        $region41: #{tpu_custom_call.1} parent=11 // pred_check
          %p300 = pneg %p216
        $region42: #{tpu_custom_call.1} parent=11 // pred_check_branch
          %302 = sbr.rel (%p300) target = $region44
        $region43: #{tpu_custom_call.1} parent=11 // pred_region
          _
        $region44: #{tpu_custom_call.1} parent=11 // pred_fallthru
          _
      $region12: #{tpu_custom_call.1} parent=5 // pred_fallthru
        _
      %p303 = scmp.lt.s32.totalorder %s22, 2
      // Predicated region
      $region45: #{tpu_custom_call.1} parent=5 // pred_check
        %p304 = pneg %p303
      $region46: #{tpu_custom_call.1} parent=5 // pred_check_branch
        %306 = sbr.rel (%p304) target = $region48
      $region47: #{tpu_custom_call.1} parent=5 // pred_region
        // Predicated region
        $region49: #{tpu_custom_call.1} parent=47 // pred_check
          %p307 = pneg %p42
        $region50: #{tpu_custom_call.1} parent=47 // pred_check_branch
          %309 = sbr.rel (%p307) target = $region52
        $region51: #{tpu_custom_call.1} parent=47 // pred_region
          %s310 = sand.u32 %s32, 1
          %s311 = scalar_lea.sflag [#allocation3], %s310
          %s312 = sand.u32 %s32, 1
          %s313 = smul.addr %s312, 64
          %s314 = scalar_lea.vmem [#allocation2], %s313
          %s315 = smul.u32 2, %s22
          %317 = vsyncadd %s311, 0
          %s318 = smul.addr %s315, 8
          %s319 = smul.addr %s318, 4
          %s320 = scalar_lea.hbm %s0, %s319
          %s321 = sshll.u32 %s320, 4
          %s322 = int_to_ptr.hbm [resolvable:$true] %s321
          %s323 = sshll.u32 %s314, 4
          %s324 = int_to_ptr.vmem [resolvable:$true] %s323
          %329 = dma.hbm_to_vmem [thread:$0]  %s322, 1024, %s324, %s311, 512, 512, 32
        $region52: #{tpu_custom_call.1} parent=47 // pred_fallthru
          _
      $region48: #{tpu_custom_call.1} parent=5 // pred_fallthru
        _
      %p330 = scmp.le.s32.totalorder 1, %s22
      %p331 = scmp.lt.s32.totalorder %s22, 3
      %p332 = pnand %p330, %p331
      %p333 = pneg %p332
      // Predicated region
      $region53: #{tpu_custom_call.1} parent=5 // pred_check
        _
      $region54: #{tpu_custom_call.1} parent=5 // pred_check_branch
        %335 = sbr.rel (%p332) target = $region56
      $region55: #{tpu_custom_call.1} parent=5 // pred_region
        %s336 = ssub.s32 %s22, 1
        %s337 = sand.u32 %s35, 1
        %s338 = scalar_lea.sflag [#allocation3], %s337
        %s339 = sand.u32 %s35, 1
        %s340 = smul.addr %s339, 64
        %s341 = scalar_lea.vmem [#allocation2], %s340
        // Predicated region
        $region57: #{tpu_custom_call.1} parent=55 // pred_check
          %p342 = pneg %p48
        $region58: #{tpu_custom_call.1} parent=55 // pred_check_branch
          %344 = sbr.rel (%p342) target = $region60
        $region59: #{tpu_custom_call.1} parent=55 // pred_region
          %346 = dma.done %s338, 1024
        $region60: #{tpu_custom_call.1} parent=55 // pred_fallthru
          _
        // Predicated region
        $region61: #{tpu_custom_call.1} parent=55 // pred_check
          %p347 = pneg %p69
        $region62: #{tpu_custom_call.1} parent=55 // pred_check_branch
          %349 = sbr.rel (%p347) target = $region64
        $region63: #{tpu_custom_call.1} parent=55 // pred_region
          %351 = dma.done [#allocation6], 16384
        $region64: #{tpu_custom_call.1} parent=55 // pred_fallthru
          _
        // Predicated region
        $region65: #{tpu_custom_call.1} parent=55 // pred_check
          %p352 = pneg %p111
        $region66: #{tpu_custom_call.1} parent=55 // pred_check_branch
          %354 = sbr.rel (%p352) target = $region68
        $region67: #{tpu_custom_call.1} parent=55 // pred_region
          %356 = dma.done [#allocation6], 2048
        $region68: #{tpu_custom_call.1} parent=55 // pred_fallthru
          _
        %s357 = sand.u32 %s35, 1
        %s358 = scalar_lea.sflag [#allocation3], %s357
        %s359 = sand.u32 %s35, 1
        %s360 = smul.addr %s359, 64
        %s361 = scalar_lea.vmem [#allocation2], %s360
        %p362 = pneg %p48
        %p363 = pneg %p45
        %p364 = pneg %p69
        %p365 = pneg %p66
        %p366 = pneg %p90
        %p367 = pneg %p87
        %p368 = pneg %p111
        %p369 = pneg %p108
        %p370 = pneg %p132
        %p371 = pneg %p129
        %p372 = pneg %p153
        %p373 = pneg %p150
        %p374 = pneg %p174
        %p375 = pneg %p171
        %p376 = pneg %p195
        %p377 = pneg %p192
        %p378 = pneg %p216
        %p379 = pneg %p213
        %p380 = pneg %p242
        %p381 = pneg %p239
        %s382 = sand.u32 %s229, 1
        %s383 = scalar_lea.sflag [#allocation4], %s382
        %s384 = sand.u32 %s229, 1
        %s385 = smul.addr %s384, 16
        %s386 = scalar_lea.vmem [#allocation8], %s385
        %s387 = smul.u32 2, %s27
        %s388 = smul.u32 2, %s27
        %v390 = vld [vmem:[%s341] sm:$0xff]
        %v391 = vld [vmem:[%s341 + $0x8] sm:$0xff]
        %v392 = vld [vmem:[%s341 + $0x10] sm:$0xff]
        %v393 = vld [vmem:[%s341 + $0x18] sm:$0xff]
        %v394 = vld [vmem:[%s341 + $0x20] sm:$0xff]
        %v395 = vld [vmem:[%s341 + $0x28] sm:$0xff]
        %v396 = vld [vmem:[%s341 + $0x30] sm:$0xff]
        %v397 = vld [vmem:[%s341 + $0x38] sm:$0xff]
        %v398 = vld [vmem:[#allocation5] sm:$0xff]
        %v399 = vld [vmem:[#allocation5 + $0x8] sm:$0xff]
        %v400 = vld [vmem:[#allocation5 + $0x10] sm:$0xff]
        %v401 = vld [vmem:[#allocation5 + $0x18] sm:$0xff]
        %v402 = vld [vmem:[#allocation5 + $0x20] sm:$0xff]
        %v403 = vld [vmem:[#allocation5 + $0x28] sm:$0xff]
        %v404 = vld [vmem:[#allocation5 + $0x30] sm:$0xff]
        %v405 = vld [vmem:[#allocation5 + $0x38] sm:$0xff]
        %v406 = vld [vmem:[#allocation5 + $0x40] sm:$0xff]
        %v407 = vld [vmem:[#allocation5 + $0x48] sm:$0xff]
        %v408 = vld [vmem:[#allocation5 + $0x50] sm:$0xff]
        %v409 = vld [vmem:[#allocation5 + $0x58] sm:$0xff]
        %v410 = vld [vmem:[#allocation5 + $0x60] sm:$0xff]
        %v411 = vld [vmem:[#allocation5 + $0x68] sm:$0xff]
        %v412 = vld [vmem:[#allocation5 + $0x70] sm:$0xff]
        %v413 = vld [vmem:[#allocation5 + $0x78] sm:$0xff]
        %v414 = vld [vmem:[#allocation5 + $0x80] sm:$0xff]
        %v415 = vld [vmem:[#allocation5 + $0x88] sm:$0xff]
        %v416 = vld [vmem:[#allocation5 + $0x90] sm:$0xff]
        %v417 = vld [vmem:[#allocation5 + $0x98] sm:$0xff]
        %v418 = vld [vmem:[#allocation5 + $0xa0] sm:$0xff]
        %v419 = vld [vmem:[#allocation5 + $0xa8] sm:$0xff]
        %v420 = vld [vmem:[#allocation5 + $0xb0] sm:$0xff]
        %v421 = vld [vmem:[#allocation5 + $0xb8] sm:$0xff]
        %v422 = vld [vmem:[#allocation5 + $0xc0] sm:$0xff]
        %v423 = vld [vmem:[#allocation5 + $0xc8] sm:$0xff]
        %v424 = vld [vmem:[#allocation5 + $0xd0] sm:$0xff]
        %v425 = vld [vmem:[#allocation5 + $0xd8] sm:$0xff]
        %v426 = vld [vmem:[#allocation5 + $0xe0] sm:$0xff]
        %v427 = vld [vmem:[#allocation5 + $0xe8] sm:$0xff]
        %v428 = vld [vmem:[#allocation5 + $0xf0] sm:$0xff]
        %v429 = vld [vmem:[#allocation5 + $0xf8] sm:$0xff]
        %v430 = vld [vmem:[#allocation5 + $0x100] sm:$0xff]
        %v431 = vld [vmem:[#allocation5 + $0x108] sm:$0xff]
        %v432 = vld [vmem:[#allocation5 + $0x110] sm:$0xff]
        %v433 = vld [vmem:[#allocation5 + $0x118] sm:$0xff]
        %v434 = vld [vmem:[#allocation5 + $0x120] sm:$0xff]
        %v435 = vld [vmem:[#allocation5 + $0x128] sm:$0xff]
        %v436 = vld [vmem:[#allocation5 + $0x130] sm:$0xff]
        %v437 = vld [vmem:[#allocation5 + $0x138] sm:$0xff]
        %v438 = vld [vmem:[#allocation5 + $0x140] sm:$0xff]
        %v439 = vld [vmem:[#allocation5 + $0x148] sm:$0xff]
        %v440 = vld [vmem:[#allocation5 + $0x150] sm:$0xff]
        %v441 = vld [vmem:[#allocation5 + $0x158] sm:$0xff]
        %v442 = vld [vmem:[#allocation5 + $0x160] sm:$0xff]
        %v443 = vld [vmem:[#allocation5 + $0x168] sm:$0xff]
        %v444 = vld [vmem:[#allocation5 + $0x170] sm:$0xff]
        %v445 = vld [vmem:[#allocation5 + $0x178] sm:$0xff]
        %v446 = vld [vmem:[#allocation5 + $0x180] sm:$0xff]
        %v447 = vld [vmem:[#allocation5 + $0x188] sm:$0xff]
        %v448 = vld [vmem:[#allocation5 + $0x190] sm:$0xff]
        %v449 = vld [vmem:[#allocation5 + $0x198] sm:$0xff]
        %v450 = vld [vmem:[#allocation5 + $0x1a0] sm:$0xff]
        %v451 = vld [vmem:[#allocation5 + $0x1a8] sm:$0xff]
        %v452 = vld [vmem:[#allocation5 + $0x1b0] sm:$0xff]
        %v453 = vld [vmem:[#allocation5 + $0x1b8] sm:$0xff]
        %v454 = vld [vmem:[#allocation5 + $0x1c0] sm:$0xff]
        %v455 = vld [vmem:[#allocation5 + $0x1c8] sm:$0xff]
        %v456 = vld [vmem:[#allocation5 + $0x1d0] sm:$0xff]
        %v457 = vld [vmem:[#allocation5 + $0x1d8] sm:$0xff]
        %v458 = vld [vmem:[#allocation5 + $0x1e0] sm:$0xff]
        %v459 = vld [vmem:[#allocation5 + $0x1e8] sm:$0xff]
        %v460 = vld [vmem:[#allocation5 + $0x1f0] sm:$0xff]
        %v461 = vld [vmem:[#allocation5 + $0x1f8] sm:$0xff]
        %v462 = vld [vmem:[#allocation5 + $0x200] sm:$0xff]
        %v463 = vld [vmem:[#allocation5 + $0x208] sm:$0xff]
        %v464 = vld [vmem:[#allocation5 + $0x210] sm:$0xff]
        %v465 = vld [vmem:[#allocation5 + $0x218] sm:$0xff]
        %v466 = vld [vmem:[#allocation5 + $0x220] sm:$0xff]
        %v467 = vld [vmem:[#allocation5 + $0x228] sm:$0xff]
        %v468 = vld [vmem:[#allocation5 + $0x230] sm:$0xff]
        %v469 = vld [vmem:[#allocation5 + $0x238] sm:$0xff]
        %v470 = vld [vmem:[#allocation5 + $0x240] sm:$0xff]
        %v471 = vld [vmem:[#allocation5 + $0x248] sm:$0xff]
        %v472 = vld [vmem:[#allocation5 + $0x250] sm:$0xff]
        %v473 = vld [vmem:[#allocation5 + $0x258] sm:$0xff]
        %v474 = vld [vmem:[#allocation5 + $0x260] sm:$0xff]
        %v475 = vld [vmem:[#allocation5 + $0x268] sm:$0xff]
        %v476 = vld [vmem:[#allocation5 + $0x270] sm:$0xff]
        %v477 = vld [vmem:[#allocation5 + $0x278] sm:$0xff]
        %v478 = vld [vmem:[#allocation5 + $0x280] sm:$0xff]
        %v479 = vld [vmem:[#allocation5 + $0x288] sm:$0xff]
        %v480 = vld [vmem:[#allocation5 + $0x290] sm:$0xff]
        %v481 = vld [vmem:[#allocation5 + $0x298] sm:$0xff]
        %v482 = vld [vmem:[#allocation5 + $0x2a0] sm:$0xff]
        %v483 = vld [vmem:[#allocation5 + $0x2a8] sm:$0xff]
        %v484 = vld [vmem:[#allocation5 + $0x2b0] sm:$0xff]
        %v485 = vld [vmem:[#allocation5 + $0x2b8] sm:$0xff]
        %v486 = vld [vmem:[#allocation5 + $0x2c0] sm:$0xff]
        %v487 = vld [vmem:[#allocation5 + $0x2c8] sm:$0xff]
        %v488 = vld [vmem:[#allocation5 + $0x2d0] sm:$0xff]
        %v489 = vld [vmem:[#allocation5 + $0x2d8] sm:$0xff]
        %v490 = vld [vmem:[#allocation5 + $0x2e0] sm:$0xff]
        %v491 = vld [vmem:[#allocation5 + $0x2e8] sm:$0xff]
        %v492 = vld [vmem:[#allocation5 + $0x2f0] sm:$0xff]
        %v493 = vld [vmem:[#allocation5 + $0x2f8] sm:$0xff]
        %v494 = vld [vmem:[#allocation5 + $0x300] sm:$0xff]
        %v495 = vld [vmem:[#allocation5 + $0x308] sm:$0xff]
        %v496 = vld [vmem:[#allocation5 + $0x310] sm:$0xff]
        %v497 = vld [vmem:[#allocation5 + $0x318] sm:$0xff]
        %v498 = vld [vmem:[#allocation5 + $0x320] sm:$0xff]
        %v499 = vld [vmem:[#allocation5 + $0x328] sm:$0xff]
        %v500 = vld [vmem:[#allocation5 + $0x330] sm:$0xff]
        %v501 = vld [vmem:[#allocation5 + $0x338] sm:$0xff]
        %v502 = vld [vmem:[#allocation5 + $0x340] sm:$0xff]
        %v503 = vld [vmem:[#allocation5 + $0x348] sm:$0xff]
        %v504 = vld [vmem:[#allocation5 + $0x350] sm:$0xff]
        %v505 = vld [vmem:[#allocation5 + $0x358] sm:$0xff]
        %v506 = vld [vmem:[#allocation5 + $0x360] sm:$0xff]
        %v507 = vld [vmem:[#allocation5 + $0x368] sm:$0xff]
        %v508 = vld [vmem:[#allocation5 + $0x370] sm:$0xff]
        %v509 = vld [vmem:[#allocation5 + $0x378] sm:$0xff]
        %v510 = vld [vmem:[#allocation5 + $0x380] sm:$0xff]
        %v511 = vld [vmem:[#allocation5 + $0x388] sm:$0xff]
        %v512 = vld [vmem:[#allocation5 + $0x390] sm:$0xff]
        %v513 = vld [vmem:[#allocation5 + $0x398] sm:$0xff]
        %v514 = vld [vmem:[#allocation5 + $0x3a0] sm:$0xff]
        %v515 = vld [vmem:[#allocation5 + $0x3a8] sm:$0xff]
        %v516 = vld [vmem:[#allocation5 + $0x3b0] sm:$0xff]
        %v517 = vld [vmem:[#allocation5 + $0x3b8] sm:$0xff]
        %v518 = vld [vmem:[#allocation5 + $0x3c0] sm:$0xff]
        %v519 = vld [vmem:[#allocation5 + $0x3c8] sm:$0xff]
        %v520 = vld [vmem:[#allocation5 + $0x3d0] sm:$0xff]
        %v521 = vld [vmem:[#allocation5 + $0x3d8] sm:$0xff]
        %v522 = vld [vmem:[#allocation5 + $0x3e0] sm:$0xff]
        %v523 = vld [vmem:[#allocation5 + $0x3e8] sm:$0xff]
        %v524 = vld [vmem:[#allocation5 + $0x3f0] sm:$0xff]
        %v525 = vld [vmem:[#allocation5 + $0x3f8] sm:$0xff]
        %v526 = vld [vmem:[%s2] sm:$0x3]
        %v528 = vperm.slane %v526, 0
        %v529 = vperm.slane %v526, 1
        %v540 = vunpack.c.l.b16 %v390
        %v541 = vunpack.c.h.b16 %v390
        %v542 = vunpack.c.l.b16 %v391
        %v543 = vunpack.c.h.b16 %v391
        %v544 = vunpack.c.l.b16 %v392
        %v545 = vunpack.c.h.b16 %v392
        %v546 = vunpack.c.l.b16 %v393
        %v547 = vunpack.c.h.b16 %v393
        %v548 = vunpack.c.l.b16 %v394
        %v549 = vunpack.c.h.b16 %v394
        %v550 = vunpack.c.l.b16 %v395
        %v551 = vunpack.c.h.b16 %v395
        %v552 = vunpack.c.l.b16 %v396
        %v553 = vunpack.c.h.b16 %v396
        %v554 = vunpack.c.l.b16 %v397
        %v555 = vunpack.c.h.b16 %v397
        %v556 = vpack.c.b16 %v548, %v540
        %v557 = vpack.c.b16 %v549, %v541
        %v558 = vpack.c.b16 %v550, %v542
        %v559 = vpack.c.b16 %v551, %v543
        %v560 = vpack.c.b16 %v552, %v544
        %v561 = vpack.c.b16 %v553, %v545
        %v562 = vpack.c.b16 %v554, %v546
        %v563 = vpack.c.b16 %v555, %v547
        %v700 = vunpack.c.l.b16 %v398
        %v701 = vunpack.c.h.b16 %v398
        %v702 = vunpack.c.l.b16 %v399
        %v703 = vunpack.c.h.b16 %v399
        %v704 = vunpack.c.l.b16 %v400
        %v705 = vunpack.c.h.b16 %v400
        %v706 = vunpack.c.l.b16 %v401
        %v707 = vunpack.c.h.b16 %v401
        %v708 = vunpack.c.l.b16 %v402
        %v709 = vunpack.c.h.b16 %v402
        %v710 = vunpack.c.l.b16 %v403
        %v711 = vunpack.c.h.b16 %v403
        %v712 = vunpack.c.l.b16 %v404
        %v713 = vunpack.c.h.b16 %v404
        %v714 = vunpack.c.l.b16 %v405
        %v715 = vunpack.c.h.b16 %v405
        %v716 = vunpack.c.l.b16 %v406
        %v717 = vunpack.c.h.b16 %v406
        %v718 = vunpack.c.l.b16 %v407
        %v719 = vunpack.c.h.b16 %v407
        %v720 = vunpack.c.l.b16 %v408
        %v721 = vunpack.c.h.b16 %v408
        %v722 = vunpack.c.l.b16 %v409
        %v723 = vunpack.c.h.b16 %v409
        %v724 = vunpack.c.l.b16 %v410
        %v725 = vunpack.c.h.b16 %v410
        %v726 = vunpack.c.l.b16 %v411
        %v727 = vunpack.c.h.b16 %v411
        %v728 = vunpack.c.l.b16 %v412
        %v729 = vunpack.c.h.b16 %v412
        %v730 = vunpack.c.l.b16 %v413
        %v731 = vunpack.c.h.b16 %v413
        %v732 = vunpack.c.l.b16 %v414
        %v733 = vunpack.c.h.b16 %v414
        %v734 = vunpack.c.l.b16 %v415
        %v735 = vunpack.c.h.b16 %v415
        %v736 = vunpack.c.l.b16 %v416
        %v737 = vunpack.c.h.b16 %v416
        %v738 = vunpack.c.l.b16 %v417
        %v739 = vunpack.c.h.b16 %v417
        %v740 = vunpack.c.l.b16 %v418
        %v741 = vunpack.c.h.b16 %v418
        %v742 = vunpack.c.l.b16 %v419
        %v743 = vunpack.c.h.b16 %v419
        %v744 = vunpack.c.l.b16 %v420
        %v745 = vunpack.c.h.b16 %v420
        %v746 = vunpack.c.l.b16 %v421
        %v747 = vunpack.c.h.b16 %v421
        %v748 = vunpack.c.l.b16 %v422
        %v749 = vunpack.c.h.b16 %v422
        %v750 = vunpack.c.l.b16 %v423
        %v751 = vunpack.c.h.b16 %v423
        %v752 = vunpack.c.l.b16 %v424
        %v753 = vunpack.c.h.b16 %v424
        %v754 = vunpack.c.l.b16 %v425
        %v755 = vunpack.c.h.b16 %v425
        %v756 = vunpack.c.l.b16 %v426
        %v757 = vunpack.c.h.b16 %v426
        %v758 = vunpack.c.l.b16 %v427
        %v759 = vunpack.c.h.b16 %v427
        %v760 = vunpack.c.l.b16 %v428
        %v761 = vunpack.c.h.b16 %v428
        %v762 = vunpack.c.l.b16 %v429
        %v763 = vunpack.c.h.b16 %v429
        %v764 = vunpack.c.l.b16 %v430
        %v765 = vunpack.c.h.b16 %v430
        %v766 = vunpack.c.l.b16 %v431
        %v767 = vunpack.c.h.b16 %v431
        %v768 = vunpack.c.l.b16 %v432
        %v769 = vunpack.c.h.b16 %v432
        %v770 = vunpack.c.l.b16 %v433
        %v771 = vunpack.c.h.b16 %v433
        %v772 = vunpack.c.l.b16 %v434
        %v773 = vunpack.c.h.b16 %v434
        %v774 = vunpack.c.l.b16 %v435
        %v775 = vunpack.c.h.b16 %v435
        %v776 = vunpack.c.l.b16 %v436
        %v777 = vunpack.c.h.b16 %v436
        %v778 = vunpack.c.l.b16 %v437
        %v779 = vunpack.c.h.b16 %v437
        %v780 = vunpack.c.l.b16 %v438
        %v781 = vunpack.c.h.b16 %v438
        %v782 = vunpack.c.l.b16 %v439
        %v783 = vunpack.c.h.b16 %v439
        %v784 = vunpack.c.l.b16 %v440
        %v785 = vunpack.c.h.b16 %v440
        %v786 = vunpack.c.l.b16 %v441
        %v787 = vunpack.c.h.b16 %v441
        %v788 = vunpack.c.l.b16 %v442
        %v789 = vunpack.c.h.b16 %v442
        %v790 = vunpack.c.l.b16 %v443
        %v791 = vunpack.c.h.b16 %v443
        %v792 = vunpack.c.l.b16 %v444
        %v793 = vunpack.c.h.b16 %v444
        %v794 = vunpack.c.l.b16 %v445
        %v795 = vunpack.c.h.b16 %v445
        %v796 = vunpack.c.l.b16 %v446
        %v797 = vunpack.c.h.b16 %v446
        %v798 = vunpack.c.l.b16 %v447
        %v799 = vunpack.c.h.b16 %v447
        %v800 = vunpack.c.l.b16 %v448
        %v801 = vunpack.c.h.b16 %v448
        %v802 = vunpack.c.l.b16 %v449
        %v803 = vunpack.c.h.b16 %v449
        %v804 = vunpack.c.l.b16 %v450
        %v805 = vunpack.c.h.b16 %v450
        %v806 = vunpack.c.l.b16 %v451
        %v807 = vunpack.c.h.b16 %v451
        %v808 = vunpack.c.l.b16 %v452
        %v809 = vunpack.c.h.b16 %v452
        %v810 = vunpack.c.l.b16 %v453
        %v811 = vunpack.c.h.b16 %v453
        %v812 = vunpack.c.l.b16 %v454
        %v813 = vunpack.c.h.b16 %v454
        %v814 = vunpack.c.l.b16 %v455
        %v815 = vunpack.c.h.b16 %v455
        %v816 = vunpack.c.l.b16 %v456
        %v817 = vunpack.c.h.b16 %v456
        %v818 = vunpack.c.l.b16 %v457
        %v819 = vunpack.c.h.b16 %v457
        %v820 = vunpack.c.l.b16 %v458
        %v821 = vunpack.c.h.b16 %v458
        %v822 = vunpack.c.l.b16 %v459
        %v823 = vunpack.c.h.b16 %v459
        %v824 = vunpack.c.l.b16 %v460
        %v825 = vunpack.c.h.b16 %v460
        %v826 = vunpack.c.l.b16 %v461
        %v827 = vunpack.c.h.b16 %v461
        %v828 = vunpack.c.l.b16 %v462
        %v829 = vunpack.c.h.b16 %v462
        %v830 = vunpack.c.l.b16 %v463
        %v831 = vunpack.c.h.b16 %v463
        %v832 = vunpack.c.l.b16 %v464
        %v833 = vunpack.c.h.b16 %v464
        %v834 = vunpack.c.l.b16 %v465
        %v835 = vunpack.c.h.b16 %v465
        %v836 = vunpack.c.l.b16 %v466
        %v837 = vunpack.c.h.b16 %v466
        %v838 = vunpack.c.l.b16 %v467
        %v839 = vunpack.c.h.b16 %v467
        %v840 = vunpack.c.l.b16 %v468
        %v841 = vunpack.c.h.b16 %v468
        %v842 = vunpack.c.l.b16 %v469
        %v843 = vunpack.c.h.b16 %v469
        %v844 = vunpack.c.l.b16 %v470
        %v845 = vunpack.c.h.b16 %v470
        %v846 = vunpack.c.l.b16 %v471
        %v847 = vunpack.c.h.b16 %v471
        %v848 = vunpack.c.l.b16 %v472
        %v849 = vunpack.c.h.b16 %v472
        %v850 = vunpack.c.l.b16 %v473
        %v851 = vunpack.c.h.b16 %v473
        %v852 = vunpack.c.l.b16 %v474
        %v853 = vunpack.c.h.b16 %v474
        %v854 = vunpack.c.l.b16 %v475
        %v855 = vunpack.c.h.b16 %v475
        %v856 = vunpack.c.l.b16 %v476
        %v857 = vunpack.c.h.b16 %v476
        %v858 = vunpack.c.l.b16 %v477
        %v859 = vunpack.c.h.b16 %v477
        %v860 = vunpack.c.l.b16 %v478
        %v861 = vunpack.c.h.b16 %v478
        %v862 = vunpack.c.l.b16 %v479
        %v863 = vunpack.c.h.b16 %v479
        %v864 = vunpack.c.l.b16 %v480
        %v865 = vunpack.c.h.b16 %v480
        %v866 = vunpack.c.l.b16 %v481
        %v867 = vunpack.c.h.b16 %v481
        %v868 = vunpack.c.l.b16 %v482
        %v869 = vunpack.c.h.b16 %v482
        %v870 = vunpack.c.l.b16 %v483
        %v871 = vunpack.c.h.b16 %v483
        %v872 = vunpack.c.l.b16 %v484
        %v873 = vunpack.c.h.b16 %v484
        %v874 = vunpack.c.l.b16 %v485
        %v875 = vunpack.c.h.b16 %v485
        %v876 = vunpack.c.l.b16 %v486
        %v877 = vunpack.c.h.b16 %v486
        %v878 = vunpack.c.l.b16 %v487
        %v879 = vunpack.c.h.b16 %v487
        %v880 = vunpack.c.l.b16 %v488
        %v881 = vunpack.c.h.b16 %v488
        %v882 = vunpack.c.l.b16 %v489
        %v883 = vunpack.c.h.b16 %v489
        %v884 = vunpack.c.l.b16 %v490
        %v885 = vunpack.c.h.b16 %v490
        %v886 = vunpack.c.l.b16 %v491
        %v887 = vunpack.c.h.b16 %v491
        %v888 = vunpack.c.l.b16 %v492
        %v889 = vunpack.c.h.b16 %v492
        %v890 = vunpack.c.l.b16 %v493
        %v891 = vunpack.c.h.b16 %v493
        %v892 = vunpack.c.l.b16 %v494
        %v893 = vunpack.c.h.b16 %v494
        %v894 = vunpack.c.l.b16 %v495
        %v895 = vunpack.c.h.b16 %v495
        %v896 = vunpack.c.l.b16 %v496
        %v897 = vunpack.c.h.b16 %v496
        %v898 = vunpack.c.l.b16 %v497
        %v899 = vunpack.c.h.b16 %v497
        %v900 = vunpack.c.l.b16 %v498
        %v901 = vunpack.c.h.b16 %v498
        %v902 = vunpack.c.l.b16 %v499
        %v903 = vunpack.c.h.b16 %v499
        %v904 = vunpack.c.l.b16 %v500
        %v905 = vunpack.c.h.b16 %v500
        %v906 = vunpack.c.l.b16 %v501
        %v907 = vunpack.c.h.b16 %v501
        %v908 = vunpack.c.l.b16 %v502
        %v909 = vunpack.c.h.b16 %v502
        %v910 = vunpack.c.l.b16 %v503
        %v911 = vunpack.c.h.b16 %v503
        %v912 = vunpack.c.l.b16 %v504
        %v913 = vunpack.c.h.b16 %v504
        %v914 = vunpack.c.l.b16 %v505
        %v915 = vunpack.c.h.b16 %v505
        %v916 = vunpack.c.l.b16 %v506
        %v917 = vunpack.c.h.b16 %v506
        %v918 = vunpack.c.l.b16 %v507
        %v919 = vunpack.c.h.b16 %v507
        %v920 = vunpack.c.l.b16 %v508
        %v921 = vunpack.c.h.b16 %v508
        %v922 = vunpack.c.l.b16 %v509
        %v923 = vunpack.c.h.b16 %v509
        %v924 = vunpack.c.l.b16 %v510
        %v925 = vunpack.c.h.b16 %v510
        %v926 = vunpack.c.l.b16 %v511
        %v927 = vunpack.c.h.b16 %v511
        %v928 = vunpack.c.l.b16 %v512
        %v929 = vunpack.c.h.b16 %v512
        %v930 = vunpack.c.l.b16 %v513
        %v931 = vunpack.c.h.b16 %v513
        %v932 = vunpack.c.l.b16 %v514
        %v933 = vunpack.c.h.b16 %v514
        %v934 = vunpack.c.l.b16 %v515
        %v935 = vunpack.c.h.b16 %v515
        %v936 = vunpack.c.l.b16 %v516
        %v937 = vunpack.c.h.b16 %v516
        %v938 = vunpack.c.l.b16 %v517
        %v939 = vunpack.c.h.b16 %v517
        %v940 = vunpack.c.l.b16 %v518
        %v941 = vunpack.c.h.b16 %v518
        %v942 = vunpack.c.l.b16 %v519
        %v943 = vunpack.c.h.b16 %v519
        %v944 = vunpack.c.l.b16 %v520
        %v945 = vunpack.c.h.b16 %v520
        %v946 = vunpack.c.l.b16 %v521
        %v947 = vunpack.c.h.b16 %v521
        %v948 = vunpack.c.l.b16 %v522
        %v949 = vunpack.c.h.b16 %v522
        %v950 = vunpack.c.l.b16 %v523
        %v951 = vunpack.c.h.b16 %v523
        %v952 = vunpack.c.l.b16 %v524
        %v953 = vunpack.c.h.b16 %v524
        %v954 = vunpack.c.l.b16 %v525
        %v955 = vunpack.c.h.b16 %v525
        %v956 = vpack.c.b16 %v702, %v700
        %v957 = vpack.c.b16 %v703, %v701
        %v958 = vpack.c.b16 %v706, %v704
        %v959 = vpack.c.b16 %v707, %v705
        %v960 = vpack.c.b16 %v710, %v708
        %v961 = vpack.c.b16 %v711, %v709
        %v962 = vpack.c.b16 %v714, %v712
        %v963 = vpack.c.b16 %v715, %v713
        %v964 = vpack.c.b16 %v718, %v716
        %v965 = vpack.c.b16 %v719, %v717
        %v966 = vpack.c.b16 %v722, %v720
        %v967 = vpack.c.b16 %v723, %v721
        %v968 = vpack.c.b16 %v726, %v724
        %v969 = vpack.c.b16 %v727, %v725
        %v970 = vpack.c.b16 %v730, %v728
        %v971 = vpack.c.b16 %v731, %v729
        %v972 = vpack.c.b16 %v734, %v732
        %v973 = vpack.c.b16 %v735, %v733
        %v974 = vpack.c.b16 %v738, %v736
        %v975 = vpack.c.b16 %v739, %v737
        %v976 = vpack.c.b16 %v742, %v740
        %v977 = vpack.c.b16 %v743, %v741
        %v978 = vpack.c.b16 %v746, %v744
        %v979 = vpack.c.b16 %v747, %v745
        %v980 = vpack.c.b16 %v750, %v748
        %v981 = vpack.c.b16 %v751, %v749
        %v982 = vpack.c.b16 %v754, %v752
        %v983 = vpack.c.b16 %v755, %v753
        %v984 = vpack.c.b16 %v758, %v756
        %v985 = vpack.c.b16 %v759, %v757
        %v986 = vpack.c.b16 %v762, %v760
        %v987 = vpack.c.b16 %v763, %v761
        %v988 = vpack.c.b16 %v766, %v764
        %v989 = vpack.c.b16 %v767, %v765
        %v990 = vpack.c.b16 %v770, %v768
        %v991 = vpack.c.b16 %v771, %v769
        %v992 = vpack.c.b16 %v774, %v772
        %v993 = vpack.c.b16 %v775, %v773
        %v994 = vpack.c.b16 %v778, %v776
        %v995 = vpack.c.b16 %v779, %v777
        %v996 = vpack.c.b16 %v782, %v780
        %v997 = vpack.c.b16 %v783, %v781
        %v998 = vpack.c.b16 %v786, %v784
        %v999 = vpack.c.b16 %v787, %v785
        %v1000 = vpack.c.b16 %v790, %v788
        %v1001 = vpack.c.b16 %v791, %v789
        %v1002 = vpack.c.b16 %v794, %v792
        %v1003 = vpack.c.b16 %v795, %v793
        %v1004 = vpack.c.b16 %v798, %v796
        %v1005 = vpack.c.b16 %v799, %v797
        %v1006 = vpack.c.b16 %v802, %v800
        %v1007 = vpack.c.b16 %v803, %v801
        %v1008 = vpack.c.b16 %v806, %v804
        %v1009 = vpack.c.b16 %v807, %v805
        %v1010 = vpack.c.b16 %v810, %v808
        %v1011 = vpack.c.b16 %v811, %v809
        %v1012 = vpack.c.b16 %v814, %v812
        %v1013 = vpack.c.b16 %v815, %v813
        %v1014 = vpack.c.b16 %v818, %v816
        %v1015 = vpack.c.b16 %v819, %v817
        %v1016 = vpack.c.b16 %v822, %v820
        %v1017 = vpack.c.b16 %v823, %v821
        %v1018 = vpack.c.b16 %v826, %v824
        %v1019 = vpack.c.b16 %v827, %v825
        %v1020 = vpack.c.b16 %v830, %v828
        %v1021 = vpack.c.b16 %v831, %v829
        %v1022 = vpack.c.b16 %v834, %v832
        %v1023 = vpack.c.b16 %v835, %v833
        %v1024 = vpack.c.b16 %v838, %v836
        %v1025 = vpack.c.b16 %v839, %v837
        %v1026 = vpack.c.b16 %v842, %v840
        %v1027 = vpack.c.b16 %v843, %v841
        %v1028 = vpack.c.b16 %v846, %v844
        %v1029 = vpack.c.b16 %v847, %v845
        %v1030 = vpack.c.b16 %v850, %v848
        %v1031 = vpack.c.b16 %v851, %v849
        %v1032 = vpack.c.b16 %v854, %v852
        %v1033 = vpack.c.b16 %v855, %v853
        %v1034 = vpack.c.b16 %v858, %v856
        %v1035 = vpack.c.b16 %v859, %v857
        %v1036 = vpack.c.b16 %v862, %v860
        %v1037 = vpack.c.b16 %v863, %v861
        %v1038 = vpack.c.b16 %v866, %v864
        %v1039 = vpack.c.b16 %v867, %v865
        %v1040 = vpack.c.b16 %v870, %v868
        %v1041 = vpack.c.b16 %v871, %v869
        %v1042 = vpack.c.b16 %v874, %v872
        %v1043 = vpack.c.b16 %v875, %v873
        %v1044 = vpack.c.b16 %v878, %v876
        %v1045 = vpack.c.b16 %v879, %v877
        %v1046 = vpack.c.b16 %v882, %v880
        %v1047 = vpack.c.b16 %v883, %v881
        %v1048 = vpack.c.b16 %v886, %v884
        %v1049 = vpack.c.b16 %v887, %v885
        %v1050 = vpack.c.b16 %v890, %v888
        %v1051 = vpack.c.b16 %v891, %v889
        %v1052 = vpack.c.b16 %v894, %v892
        %v1053 = vpack.c.b16 %v895, %v893
        %v1054 = vpack.c.b16 %v898, %v896
        %v1055 = vpack.c.b16 %v899, %v897
        %v1056 = vpack.c.b16 %v902, %v900
        %v1057 = vpack.c.b16 %v903, %v901
        %v1058 = vpack.c.b16 %v906, %v904
        %v1059 = vpack.c.b16 %v907, %v905
        %v1060 = vpack.c.b16 %v910, %v908
        %v1061 = vpack.c.b16 %v911, %v909
        %v1062 = vpack.c.b16 %v914, %v912
        %v1063 = vpack.c.b16 %v915, %v913
        %v1064 = vpack.c.b16 %v918, %v916
        %v1065 = vpack.c.b16 %v919, %v917
        %v1066 = vpack.c.b16 %v922, %v920
        %v1067 = vpack.c.b16 %v923, %v921
        %v1068 = vpack.c.b16 %v926, %v924
        %v1069 = vpack.c.b16 %v927, %v925
        %v1070 = vpack.c.b16 %v930, %v928
        %v1071 = vpack.c.b16 %v931, %v929
        %v1072 = vpack.c.b16 %v934, %v932
        %v1073 = vpack.c.b16 %v935, %v933
        %v1074 = vpack.c.b16 %v938, %v936
        %v1075 = vpack.c.b16 %v939, %v937
        %v1076 = vpack.c.b16 %v942, %v940
        %v1077 = vpack.c.b16 %v943, %v941
        %v1078 = vpack.c.b16 %v946, %v944
        %v1079 = vpack.c.b16 %v947, %v945
        %v1080 = vpack.c.b16 %v950, %v948
        %v1081 = vpack.c.b16 %v951, %v949
        %v1082 = vpack.c.b16 %v954, %v952
        %v1083 = vpack.c.b16 %v955, %v953
        %1212 = vmatpush.bf16.msra.mxu0 %v970
        %1213 = vmatpush.bf16.msra.mxu0 %v968
        %1214 = vmatpush.bf16.msra.mxu0 %v966
        %1215 = vmatpush.bf16.msra.mxu0 %v964
        %1216 = vmatpush.bf16.msra.mxu0 %v962
        %1217 = vmatpush.bf16.msra.mxu0 %v960
        %1218 = vmatpush.bf16.msra.mxu0 %v958
        %1219 = vmatpush.bf16.msra.mxu0 %v956
        %1220 = vmatmul.bf16.gmra.mxu0 %v556
        %v1221 = vpop.f32.mrf.mxu0
        %v1222 = vadd.f32 %v528, %v1221
        %v1223 = vpop.f32.mrf.mxu0
        %v1224 = vadd.f32 %v528, %v1223
        %1225 = vdwg.mxu0
        %1226 = vmatpush.bf16.msra.mxu0 %v986
        %1227 = vmatpush.bf16.msra.mxu0 %v984
        %1228 = vmatpush.bf16.msra.mxu0 %v982
        %1229 = vmatpush.bf16.msra.mxu0 %v980
        %1230 = vmatpush.bf16.msra.mxu0 %v978
        %1231 = vmatpush.bf16.msra.mxu0 %v976
        %1232 = vmatpush.bf16.msra.mxu0 %v974
        %1233 = vmatpush.bf16.msra.mxu0 %v972
        %1234 = vmatmul.bf16.gmra.mxu0 %v557
        %v1235 = vpop.f32.mrf.mxu0
        %v1236 = vadd.f32 %v1222, %v1235
        %v1237 = vpop.f32.mrf.mxu0
        %v1238 = vadd.f32 %v1224, %v1237
        %1239 = vdwg.mxu0
        %1240 = vmatpush.bf16.msra.mxu0 %v1002
        %1241 = vmatpush.bf16.msra.mxu0 %v1000
        %1242 = vmatpush.bf16.msra.mxu0 %v998
        %1243 = vmatpush.bf16.msra.mxu0 %v996
        %1244 = vmatpush.bf16.msra.mxu0 %v994
        %1245 = vmatpush.bf16.msra.mxu0 %v992
        %1246 = vmatpush.bf16.msra.mxu0 %v990
        %1247 = vmatpush.bf16.msra.mxu0 %v988
        %1248 = vmatmul.bf16.gmra.mxu0 %v558
        %v1249 = vpop.f32.mrf.mxu0
        %v1250 = vadd.f32 %v1236, %v1249
        %v1251 = vpop.f32.mrf.mxu0
        %v1252 = vadd.f32 %v1238, %v1251
        %1253 = vdwg.mxu0
        %1254 = vmatpush.bf16.msra.mxu0 %v1018
        %1255 = vmatpush.bf16.msra.mxu0 %v1016
        %1256 = vmatpush.bf16.msra.mxu0 %v1014
        %1257 = vmatpush.bf16.msra.mxu0 %v1012
        %1258 = vmatpush.bf16.msra.mxu0 %v1010
        %1259 = vmatpush.bf16.msra.mxu0 %v1008
        %1260 = vmatpush.bf16.msra.mxu0 %v1006
        %1261 = vmatpush.bf16.msra.mxu0 %v1004
        %1262 = vmatmul.bf16.gmra.mxu0 %v559
        %v1263 = vpop.f32.mrf.mxu0
        %v1264 = vadd.f32 %v1250, %v1263
        %v1265 = vpop.f32.mrf.mxu0
        %v1266 = vadd.f32 %v1252, %v1265
        %1267 = vdwg.mxu0
        %1268 = vmatpush.bf16.msra.mxu0 %v1034
        %1269 = vmatpush.bf16.msra.mxu0 %v1032
        %1270 = vmatpush.bf16.msra.mxu0 %v1030
        %1271 = vmatpush.bf16.msra.mxu0 %v1028
        %1272 = vmatpush.bf16.msra.mxu0 %v1026
        %1273 = vmatpush.bf16.msra.mxu0 %v1024
        %1274 = vmatpush.bf16.msra.mxu0 %v1022
        %1275 = vmatpush.bf16.msra.mxu0 %v1020
        %1276 = vmatmul.bf16.gmra.mxu0 %v560
        %v1277 = vpop.f32.mrf.mxu0
        %v1278 = vadd.f32 %v1264, %v1277
        %v1279 = vpop.f32.mrf.mxu0
        %v1280 = vadd.f32 %v1266, %v1279
        %1281 = vdwg.mxu0
        %1282 = vmatpush.bf16.msra.mxu0 %v1050
        %1283 = vmatpush.bf16.msra.mxu0 %v1048
        %1284 = vmatpush.bf16.msra.mxu0 %v1046
        %1285 = vmatpush.bf16.msra.mxu0 %v1044
        %1286 = vmatpush.bf16.msra.mxu0 %v1042
        %1287 = vmatpush.bf16.msra.mxu0 %v1040
        %1288 = vmatpush.bf16.msra.mxu0 %v1038
        %1289 = vmatpush.bf16.msra.mxu0 %v1036
        %1290 = vmatmul.bf16.gmra.mxu0 %v561
        %v1291 = vpop.f32.mrf.mxu0
        %v1292 = vadd.f32 %v1278, %v1291
        %v1293 = vpop.f32.mrf.mxu0
        %v1294 = vadd.f32 %v1280, %v1293
        %1295 = vdwg.mxu0
        %1296 = vmatpush.bf16.msra.mxu0 %v1066
        %1297 = vmatpush.bf16.msra.mxu0 %v1064
        %1298 = vmatpush.bf16.msra.mxu0 %v1062
        %1299 = vmatpush.bf16.msra.mxu0 %v1060
        %1300 = vmatpush.bf16.msra.mxu0 %v1058
        %1301 = vmatpush.bf16.msra.mxu0 %v1056
        %1302 = vmatpush.bf16.msra.mxu0 %v1054
        %1303 = vmatpush.bf16.msra.mxu0 %v1052
        %1304 = vmatmul.bf16.gmra.mxu0 %v562
        %v1305 = vpop.f32.mrf.mxu0
        %v1306 = vadd.f32 %v1292, %v1305
        %v1307 = vpop.f32.mrf.mxu0
        %v1308 = vadd.f32 %v1294, %v1307
        %1309 = vdwg.mxu0
        %1310 = vmatpush.bf16.msra.mxu0 %v1082
        %1311 = vmatpush.bf16.msra.mxu0 %v1080
        %1312 = vmatpush.bf16.msra.mxu0 %v1078
        %1313 = vmatpush.bf16.msra.mxu0 %v1076
        %1314 = vmatpush.bf16.msra.mxu0 %v1074
        %1315 = vmatpush.bf16.msra.mxu0 %v1072
        %1316 = vmatpush.bf16.msra.mxu0 %v1070
        %1317 = vmatpush.bf16.msra.mxu0 %v1068
        %1318 = vmatmul.bf16.gmra.mxu0 %v563
        %v1319 = vpop.f32.mrf.mxu0
        %v1320 = vadd.f32 %v1306, %v1319
        %v1321 = vpop.f32.mrf.mxu0
        %v1322 = vadd.f32 %v1308, %v1321
        %1323 = vdwg.mxu0
        %1324 = vmatpush.bf16.msra.mxu0 %v971
        %1325 = vmatpush.bf16.msra.mxu0 %v969
        %1326 = vmatpush.bf16.msra.mxu0 %v967
        %1327 = vmatpush.bf16.msra.mxu0 %v965
        %1328 = vmatpush.bf16.msra.mxu0 %v963
        %1329 = vmatpush.bf16.msra.mxu0 %v961
        %1330 = vmatpush.bf16.msra.mxu0 %v959
        %1331 = vmatpush.bf16.msra.mxu0 %v957
        %1332 = vmatmul.bf16.gmra.mxu0 %v556
        %v1333 = vpop.f32.mrf.mxu0
        %v1334 = vadd.f32 %v529, %v1333
        %v1335 = vpop.f32.mrf.mxu0
        %v1336 = vadd.f32 %v529, %v1335
        %1337 = vdwg.mxu0
        %1338 = vmatpush.bf16.msra.mxu0 %v987
        %1339 = vmatpush.bf16.msra.mxu0 %v985
        %1340 = vmatpush.bf16.msra.mxu0 %v983
        %1341 = vmatpush.bf16.msra.mxu0 %v981
        %1342 = vmatpush.bf16.msra.mxu0 %v979
        %1343 = vmatpush.bf16.msra.mxu0 %v977
        %1344 = vmatpush.bf16.msra.mxu0 %v975
        %1345 = vmatpush.bf16.msra.mxu0 %v973
        %1346 = vmatmul.bf16.gmra.mxu0 %v557
        %v1347 = vpop.f32.mrf.mxu0
        %v1348 = vadd.f32 %v1334, %v1347
        %v1349 = vpop.f32.mrf.mxu0
        %v1350 = vadd.f32 %v1336, %v1349
        %1351 = vdwg.mxu0
        %1352 = vmatpush.bf16.msra.mxu0 %v1003
        %1353 = vmatpush.bf16.msra.mxu0 %v1001
        %1354 = vmatpush.bf16.msra.mxu0 %v999
        %1355 = vmatpush.bf16.msra.mxu0 %v997
        %1356 = vmatpush.bf16.msra.mxu0 %v995
        %1357 = vmatpush.bf16.msra.mxu0 %v993
        %1358 = vmatpush.bf16.msra.mxu0 %v991
        %1359 = vmatpush.bf16.msra.mxu0 %v989
        %1360 = vmatmul.bf16.gmra.mxu0 %v558
        %v1361 = vpop.f32.mrf.mxu0
        %v1362 = vadd.f32 %v1348, %v1361
        %v1363 = vpop.f32.mrf.mxu0
        %v1364 = vadd.f32 %v1350, %v1363
        %1365 = vdwg.mxu0
        %1366 = vmatpush.bf16.msra.mxu0 %v1019
        %1367 = vmatpush.bf16.msra.mxu0 %v1017
        %1368 = vmatpush.bf16.msra.mxu0 %v1015
        %1369 = vmatpush.bf16.msra.mxu0 %v1013
        %1370 = vmatpush.bf16.msra.mxu0 %v1011
        %1371 = vmatpush.bf16.msra.mxu0 %v1009
        %1372 = vmatpush.bf16.msra.mxu0 %v1007
        %1373 = vmatpush.bf16.msra.mxu0 %v1005
        %1374 = vmatmul.bf16.gmra.mxu0 %v559
        %v1375 = vpop.f32.mrf.mxu0
        %v1376 = vadd.f32 %v1362, %v1375
        %v1377 = vpop.f32.mrf.mxu0
        %v1378 = vadd.f32 %v1364, %v1377
        %1379 = vdwg.mxu0
        %1380 = vmatpush.bf16.msra.mxu0 %v1035
        %1381 = vmatpush.bf16.msra.mxu0 %v1033
        %1382 = vmatpush.bf16.msra.mxu0 %v1031
        %1383 = vmatpush.bf16.msra.mxu0 %v1029
        %1384 = vmatpush.bf16.msra.mxu0 %v1027
        %1385 = vmatpush.bf16.msra.mxu0 %v1025
        %1386 = vmatpush.bf16.msra.mxu0 %v1023
        %1387 = vmatpush.bf16.msra.mxu0 %v1021
        %1388 = vmatmul.bf16.gmra.mxu0 %v560
        %v1389 = vpop.f32.mrf.mxu0
        %v1390 = vadd.f32 %v1376, %v1389
        %v1391 = vpop.f32.mrf.mxu0
        %v1392 = vadd.f32 %v1378, %v1391
        %1393 = vdwg.mxu0
        %1394 = vmatpush.bf16.msra.mxu0 %v1051
        %1395 = vmatpush.bf16.msra.mxu0 %v1049
        %1396 = vmatpush.bf16.msra.mxu0 %v1047
        %1397 = vmatpush.bf16.msra.mxu0 %v1045
        %1398 = vmatpush.bf16.msra.mxu0 %v1043
        %1399 = vmatpush.bf16.msra.mxu0 %v1041
        %1400 = vmatpush.bf16.msra.mxu0 %v1039
        %1401 = vmatpush.bf16.msra.mxu0 %v1037
        %1402 = vmatmul.bf16.gmra.mxu0 %v561
        %v1403 = vpop.f32.mrf.mxu0
        %v1404 = vadd.f32 %v1390, %v1403
        %v1405 = vpop.f32.mrf.mxu0
        %v1406 = vadd.f32 %v1392, %v1405
        %1407 = vdwg.mxu0
        %1408 = vmatpush.bf16.msra.mxu0 %v1067
        %1409 = vmatpush.bf16.msra.mxu0 %v1065
        %1410 = vmatpush.bf16.msra.mxu0 %v1063
        %1411 = vmatpush.bf16.msra.mxu0 %v1061
        %1412 = vmatpush.bf16.msra.mxu0 %v1059
        %1413 = vmatpush.bf16.msra.mxu0 %v1057
        %1414 = vmatpush.bf16.msra.mxu0 %v1055
        %1415 = vmatpush.bf16.msra.mxu0 %v1053
        %1416 = vmatmul.bf16.gmra.mxu0 %v562
        %v1417 = vpop.f32.mrf.mxu0
        %v1418 = vadd.f32 %v1404, %v1417
        %v1419 = vpop.f32.mrf.mxu0
        %v1420 = vadd.f32 %v1406, %v1419
        %1421 = vdwg.mxu0
        %1422 = vmatpush.bf16.msra.mxu0 %v1083
        %1423 = vmatpush.bf16.msra.mxu0 %v1081
        %1424 = vmatpush.bf16.msra.mxu0 %v1079
        %1425 = vmatpush.bf16.msra.mxu0 %v1077
        %1426 = vmatpush.bf16.msra.mxu0 %v1075
        %1427 = vmatpush.bf16.msra.mxu0 %v1073
        %1428 = vmatpush.bf16.msra.mxu0 %v1071
        %1429 = vmatpush.bf16.msra.mxu0 %v1069
        %1430 = vmatmul.bf16.gmra.mxu0 %v563
        %v1431 = vpop.f32.mrf.mxu0
        %v1432 = vadd.f32 %v1418, %v1431
        %v1433 = vpop.f32.mrf.mxu0
        %v1434 = vadd.f32 %v1420, %v1433
        %1435 = vdwg.mxu0
        %v1436 = vmax.f32 %v1320, 0.0
        %v1437 = vmax.f32 %v1432, 0.0
        %v1438 = vmax.f32 %v1322, 0.0
        %v1439 = vmax.f32 %v1434, 0.0
        %v1440 = vpack.c.bf16 %v1438, %v1436
        %v1441 = vpack.c.bf16 %v1439, %v1437
        %v1442 = vld [vmem:[#allocation7] sm:$0xf]
        %v1443 = vld [vmem:[#allocation7 + $0x4] sm:$0xf]
        %v1444 = vld [vmem:[#allocation7 + $0x8] sm:$0xf]
        %v1445 = vld [vmem:[#allocation7 + $0xc] sm:$0xf]
        %v1446 = vld [vmem:[#allocation7 + $0x10] sm:$0xf]
        %v1447 = vld [vmem:[#allocation7 + $0x14] sm:$0xf]
        %v1448 = vld [vmem:[#allocation7 + $0x18] sm:$0xf]
        %v1449 = vld [vmem:[#allocation7 + $0x1c] sm:$0xf]
        %v1450 = vld [vmem:[#allocation7 + $0x20] sm:$0xf]
        %v1451 = vld [vmem:[#allocation7 + $0x24] sm:$0xf]
        %v1452 = vld [vmem:[#allocation7 + $0x28] sm:$0xf]
        %v1453 = vld [vmem:[#allocation7 + $0x2c] sm:$0xf]
        %v1454 = vld [vmem:[#allocation7 + $0x30] sm:$0xf]
        %v1455 = vld [vmem:[#allocation7 + $0x34] sm:$0xf]
        %v1456 = vld [vmem:[#allocation7 + $0x38] sm:$0xf]
        %v1457 = vld [vmem:[#allocation7 + $0x3c] sm:$0xf]
        %v1458 = vld [vmem:[#allocation7 + $0x40] sm:$0xf]
        %v1459 = vld [vmem:[#allocation7 + $0x44] sm:$0xf]
        %v1460 = vld [vmem:[#allocation7 + $0x48] sm:$0xf]
        %v1461 = vld [vmem:[#allocation7 + $0x4c] sm:$0xf]
        %v1462 = vld [vmem:[#allocation7 + $0x50] sm:$0xf]
        %v1463 = vld [vmem:[#allocation7 + $0x54] sm:$0xf]
        %v1464 = vld [vmem:[#allocation7 + $0x58] sm:$0xf]
        %v1465 = vld [vmem:[#allocation7 + $0x5c] sm:$0xf]
        %v1466 = vld [vmem:[#allocation7 + $0x60] sm:$0xf]
        %v1467 = vld [vmem:[#allocation7 + $0x64] sm:$0xf]
        %v1468 = vld [vmem:[#allocation7 + $0x68] sm:$0xf]
        %v1469 = vld [vmem:[#allocation7 + $0x6c] sm:$0xf]
        %v1470 = vld [vmem:[#allocation7 + $0x70] sm:$0xf]
        %v1471 = vld [vmem:[#allocation7 + $0x74] sm:$0xf]
        %v1472 = vld [vmem:[#allocation7 + $0x78] sm:$0xf]
        %v1473 = vld [vmem:[#allocation7 + $0x7c] sm:$0xf]
        %v1474 = vld [vmem:[%s4] sm:$0x1]
        %v1476 = vperm.slane %v1474, 0
        %v1510 = vunpack.c.l.b16 %v1442
        %v1511 = vunpack.c.l.b16 %v1443
        %v1512 = vunpack.c.l.b16 %v1444
        %v1513 = vunpack.c.l.b16 %v1445
        %v1514 = vunpack.c.l.b16 %v1446
        %v1515 = vunpack.c.l.b16 %v1447
        %v1516 = vunpack.c.l.b16 %v1448
        %v1517 = vunpack.c.l.b16 %v1449
        %v1518 = vunpack.c.l.b16 %v1450
        %v1519 = vunpack.c.l.b16 %v1451
        %v1520 = vunpack.c.l.b16 %v1452
        %v1521 = vunpack.c.l.b16 %v1453
        %v1522 = vunpack.c.l.b16 %v1454
        %v1523 = vunpack.c.l.b16 %v1455
        %v1524 = vunpack.c.l.b16 %v1456
        %v1525 = vunpack.c.l.b16 %v1457
        %v1526 = vunpack.c.l.b16 %v1458
        %v1527 = vunpack.c.l.b16 %v1459
        %v1528 = vunpack.c.l.b16 %v1460
        %v1529 = vunpack.c.l.b16 %v1461
        %v1530 = vunpack.c.l.b16 %v1462
        %v1531 = vunpack.c.l.b16 %v1463
        %v1532 = vunpack.c.l.b16 %v1464
        %v1533 = vunpack.c.l.b16 %v1465
        %v1534 = vunpack.c.l.b16 %v1466
        %v1535 = vunpack.c.l.b16 %v1467
        %v1536 = vunpack.c.l.b16 %v1468
        %v1537 = vunpack.c.l.b16 %v1469
        %v1538 = vunpack.c.l.b16 %v1470
        %v1539 = vunpack.c.l.b16 %v1471
        %v1540 = vunpack.c.l.b16 %v1472
        %v1541 = vunpack.c.l.b16 %v1473
        %v1542 = vpack.c.b16 %v1511, %v1510
        %v1543 = vpack.c.b16 %v1513, %v1512
        %v1544 = vpack.c.b16 %v1515, %v1514
        %v1545 = vpack.c.b16 %v1517, %v1516
        %v1546 = vpack.c.b16 %v1519, %v1518
        %v1547 = vpack.c.b16 %v1521, %v1520
        %v1548 = vpack.c.b16 %v1523, %v1522
        %v1549 = vpack.c.b16 %v1525, %v1524
        %v1550 = vpack.c.b16 %v1527, %v1526
        %v1551 = vpack.c.b16 %v1529, %v1528
        %v1552 = vpack.c.b16 %v1531, %v1530
        %v1553 = vpack.c.b16 %v1533, %v1532
        %v1554 = vpack.c.b16 %v1535, %v1534
        %v1555 = vpack.c.b16 %v1537, %v1536
        %v1556 = vpack.c.b16 %v1539, %v1538
        %v1557 = vpack.c.b16 %v1541, %v1540
        %1574 = vmatpush.bf16.msra.mxu0 %v1549
        %1575 = vmatpush.bf16.msra.mxu0 %v1548
        %1576 = vmatpush.bf16.msra.mxu0 %v1547
        %1577 = vmatpush.bf16.msra.mxu0 %v1546
        %1578 = vmatpush.bf16.msra.mxu0 %v1545
        %1579 = vmatpush.bf16.msra.mxu0 %v1544
        %1580 = vmatpush.bf16.msra.mxu0 %v1543
        %1581 = vmatpush.bf16.msra.mxu0 %v1542
        %1582 = vmatmul.bf16.gmra.mxu0 %v1440
        %v1583 = vpop.f32.mrf.mxu0
        %v1584 = vadd.f32 %v1476, %v1583
        %v1585 = vpop.f32.mrf.mxu0
        %v1586 = vadd.f32 %v1476, %v1585
        %1587 = vdwg.mxu0
        %1588 = vmatpush.bf16.msra.mxu0 %v1557
        %1589 = vmatpush.bf16.msra.mxu0 %v1556
        %1590 = vmatpush.bf16.msra.mxu0 %v1555
        %1591 = vmatpush.bf16.msra.mxu0 %v1554
        %1592 = vmatpush.bf16.msra.mxu0 %v1553
        %1593 = vmatpush.bf16.msra.mxu0 %v1552
        %1594 = vmatpush.bf16.msra.mxu0 %v1551
        %1595 = vmatpush.bf16.msra.mxu0 %v1550
        %1596 = vmatmul.bf16.gmra.mxu0 %v1441
        %v1597 = vpop.f32.mrf.mxu0
        %v1598 = vadd.f32 %v1584, %v1597
        %v1599 = vpop.f32.mrf.mxu0
        %v1600 = vadd.f32 %v1586, %v1599
        %1601 = vdwg.mxu0
        %v1602 = vmax.f32 %v1598, 0.0
        %v1603 = vmax.f32 %v1600, 0.0
        %v1604 = vpack.c.bf16 %v1603, %v1602
        %v1605 = vld [vmem:[%s5] sm:$0xf]
        %v1606 = vld [vmem:[%s5 + $0x4] sm:$0xf]
        %v1607 = vld [vmem:[%s5 + $0x8] sm:$0xf]
        %v1608 = vld [vmem:[%s5 + $0xc] sm:$0xf]
        %v1609 = vld [vmem:[%s5 + $0x10] sm:$0xf]
        %v1610 = vld [vmem:[%s5 + $0x14] sm:$0xf]
        %v1611 = vld [vmem:[%s5 + $0x18] sm:$0xf]
        %v1612 = vld [vmem:[%s5 + $0x1c] sm:$0xf]
        %v1613 = vld [vmem:[%s5 + $0x20] sm:$0xf]
        %v1614 = vld [vmem:[%s5 + $0x24] sm:$0xf]
        %v1615 = vld [vmem:[%s5 + $0x28] sm:$0xf]
        %v1616 = vld [vmem:[%s5 + $0x2c] sm:$0xf]
        %v1617 = vld [vmem:[%s5 + $0x30] sm:$0xf]
        %v1618 = vld [vmem:[%s5 + $0x34] sm:$0xf]
        %v1619 = vld [vmem:[%s5 + $0x38] sm:$0xf]
        %v1620 = vld [vmem:[%s5 + $0x3c] sm:$0xf]
        %v1621 = vld [vmem:[%s6] sm:$0x1]
        %v1623 = vperm.slane %v1621, 0
        %v1641 = vunpack.c.l.b16 %v1605
        %v1642 = vunpack.c.l.b16 %v1606
        %v1643 = vunpack.c.l.b16 %v1607
        %v1644 = vunpack.c.l.b16 %v1608
        %v1645 = vunpack.c.l.b16 %v1609
        %v1646 = vunpack.c.l.b16 %v1610
        %v1647 = vunpack.c.l.b16 %v1611
        %v1648 = vunpack.c.l.b16 %v1612
        %v1649 = vunpack.c.l.b16 %v1613
        %v1650 = vunpack.c.l.b16 %v1614
        %v1651 = vunpack.c.l.b16 %v1615
        %v1652 = vunpack.c.l.b16 %v1616
        %v1653 = vunpack.c.l.b16 %v1617
        %v1654 = vunpack.c.l.b16 %v1618
        %v1655 = vunpack.c.l.b16 %v1619
        %v1656 = vunpack.c.l.b16 %v1620
        %v1657 = vpack.c.b16 %v1642, %v1641
        %v1658 = vpack.c.b16 %v1644, %v1643
        %v1659 = vpack.c.b16 %v1646, %v1645
        %v1660 = vpack.c.b16 %v1648, %v1647
        %v1661 = vpack.c.b16 %v1650, %v1649
        %v1662 = vpack.c.b16 %v1652, %v1651
        %v1663 = vpack.c.b16 %v1654, %v1653
        %v1664 = vpack.c.b16 %v1656, %v1655
        %1673 = vmatpush.bf16.msra.mxu0 %v1664
        %1674 = vmatpush.bf16.msra.mxu0 %v1663
        %1675 = vmatpush.bf16.msra.mxu0 %v1662
        %1676 = vmatpush.bf16.msra.mxu0 %v1661
        %1677 = vmatpush.bf16.msra.mxu0 %v1660
        %1678 = vmatpush.bf16.msra.mxu0 %v1659
        %1679 = vmatpush.bf16.msra.mxu0 %v1658
        %1680 = vmatpush.bf16.msra.mxu0 %v1657
        %1681 = vmatmul.bf16.gmra.mxu0 %v1604
        %v1682 = vpop.f32.mrf.mxu0
        %v1683 = vadd.f32 %v1623, %v1682
        %v1684 = vpop.f32.mrf.mxu0
        %v1685 = vadd.f32 %v1623, %v1684
        %1686 = vdwg.mxu0
        %v1687 = vmax.f32 %v1683, 0.0
        %v1688 = vmax.f32 %v1685, 0.0
        %v1689 = vpack.c.bf16 %v1688, %v1687
        %v1690 = vld [vmem:[%s7] sm:$0xf]
        %v1691 = vld [vmem:[%s7 + $0x4] sm:$0xf]
        %v1692 = vld [vmem:[%s7 + $0x8] sm:$0xf]
        %v1693 = vld [vmem:[%s7 + $0xc] sm:$0xf]
        %v1694 = vld [vmem:[%s7 + $0x10] sm:$0xf]
        %v1695 = vld [vmem:[%s7 + $0x14] sm:$0xf]
        %v1696 = vld [vmem:[%s7 + $0x18] sm:$0xf]
        %v1697 = vld [vmem:[%s7 + $0x1c] sm:$0xf]
        %v1698 = vld [vmem:[%s8] sm:$0x1]
        %v1700 = vperm.slane %v1698, 0
        %v1710 = vunpack.c.l.b16 %v1690
        %v1711 = vunpack.c.l.b16 %v1691
        %v1712 = vunpack.c.l.b16 %v1692
        %v1713 = vunpack.c.l.b16 %v1693
        %v1714 = vunpack.c.l.b16 %v1694
        %v1715 = vunpack.c.l.b16 %v1695
        %v1716 = vunpack.c.l.b16 %v1696
        %v1717 = vunpack.c.l.b16 %v1697
        %v1718 = vpack.c.b16 %v1711, %v1710
        %v1719 = vpack.c.b16 %v1713, %v1712
        %v1720 = vpack.c.b16 %v1715, %v1714
        %v1721 = vpack.c.b16 %v1717, %v1716
        %vm1726 = vcmask 523264
        %v1728 = vsel %vm1726, %v1689, 0
        %1730 = vmatpush.bf16.msra.mxu0 0
        %1731 = vmatpush.bf16.msra.mxu0 0
        %1732 = vmatpush.bf16.msra.mxu0 0
        %1733 = vmatpush.bf16.msra.mxu0 0
        %1734 = vmatpush.bf16.msra.mxu0 %v1721
        %1735 = vmatpush.bf16.msra.mxu0 %v1720
        %1736 = vmatpush.bf16.msra.mxu0 %v1719
        %1737 = vmatpush.bf16.msra.mxu0 %v1718
        %1738 = vmatmul.bf16.gmra.mxu0 %v1728
        %v1739 = vpop.f32.mrf.mxu0
        %v1740 = vadd.f32 %v1700, %v1739
        %v1741 = vpop.f32.mrf.mxu0
        %v1742 = vadd.f32 %v1700, %v1741
        %1743 = vdwg.mxu0
        %1744 = vst [vmem:[%s386] sm:$0xff] %v1740
        %1745 = vst [vmem:[%s386 + $0x8] sm:$0xff] %v1742
        %s1746 = sand.u32 %s229, 1
        %s1747 = scalar_lea.sflag [#allocation4], %s1746
        %s1748 = sand.u32 %s229, 1
        %s1749 = smul.addr %s1748, 16
        %s1750 = scalar_lea.vmem [#allocation8], %s1749
        // Predicated region
        $region69: #{tpu_custom_call.1} parent=55 // pred_check
          %p1751 = pneg %p239
        $region70: #{tpu_custom_call.1} parent=55 // pred_check_branch
          %1753 = sbr.rel (%p1751) target = $region72
        $region71: #{tpu_custom_call.1} parent=55 // pred_region
          %s1754 = smul.u32 2, %s27
          %1756 = vsyncadd %s1747, 0
          %s1757 = smul.addr %s1754, 8
          %s1758 = scalar_lea.hbm %s9, %s1757
          %s1759 = sshll.u32 %s1750, 4
          %s1760 = int_to_ptr.vmem [resolvable:$true] %s1759
          %s1761 = sshll.u32 %s1758, 4
          %s1762 = int_to_ptr.hbm [resolvable:$true] %s1761
          %1767 = dma.vmem_to_hbm [thread:$0]  %s1760, 256, %s1762, %s1747, 128, 128, 8
        $region72: #{tpu_custom_call.1} parent=55 // pred_fallthru
          _
      $region56: #{tpu_custom_call.1} parent=5 // pred_fallthru
        _
      %p1768 = scmp.le.s32.totalorder 2, %s22
      // Predicated region
      $region73: #{tpu_custom_call.1} parent=5 // pred_check
        %p1769 = pneg %p1768
      $region74: #{tpu_custom_call.1} parent=5 // pred_check_branch
        %1771 = sbr.rel (%p1769) target = $region76
      $region75: #{tpu_custom_call.1} parent=5 // pred_region
        %s1772 = ssub.s32 %s22, 2
        // Predicated region
        $region77: #{tpu_custom_call.1} parent=75 // pred_check
          %p1773 = pneg %p245
        $region78: #{tpu_custom_call.1} parent=75 // pred_check_branch
          %1775 = sbr.rel (%p1773) target = $region80
        $region79: #{tpu_custom_call.1} parent=75 // pred_region
          %s1776 = sand.u32 %s230, 1
          %s1777 = scalar_lea.sflag [#allocation4], %s1776
          %s1778 = sand.u32 %s230, 1
          %s1779 = smul.addr %s1778, 16
          %s1780 = scalar_lea.vmem [#allocation8], %s1779
          %1782 = dma.done %s1777, 256
        $region80: #{tpu_custom_call.1} parent=75 // pred_fallthru
          _
      $region76: #{tpu_custom_call.1} parent=5 // pred_fallthru
        _
    $region6: #{tpu_custom_call.1} parent=1 // loop_footer
      %s26 = sadd.s32 1, %s22
    $region7: #{tpu_custom_call.1} parent=1 // loop_footer_branch
      %21 = sbr.rel target = $region3
    $region8: #{tpu_custom_call.1} parent=1 // loop_exit
      _
    %1783 = vsyncpa [#allocation3], 1
    %s1784 = scalar_lea.sflag [#allocation3], 1
    %1785 = vsyncpa %s1784, 1
    %1786 = vsyncpa [#allocation6], 1
    %1787 = vsyncpa [#allocation4], 1
    %s1788 = scalar_lea.sflag [#allocation4], 1
    %1789 = vsyncpa %s1788, 1

</llo_original>
